<compile_context>
chip_gen: v6e
topology: v6e:2x2x1
jax: 0.10.0
libtpu: 0.0.40
codegen_flags: <defaults>
</compile_context>

<pallas_src>
import functools

import numpy as np

import jax
import jax.numpy as jnp
from jax.experimental import pallas as pl
from jax.experimental.pallas import tpu as pltpu


# ----------------------------------------------------------------------------
# Fused whole-network kernel (one grid step per batch element)
# ----------------------------------------------------------------------------
def _drnet_kernel(x_ref, w1_ref, b1_ref, wmid_ref, bmid_ref,
                  wd1_ref, bd1_ref, wd3_ref, bd3_ref,
                  sb_ref, ma_ref, mc_ref,
                  enc_ref, codeb_ref, out_ref,
                  *, n_resblocks, res_scale, H, W, H2, W2):
    f32, bf16 = jnp.float32, jnp.bfloat16
    Wp, Wp2 = W + 2, W2 + 2                  # padded row widths (full / half res)
    rows_a, rows_c = H * Wp, H2 * Wp2        # raw (uncropped) conv output columns

    mask_a = ma_ref[...]                     # (1, rows_a): 1.0 where col % Wp  < W
    mask_c = mc_ref[...]                     # (1, rows_c): 1.0 where col % Wp2 < W2

    def conv3x3(x_slab, w, b, wp, rows):
        # x_slab: (Cin, slab) zero-ring padded slab (f32 or bf16)
        # w: (Cout, 9*Cin) bf16 (BN scale folded);  b: (Cout, 1) f32
        xb = x_slab.astype(bf16)                               # cast once, then slice
        taps = [xb[:, kh * wp + kw: kh * wp + kw + rows]
                for kh in range(3) for kw in range(3)]
        p = jnp.concatenate(taps, axis=0)                      # (9*Cin, rows) bf16
        return jnp.dot(w, p, preferred_element_type=f32) + b   # (Cout, rows) f32

    def repad(y, mask, wp, dtype):
        # zero the garbage columns with a lane mask (VPU), shift by wp+1 and
        # re-grow the zero ring + guard -- replaces the old selection matmuls.
        C = y.shape[0]
        z = jnp.zeros((C, wp + 1), dtype)
        return jnp.concatenate([z, (y * mask).astype(dtype), z], axis=1)

    # ------------------------------ encoder ------------------------------
    x0 = x_ref[0]                                                           # (Cin_p, SLAB_A)
    y = jnp.maximum(conv3x3(x0, w1_ref[...], b1_ref[...], Wp, rows_a), 0.0)     # conv1
    xs = repad(y, mask_a, Wp, bf16)
    y = jnp.maximum(conv3x3(xs, wmid_ref[0], bmid_ref[0], Wp, rows_a), 0.0)     # conv2
    xs = repad(y, mask_a, Wp, bf16)
    y = jnp.maximum(conv3x3(xs, wmid_ref[1], bmid_ref[1], Wp, rows_a), 0.0)     # conv3
    # stride-2 subsample + re-pad into the half-res slab: only selection dot left.
    xpc = jnp.dot(y, sb_ref[...], preferred_element_type=f32)               # (Cf, SLAB_C) f32

    wi = 2
    for _ in range(n_resblocks):
        y = jnp.maximum(conv3x3(xpc, wmid_ref[wi], bmid_ref[wi], Wp2, rows_c), 0.0)
        ts = repad(y, mask_c, Wp2, bf16)
        t = conv3x3(ts, wmid_ref[wi + 1], bmid_ref[wi + 1], Wp2, rows_c)
        if res_scale != 1.0:                       # skip the multiply at 1.0
            t = t * res_scale
        xpc = xpc + repad(t, mask_c, Wp2, f32)     # padded rings stay exactly 0
        wi += 2

    # output 1: encoder features as the (zero-ring) padded slab; the valid
    # interior is sliced out in the wrapper (no in-kernel crop matmul).
    enc_ref[0] = xpc

    # ------------------------------ decoder ------------------------------
    Cf = xpc.shape[0]

    # deconv1: ConvTranspose2d(k=4, s=2, p=1) as 4 sub-pixel 2x2-tap convs.
    xpc_b = xpc.astype(bf16)
    bd1b = jnp.broadcast_to(bd1_ref[...], (Cf, rows_c))        # hoisted broadcast
    ph_slabs = []
    for ph_i in range(4):
        ph, pw = ph_i // 2, ph_i % 2
        roffs = (0, 1) if ph == 0 else (1, 2)
        coffs = (0, 1) if pw == 0 else (1, 2)
        taps = [xpc_b[:, ro * Wp2 + co: ro * Wp2 + co + rows_c]
                for ro in roffs for co in coffs]
        pm = jnp.concatenate(taps, axis=0)                     # (4*Cf, rows_c) bf16
        yph = jnp.dot(wd1_ref[ph_i], pm, preferred_element_type=f32) + bd1b
        yph = jnp.maximum(yph, 0.0)
        ph_slabs.append(repad(yph, mask_c, Wp2, bf16))         # (Cf, SLAB_C) bf16, zero ring

    # deconv2: 3x3 conv at full resolution evaluated directly in the sub-pixel
    # phase domain (full-res pixel (2i+a, 2j+b) == phase (a,b) at (i,j)).  All
    # four output phases share the weights, so it is ONE dot with the four
    # phase patches stacked along the lane dim; no full-res interleave needed.
    out_phases = ((0, 0), (0, 1), (1, 0), (1, 1))
    tap_blocks = []
    for kh in range(3):
        for kw in range(3):
            dy, dx = kh - 1, kw - 1
            cols = []
            for (a, b) in out_phases:
                src = ph_slabs[((a + dy) & 1) * 2 + ((b + dx) & 1)]
                off = ((a + dy) // 2 + 1) * Wp2 + ((b + dx) // 2 + 1)
                cols.append(src[:, off:off + rows_c])
            tap_blocks.append(jnp.concatenate(cols, axis=1))   # (Cf, 4*rows_c) bf16
    p2 = jnp.concatenate(tap_blocks, axis=0)                   # (9*Cf, 4*rows_c) bf16
    dwi = 2 + 2 * n_resblocks
    z = jnp.dot(wmid_ref[dwi], p2, preferred_element_type=f32) + bmid_ref[dwi]
    z = jnp.maximum(z, 0.0)                                    # code_B, phase-major
    codeb_ref[0] = z

    # deconv3: 1x1 conv (no norm) + ReLU, same phase-major layout.
    o = jnp.dot(wd3_ref[...], z.astype(bf16), preferred_element_type=f32) + bd3_ref[...]
    out_ref[0] = jnp.maximum(o, 0.0)


# ----------------------------------------------------------------------------
# Parameter construction (synthetic weights, PyTorch layouts)
# ----------------------------------------------------------------------------
def _conv_params(key, cin, cout, k):
    kw, kb = jax.random.split(key)
    w = jax.random.normal(kw, (cout, cin, k, k), jnp.float32) / jnp.sqrt(cin * k * k)
    b = jax.random.normal(kb, (cout,), jnp.float32) * 0.01
    return w, b


def _bn_params(cout):
    # PyTorch-default BatchNorm2d parameters / running stats (eval semantics)
    return (jnp.ones((cout,), jnp.float32),   # gamma
            jnp.zeros((cout,), jnp.float32),  # beta
            jnp.zeros((cout,), jnp.float32),  # running mean
            jnp.ones((cout,), jnp.float32),   # running var
            1e-5)                             # eps


def init_drnet_params(key, in_channels, out_channels, n_feats, n_resblocks):
    keys = jax.random.split(key, 6 + 2 * n_resblocks)
    p = {}
    p['conv1'] = _conv_params(keys[0], in_channels, n_feats, 3) + (None,)
    p['conv2'] = _conv_params(keys[1], n_feats, n_feats, 3) + (_bn_params(n_feats),)
    p['conv3'] = _conv_params(keys[2], n_feats, n_feats, 3) + (_bn_params(n_feats),)
    blocks = []
    for i in range(n_resblocks):
        c1 = _conv_params(keys[3 + 2 * i], n_feats, n_feats, 3) + (_bn_params(n_feats),)
        c2 = _conv_params(keys[4 + 2 * i], n_feats, n_feats, 3) + (_bn_params(n_feats),)
        blocks.append((c1, c2))
    p['res'] = blocks
    base = 3 + 2 * n_resblocks
    # deconv1: ConvTranspose2d weight layout (Cin, Cout, 4, 4)
    kdw, kdb = jax.random.split(keys[base])
    wt = jax.random.normal(kdw, (n_feats, n_feats, 4, 4), jnp.float32) / jnp.sqrt(n_feats * 16)
    bt = jax.random.normal(kdb, (n_feats,), jnp.float32) * 0.01
    p['deconv1'] = (wt, bt, _bn_params(n_feats))
    p['deconv2'] = _conv_params(keys[base + 1], n_feats, n_feats, 3) + (_bn_params(n_feats),)
    p['deconv3'] = _conv_params(keys[base + 2], n_feats, out_channels, 1) + (None,)
    return p


# ----------------------------------------------------------------------------
# Forward pass (default config: BN, se=None, res_scale=1, k_bottom=3, no pyramid)
# ----------------------------------------------------------------------------
def drnet_forward(params, x_nchw, res_scale=1.0):
    B, Cin, H, W = x_nchw.shape
    assert H % 2 == 0 and W % 2 == 0, "spatial dims must be even"

    Cf = params['conv1'][0].shape[0]
    Cout = params['deconv3'][0].shape[0]
    n_res = len(params['res'])
    assert Cf % 8 == 0

    H2, W2 = H // 2, W // 2
    Hp, Wp = H + 2, W + 2
    Hp2, Wp2 = H2 + 2, W2 + 2
    rows_a, rows_c = H * Wp, H2 * Wp2
    SLAB_A = Hp * Wp + 2          # +2 guard so every 3x3 tap slice stays in-bounds
    SLAB_C = Hp2 * Wp2 + 2
    cin_p = max(8, ((Cin + 7) // 8) * 8)   # pad input channels to a sublane multiple

    # ---- fold BN into weights, stack the 9 conv taps (bf16 MXU operands) ----
    def fold(bias, bn, cout):
        if bn is None:
            return jnp.ones((cout,), jnp.float32), bias.astype(jnp.float32)
        gamma, beta, mean, var, eps = bn
        s = gamma / jnp.sqrt(var + eps)
        return s.astype(jnp.float32), (beta + (bias - mean) * s).astype(jnp.float32)

    def stack3x3(w, s, cin_target):
        cout, cin = w.shape[:2]
        taps = []
        for kh in range(3):
            for kw in range(3):
                m = w[:, :, kh, kw]
                if cin_target != cin:
                    m = jnp.pad(m, ((0, 0), (0, cin_target - cin)))
                taps.append(m)
        return (jnp.concatenate(taps, axis=1) * s[:, None]).astype(jnp.bfloat16)

    w, b, bn = params['conv1']
    s1, bias1 = fold(b, bn, Cf)
    w1s = stack3x3(w, s1, cin_p)
    b1s = bias1.reshape(Cf, 1)

    mids = [params['conv2'], params['conv3']]
    for (c1, c2) in params['res']:
        mids += [c1, c2]
    mids.append(params['deconv2'])
    wmid_l, bmid_l = [], []
    for (w, b, bn) in mids:
        s, bias = fold(b, bn, Cf)
        wmid_l.append(stack3x3(w, s, Cf))
        bmid_l.append(bias.reshape(Cf, 1))
    wmid = jnp.stack(wmid_l)            # (3+2n, Cf, 9*Cf) bf16
    bmid = jnp.stack(bmid_l)            # (3+2n, Cf, 1)    f32

    # deconv1: sub-pixel decomposition of ConvTranspose2d(4, s=2, p=1)
    wt, bt, bnt = params['deconv1']
    sd1, biasd1 = fold(bt, bnt, Cf)
    phases = []
    for ph in (0, 1):
        rtaps = ((0, 3), (1, 1)) if ph == 0 else ((1, 2), (2, 0))
        for pw in (0, 1):
            ctaps = ((0, 3), (1, 1)) if pw == 0 else ((1, 2), (2, 0))
            mats = []
            for (_, kh) in rtaps:
                for (_, kw) in ctaps:
                    mats.append(wt[:, :, kh, kw].T)           # (Cout, Cin)
            phases.append(jnp.concatenate(mats, axis=1))      # (Cf, 4*Cf)
    wd1 = (jnp.stack(phases) * sd1[None, :, None]).astype(jnp.bfloat16)   # (4, Cf, 4Cf)
    bd1 = biasd1.reshape(Cf, 1)

    w3, b3, _ = params['deconv3']
    wd3 = w3[:, :, 0, 0].astype(jnp.bfloat16)                 # (Cout, Cf)
    bd3 = b3.astype(jnp.float32).reshape(Cout, 1)

    # ---- small constants: the stride-2 gather matrix + garbage-column masks ----
    hc, wc = np.meshgrid(np.arange(H2), np.arange(W2), indexing='ij')
    hc, wc = hc.ravel(), wc.ravel()
    sb_np = np.zeros((rows_a, SLAB_C), np.float32)
    sb_np[(2 * hc) * Wp + 2 * wc, (hc + 1) * Wp2 + (wc + 1)] = 1.0   # stride-2 + re-pad
    S_b = jnp.asarray(sb_np)
    mask_a = jnp.asarray((np.arange(rows_a) % Wp < W)
                         .astype(np.float32).reshape(1, rows_a))
    mask_c = jnp.asarray((np.arange(rows_c) % Wp2 < W2)
                         .astype(np.float32).reshape(1, rows_c))

    # ---- network input: one-time pad to the (Cin_p, SLAB_A) padded-slab layout ----
    xp = jnp.pad(x_nchw.astype(jnp.float32),
                 ((0, 0), (0, cin_p - Cin), (1, 1), (1, 1)))
    xp = jnp.pad(xp.reshape(B, cin_p, Hp * Wp), ((0, 0), (0, 0), (0, 2)))

    kernel = functools.partial(_drnet_kernel, n_resblocks=n_res,
                               res_scale=float(res_scale),
                               H=H, W=W, H2=H2, W2=W2)

    consts = (w1s, b1s, wmid, bmid, wd1, bd1, wd3, bd3, S_b, mask_a, mask_c)

    def _const_spec(a):
        return pl.BlockSpec(a.shape, lambda b, n=a.ndim: (0,) * n)

    def _nbytes(a):
        return int(a.size) * a.dtype.itemsize

    # scoped-VMEM budget from the actual operand footprint (x2 for the default
    # double buffer) plus headroom for in-kernel temporaries.
    step_io = (cin_p * SLAB_A + Cf * SLAB_C + (Cf + Cout) * 4 * rows_c) * 4
    vmem_limit = int(2 * (sum(_nbytes(c) for c in consts) + step_io) + (8 << 20))

    out_shapes = (jax.ShapeDtypeStruct((B, Cf, SLAB_C), jnp.float32),        # enc slab
                  jax.ShapeDtypeStruct((B, Cf, 4 * rows_c), jnp.float32),    # code_B (phase-major)
                  jax.ShapeDtypeStruct((B, Cout, 4 * rows_c), jnp.float32))  # out    (phase-major)

    enc_raw, codeb_raw, out_raw = pl.pallas_call(
        kernel,
        out_shape=out_shapes,
        grid=(B,),
        in_specs=[pl.BlockSpec((1, cin_p, SLAB_A), lambda b: (b, 0, 0))]
                 + [_const_spec(a) for a in consts],
        out_specs=(pl.BlockSpec((1, Cf, SLAB_C), lambda b: (b, 0, 0)),
                   pl.BlockSpec((1, Cf, 4 * rows_c), lambda b: (b, 0, 0)),
                   pl.BlockSpec((1, Cout, 4 * rows_c), lambda b: (b, 0, 0))),
        compiler_params=pltpu.CompilerParams(
            dimension_semantics=("parallel",),
            vmem_limit_bytes=vmem_limit),
    )(xp, *consts)

    # ---- wrapper-side layout plumbing (cheap XLA slices / transposes) ----
    feats = (enc_raw[:, :, :Hp2 * Wp2]
             .reshape(B, Cf, Hp2, Wp2)[:, :, 1:1 + H2, 1:1 + W2])

    def deinterleave(raw, C):
        r = raw.reshape(B, C, 2, 2, H2, Wp2)[..., :W2]          # (B,C,a,b,i,j)
        return r.transpose(0, 1, 4, 2, 5, 3).reshape(B, C, H, W)

    return feats, deinterleave(codeb_raw, Cf), deinterleave(out_raw, Cout)


# ----------------------------------------------------------------------------
# Pure-JAX reference of the PyTorch module (for numerical validation)
# ----------------------------------------------------------------------------
def _bn_eval(y, bn):
    gamma, beta, mean, var, eps = bn
    s = gamma / jnp.sqrt(var + eps)
    return y * s[None, :, None, None] + (beta - mean * s)[None, :, None, None]


def _conv2d_ref(x, w, b, stride, pad):
    y = jax.lax.conv_general_dilated(
        x, w, (stride, stride), [(pad, pad), (pad, pad)],
        dimension_numbers=('NCHW', 'OIHW', 'NCHW'))
    return y + b[None, :, None, None]


def _deconv2d_ref(x, wt, b, stride, pad):
    # ConvTranspose2d == conv of the stride-dilated input with the spatially
    # flipped, channel-transposed kernel and padding k-1-p.
    k = wt.shape[2]
    w = jnp.transpose(jnp.flip(wt, axis=(2, 3)), (1, 0, 2, 3))
    p = k - 1 - pad
    y = jax.lax.conv_general_dilated(
        x, w, (1, 1), [(p, p), (p, p)], lhs_dilation=(stride, stride),
        dimension_numbers=('NCHW', 'OIHW', 'NCHW'))
    return y + b[None, :, None, None]


def drnet_reference(params, x, res_scale=1.0):
    relu = lambda v: jnp.maximum(v, 0.0)
    w, b, _ = params['conv1'];  h = relu(_conv2d_ref(x, w, b, 1, 1))
    w, b, bn = params['conv2']; h = relu(_bn_eval(_conv2d_ref(h, w, b, 1, 1), bn))
    w, b, bn = params['conv3']; h = relu(_bn_eval(_conv2d_ref(h, w, b, 2, 1), bn))
    for c1, c2 in params['res']:
        r = h
        w, b, bn = c1; t = relu(_bn_eval(_conv2d_ref(h, w, b, 1, 1), bn))
        w, b, bn = c2; t = _bn_eval(_conv2d_ref(t, w, b, 1, 1), bn)
        h = t * res_scale + r
    feats = h
    wt, bt, bn = params['deconv1']
    h2 = relu(_bn_eval(_deconv2d_ref(h, wt, bt, 2, 1), bn))
    w, b, bn = params['deconv2']; h2 = relu(_bn_eval(_conv2d_ref(h2, w, b, 1, 1), bn))
    code_b = h2
    w, b, _ = params['deconv3']; out = relu(_conv2d_ref(code_b, w, b, 1, 0))
    return feats, code_b, out


if __name__ == "__main__":
    key = jax.random.PRNGKey(0)
    kp, kx = jax.random.split(key)

    B, in_channels, H, W = 2, 4, 16, 16
    out_channels, n_feats, n_resblocks = 4, 16, 2

    params = init_drnet_params(kp, in_channels, out_channels, n_feats, n_resblocks)
    x = jax.random.normal(kx, (B, in_channels, H, W), jnp.float32)

    feats, code_b, out = drnet_forward(params, x)
    jax.block_until_ready((feats, code_b, out))

    assert feats.shape == (B, n_feats, H // 2, W // 2)
    assert code_b.shape == (B, n_feats, H, W)
    assert out.shape == (B, out_channels, H, W)
    assert bool(jnp.all(jnp.isfinite(feats)))
    assert bool(jnp.all(jnp.isfinite(code_b)))
    assert bool(jnp.all(jnp.isfinite(out)))

    # numerical check vs the pure-JAX reference (kernel uses bf16 MXU operands
    # with f32 accumulation -> allow a few % of the output dynamic range)
    feats_r, code_r, out_r = drnet_reference(params, x)
    for name, got, ref in (("feats", feats, feats_r),
                           ("code_B", code_b, code_r),
                           ("out", out, out_r)):
        err = float(jnp.max(jnp.abs(got - ref)))
        scale = float(jnp.max(jnp.abs(ref))) + 1e-6
        assert err <= 5e-2 * scale, (name, err, scale)

    print("KERNEL_OK")
</pallas_src>

<mosaic_0001>
module attributes {stable_mosaic.version = 11 : i64} {
  func.func @_drnet_kernel(%arg0: i32, %arg1: memref<1x8x326xf32, #tpu.memory_space<vmem>>, %arg2: memref<16x72xbf16, #tpu.memory_space<vmem>>, %arg3: memref<16x1xf32, #tpu.memory_space<vmem>>, %arg4: memref<7x16x144xbf16, #tpu.memory_space<vmem>>, %arg5: memref<7x16x1xf32, #tpu.memory_space<vmem>>, %arg6: memref<4x16x64xbf16, #tpu.memory_space<vmem>>, %arg7: memref<16x1xf32, #tpu.memory_space<vmem>>, %arg8: memref<4x16xbf16, #tpu.memory_space<vmem>>, %arg9: memref<4x1xf32, #tpu.memory_space<vmem>>, %arg10: memref<288x102xf32, #tpu.memory_space<vmem>>, %arg11: memref<1x288xf32, #tpu.memory_space<vmem>>, %arg12: memref<1x80xf32, #tpu.memory_space<vmem>>, %arg13: memref<1x16x102xf32, #tpu.memory_space<vmem>>, %arg14: memref<1x16x320xf32, #tpu.memory_space<vmem>>, %arg15: memref<1x4x320xf32, #tpu.memory_space<vmem>>) attributes {dimension_semantics = [#tpu.dimension_semantics<parallel>], iteration_bounds = array<i64: 2>, scalar_prefetch = 0 : i64, scratch_operands = 0 : i64, tpu.core_type = #tpu.core_type<tc>, window_params = [{transform_indices = @transform_0, window_bounds = array<i64: 1, 8, 326>}, {pipeline_mode = #tpu.pipeline_mode<synchronous>, transform_indices = @transform_1, window_bounds = array<i64: 16, 72>}, {pipeline_mode = #tpu.pipeline_mode<synchronous>, transform_indices = @transform_2, window_bounds = array<i64: 16, 1>}, {pipeline_mode = #tpu.pipeline_mode<synchronous>, transform_indices = @transform_3, window_bounds = array<i64: 7, 16, 144>}, {pipeline_mode = #tpu.pipeline_mode<synchronous>, transform_indices = @transform_4, window_bounds = array<i64: 7, 16, 1>}, {pipeline_mode = #tpu.pipeline_mode<synchronous>, transform_indices = @transform_5, window_bounds = array<i64: 4, 16, 64>}, {pipeline_mode = #tpu.pipeline_mode<synchronous>, transform_indices = @transform_6, window_bounds = array<i64: 16, 1>}, {pipeline_mode = #tpu.pipeline_mode<synchronous>, transform_indices = @transform_7, window_bounds = array<i64: 4, 16>}, {pipeline_mode = #tpu.pipeline_mode<synchronous>, transform_indices = @transform_8, window_bounds = array<i64: 4, 1>}, {pipeline_mode = #tpu.pipeline_mode<synchronous>, transform_indices = @transform_9, window_bounds = array<i64: 288, 102>}, {pipeline_mode = #tpu.pipeline_mode<synchronous>, transform_indices = @transform_10, window_bounds = array<i64: 1, 288>}, {pipeline_mode = #tpu.pipeline_mode<synchronous>, transform_indices = @transform_11, window_bounds = array<i64: 1, 80>}, {transform_indices = @transform_12, window_bounds = array<i64: 1, 16, 102>}, {transform_indices = @transform_13, window_bounds = array<i64: 1, 16, 320>}, {transform_indices = @transform_14, window_bounds = array<i64: 1, 4, 320>}]} {
    %c0 = arith.constant 0 : index
    %c0_0 = arith.constant 0 : index
    %0 = vector.load %arg11[%c0, %c0_0] : memref<1x288xf32, #tpu.memory_space<vmem>>, vector<1x288xf32>
    %c0_1 = arith.constant 0 : index
    %c0_2 = arith.constant 0 : index
    %1 = vector.load %arg12[%c0_1, %c0_2] : memref<1x80xf32, #tpu.memory_space<vmem>>, vector<1x80xf32>
    %c0_3 = arith.constant 0 : index
    %c0_4 = arith.constant 0 : index
    %c0_5 = arith.constant 0 : index
    %2 = vector.load %arg1[%c0_3, %c0_4, %c0_5] : memref<1x8x326xf32, #tpu.memory_space<vmem>>, vector<1x8x326xf32>
    %3 = vector.shape_cast %2 : vector<1x8x326xf32> to vector<8x326xf32>
    %c0_6 = arith.constant 0 : index
    %c0_7 = arith.constant 0 : index
    %4 = vector.load %arg2[%c0_6, %c0_7] : memref<16x72xbf16, #tpu.memory_space<vmem>>, vector<16x72xbf16>
    %c0_8 = arith.constant 0 : index
    %c0_9 = arith.constant 0 : index
    %5 = vector.load %arg3[%c0_8, %c0_9] : memref<16x1xf32, #tpu.memory_space<vmem>>, vector<16x1xf32>
    %6 = arith.truncf %3 : vector<8x326xf32> to vector<8x326xbf16>
    %7 = vector.extract_strided_slice %6 {offsets = [0, 0], sizes = [8, 288], strides = [1, 1]} : vector<8x326xbf16> to vector<8x288xbf16>
    %8 = vector.extract_strided_slice %6 {offsets = [0, 1], sizes = [8, 288], strides = [1, 1]} : vector<8x326xbf16> to vector<8x288xbf16>
    %9 = vector.extract_strided_slice %6 {offsets = [0, 2], sizes = [8, 288], strides = [1, 1]} : vector<8x326xbf16> to vector<8x288xbf16>
    %10 = vector.extract_strided_slice %6 {offsets = [0, 18], sizes = [8, 288], strides = [1, 1]} : vector<8x326xbf16> to vector<8x288xbf16>
    %11 = vector.extract_strided_slice %6 {offsets = [0, 19], sizes = [8, 288], strides = [1, 1]} : vector<8x326xbf16> to vector<8x288xbf16>
    %12 = vector.extract_strided_slice %6 {offsets = [0, 20], sizes = [8, 288], strides = [1, 1]} : vector<8x326xbf16> to vector<8x288xbf16>
    %13 = vector.extract_strided_slice %6 {offsets = [0, 36], sizes = [8, 288], strides = [1, 1]} : vector<8x326xbf16> to vector<8x288xbf16>
    %14 = vector.extract_strided_slice %6 {offsets = [0, 37], sizes = [8, 288], strides = [1, 1]} : vector<8x326xbf16> to vector<8x288xbf16>
    %15 = vector.extract_strided_slice %6 {offsets = [0, 38], sizes = [8, 288], strides = [1, 1]} : vector<8x326xbf16> to vector<8x288xbf16>
    %16 = tpu.concatenate %7, %8, %9, %10, %11, %12, %13, %14, %15 in 0 : vector<8x288xbf16>, vector<8x288xbf16>, vector<8x288xbf16>, vector<8x288xbf16>, vector<8x288xbf16>, vector<8x288xbf16>, vector<8x288xbf16>, vector<8x288xbf16>, vector<8x288xbf16> -> vector<72x288xbf16>
    %cst = arith.constant dense<0.000000e+00> : vector<16x288xf32>
    %17 = tpu.matmul %4, %16, %cst {dimension_numbers = #tpu.dot_dimension_numbers<[1], [0], [0], [1], [0, 0, 1, 1], [], []>} : vector<16x72xbf16>, vector<72x288xbf16>, vector<16x288xf32> -> vector<16x288xf32>
    %18 = vector.broadcast %5 : vector<16x1xf32> to vector<16x288xf32>
    %19 = arith.addf %17, %18 : vector<16x288xf32>
    %cst_10 = arith.constant 0.000000e+00 : f32
    %20 = vector.broadcast %cst_10 : f32 to vector<16x288xf32>
    %21 = arith.maximumf %19, %20 : vector<16x288xf32>
    %cst_11 = arith.constant 0.000000e+00 : bf16
    %22 = vector.broadcast %cst_11 : bf16 to vector<16x19xbf16>
    %23 = vector.broadcast %0 : vector<1x288xf32> to vector<16x288xf32>
    %24 = arith.mulf %21, %23 : vector<16x288xf32>
    %25 = arith.truncf %24 : vector<16x288xf32> to vector<16x288xbf16>
    %26 = tpu.concatenate %22, %25, %22 in 1 : vector<16x19xbf16>, vector<16x288xbf16>, vector<16x19xbf16> -> vector<16x326xbf16>
    %c0_12 = arith.constant 0 : index
    %c0_13 = arith.constant 0 : index
    %c0_14 = arith.constant 0 : index
    %27 = vector.load %arg4[%c0_12, %c0_13, %c0_14] : memref<7x16x144xbf16, #tpu.memory_space<vmem>>, vector<1x16x144xbf16>
    %28 = vector.shape_cast %27 : vector<1x16x144xbf16> to vector<16x144xbf16>
    %c0_15 = arith.constant 0 : index
    %c0_16 = arith.constant 0 : index
    %c0_17 = arith.constant 0 : index
    %29 = vector.load %arg5[%c0_15, %c0_16, %c0_17] : memref<7x16x1xf32, #tpu.memory_space<vmem>>, vector<1x16x1xf32>
    %30 = vector.shape_cast %29 : vector<1x16x1xf32> to vector<16x1xf32>
    %31 = vector.extract_strided_slice %26 {offsets = [0, 0], sizes = [16, 288], strides = [1, 1]} : vector<16x326xbf16> to vector<16x288xbf16>
    %32 = vector.extract_strided_slice %26 {offsets = [0, 1], sizes = [16, 288], strides = [1, 1]} : vector<16x326xbf16> to vector<16x288xbf16>
    %33 = vector.extract_strided_slice %26 {offsets = [0, 2], sizes = [16, 288], strides = [1, 1]} : vector<16x326xbf16> to vector<16x288xbf16>
    %34 = vector.extract_strided_slice %26 {offsets = [0, 18], sizes = [16, 288], strides = [1, 1]} : vector<16x326xbf16> to vector<16x288xbf16>
    %35 = vector.extract_strided_slice %26 {offsets = [0, 19], sizes = [16, 288], strides = [1, 1]} : vector<16x326xbf16> to vector<16x288xbf16>
    %36 = vector.extract_strided_slice %26 {offsets = [0, 20], sizes = [16, 288], strides = [1, 1]} : vector<16x326xbf16> to vector<16x288xbf16>
    %37 = vector.extract_strided_slice %26 {offsets = [0, 36], sizes = [16, 288], strides = [1, 1]} : vector<16x326xbf16> to vector<16x288xbf16>
    %38 = vector.extract_strided_slice %26 {offsets = [0, 37], sizes = [16, 288], strides = [1, 1]} : vector<16x326xbf16> to vector<16x288xbf16>
    %39 = vector.extract_strided_slice %26 {offsets = [0, 38], sizes = [16, 288], strides = [1, 1]} : vector<16x326xbf16> to vector<16x288xbf16>
    %40 = tpu.concatenate %31, %32, %33, %34, %35, %36, %37, %38, %39 in 0 : vector<16x288xbf16>, vector<16x288xbf16>, vector<16x288xbf16>, vector<16x288xbf16>, vector<16x288xbf16>, vector<16x288xbf16>, vector<16x288xbf16>, vector<16x288xbf16>, vector<16x288xbf16> -> vector<144x288xbf16>
    %cst_18 = arith.constant dense<0.000000e+00> : vector<16x288xf32>
    %41 = tpu.matmul %28, %40, %cst_18 {dimension_numbers = #tpu.dot_dimension_numbers<[1], [0], [0], [1], [0, 0, 1, 1], [], []>} : vector<16x144xbf16>, vector<144x288xbf16>, vector<16x288xf32> -> vector<16x288xf32>
    %42 = vector.broadcast %30 : vector<16x1xf32> to vector<16x288xf32>
    %43 = arith.addf %41, %42 : vector<16x288xf32>
    %cst_19 = arith.constant 0.000000e+00 : f32
    %44 = vector.broadcast %cst_19 : f32 to vector<16x288xf32>
    %45 = arith.maximumf %43, %44 : vector<16x288xf32>
    %cst_20 = arith.constant 0.000000e+00 : bf16
    %46 = vector.broadcast %cst_20 : bf16 to vector<16x19xbf16>
    %47 = vector.broadcast %0 : vector<1x288xf32> to vector<16x288xf32>
    %48 = arith.mulf %45, %47 : vector<16x288xf32>
    %49 = arith.truncf %48 : vector<16x288xf32> to vector<16x288xbf16>
    %50 = tpu.concatenate %46, %49, %46 in 1 : vector<16x19xbf16>, vector<16x288xbf16>, vector<16x19xbf16> -> vector<16x326xbf16>
    %c1 = arith.constant 1 : index
    %c0_21 = arith.constant 0 : index
    %c0_22 = arith.constant 0 : index
    %51 = vector.load %arg4[%c1, %c0_21, %c0_22] : memref<7x16x144xbf16, #tpu.memory_space<vmem>>, vector<1x16x144xbf16>
    %52 = vector.shape_cast %51 : vector<1x16x144xbf16> to vector<16x144xbf16>
    %c1_23 = arith.constant 1 : index
    %c0_24 = arith.constant 0 : index
    %c0_25 = arith.constant 0 : index
    %53 = vector.load %arg5[%c1_23, %c0_24, %c0_25] : memref<7x16x1xf32, #tpu.memory_space<vmem>>, vector<1x16x1xf32>
    %54 = vector.shape_cast %53 : vector<1x16x1xf32> to vector<16x1xf32>
    %55 = vector.extract_strided_slice %50 {offsets = [0, 0], sizes = [16, 288], strides = [1, 1]} : vector<16x326xbf16> to vector<16x288xbf16>
    %56 = vector.extract_strided_slice %50 {offsets = [0, 1], sizes = [16, 288], strides = [1, 1]} : vector<16x326xbf16> to vector<16x288xbf16>
    %57 = vector.extract_strided_slice %50 {offsets = [0, 2], sizes = [16, 288], strides = [1, 1]} : vector<16x326xbf16> to vector<16x288xbf16>
    %58 = vector.extract_strided_slice %50 {offsets = [0, 18], sizes = [16, 288], strides = [1, 1]} : vector<16x326xbf16> to vector<16x288xbf16>
    %59 = vector.extract_strided_slice %50 {offsets = [0, 19], sizes = [16, 288], strides = [1, 1]} : vector<16x326xbf16> to vector<16x288xbf16>
    %60 = vector.extract_strided_slice %50 {offsets = [0, 20], sizes = [16, 288], strides = [1, 1]} : vector<16x326xbf16> to vector<16x288xbf16>
    %61 = vector.extract_strided_slice %50 {offsets = [0, 36], sizes = [16, 288], strides = [1, 1]} : vector<16x326xbf16> to vector<16x288xbf16>
    %62 = vector.extract_strided_slice %50 {offsets = [0, 37], sizes = [16, 288], strides = [1, 1]} : vector<16x326xbf16> to vector<16x288xbf16>
    %63 = vector.extract_strided_slice %50 {offsets = [0, 38], sizes = [16, 288], strides = [1, 1]} : vector<16x326xbf16> to vector<16x288xbf16>
    %64 = tpu.concatenate %55, %56, %57, %58, %59, %60, %61, %62, %63 in 0 : vector<16x288xbf16>, vector<16x288xbf16>, vector<16x288xbf16>, vector<16x288xbf16>, vector<16x288xbf16>, vector<16x288xbf16>, vector<16x288xbf16>, vector<16x288xbf16>, vector<16x288xbf16> -> vector<144x288xbf16>
    %cst_26 = arith.constant dense<0.000000e+00> : vector<16x288xf32>
    %65 = tpu.matmul %52, %64, %cst_26 {dimension_numbers = #tpu.dot_dimension_numbers<[1], [0], [0], [1], [0, 0, 1, 1], [], []>} : vector<16x144xbf16>, vector<144x288xbf16>, vector<16x288xf32> -> vector<16x288xf32>
    %66 = vector.broadcast %54 : vector<16x1xf32> to vector<16x288xf32>
    %67 = arith.addf %65, %66 : vector<16x288xf32>
    %cst_27 = arith.constant 0.000000e+00 : f32
    %68 = vector.broadcast %cst_27 : f32 to vector<16x288xf32>
    %69 = arith.maximumf %67, %68 : vector<16x288xf32>
    %c0_28 = arith.constant 0 : index
    %c0_29 = arith.constant 0 : index
    %70 = vector.load %arg10[%c0_28, %c0_29] : memref<288x102xf32, #tpu.memory_space<vmem>>, vector<288x102xf32>
    %cst_30 = arith.constant dense<0.000000e+00> : vector<16x102xf32>
    %71 = tpu.matmul %69, %70, %cst_30 {dimension_numbers = #tpu.dot_dimension_numbers<[1], [0], [0], [1], [0, 0, 1, 1], [], []>} : vector<16x288xf32>, vector<288x102xf32>, vector<16x102xf32> -> vector<16x102xf32>
    %c2 = arith.constant 2 : index
    %c0_31 = arith.constant 0 : index
    %c0_32 = arith.constant 0 : index
    %72 = vector.load %arg4[%c2, %c0_31, %c0_32] : memref<7x16x144xbf16, #tpu.memory_space<vmem>>, vector<1x16x144xbf16>
    %73 = vector.shape_cast %72 : vector<1x16x144xbf16> to vector<16x144xbf16>
    %c2_33 = arith.constant 2 : index
    %c0_34 = arith.constant 0 : index
    %c0_35 = arith.constant 0 : index
    %74 = vector.load %arg5[%c2_33, %c0_34, %c0_35] : memref<7x16x1xf32, #tpu.memory_space<vmem>>, vector<1x16x1xf32>
    %75 = vector.shape_cast %74 : vector<1x16x1xf32> to vector<16x1xf32>
    %76 = arith.truncf %71 : vector<16x102xf32> to vector<16x102xbf16>
    %77 = vector.extract_strided_slice %76 {offsets = [0, 0], sizes = [16, 80], strides = [1, 1]} : vector<16x102xbf16> to vector<16x80xbf16>
    %78 = vector.extract_strided_slice %76 {offsets = [0, 1], sizes = [16, 80], strides = [1, 1]} : vector<16x102xbf16> to vector<16x80xbf16>
    %79 = vector.extract_strided_slice %76 {offsets = [0, 2], sizes = [16, 80], strides = [1, 1]} : vector<16x102xbf16> to vector<16x80xbf16>
    %80 = vector.extract_strided_slice %76 {offsets = [0, 10], sizes = [16, 80], strides = [1, 1]} : vector<16x102xbf16> to vector<16x80xbf16>
    %81 = vector.extract_strided_slice %76 {offsets = [0, 11], sizes = [16, 80], strides = [1, 1]} : vector<16x102xbf16> to vector<16x80xbf16>
    %82 = vector.extract_strided_slice %76 {offsets = [0, 12], sizes = [16, 80], strides = [1, 1]} : vector<16x102xbf16> to vector<16x80xbf16>
    %83 = vector.extract_strided_slice %76 {offsets = [0, 20], sizes = [16, 80], strides = [1, 1]} : vector<16x102xbf16> to vector<16x80xbf16>
    %84 = vector.extract_strided_slice %76 {offsets = [0, 21], sizes = [16, 80], strides = [1, 1]} : vector<16x102xbf16> to vector<16x80xbf16>
    %85 = vector.extract_strided_slice %76 {offsets = [0, 22], sizes = [16, 80], strides = [1, 1]} : vector<16x102xbf16> to vector<16x80xbf16>
    %86 = tpu.concatenate %77, %78, %79, %80, %81, %82, %83, %84, %85 in 0 : vector<16x80xbf16>, vector<16x80xbf16>, vector<16x80xbf16>, vector<16x80xbf16>, vector<16x80xbf16>, vector<16x80xbf16>, vector<16x80xbf16>, vector<16x80xbf16>, vector<16x80xbf16> -> vector<144x80xbf16>
    %cst_36 = arith.constant dense<0.000000e+00> : vector<16x80xf32>
    %87 = tpu.matmul %73, %86, %cst_36 {dimension_numbers = #tpu.dot_dimension_numbers<[1], [0], [0], [1], [0, 0, 1, 1], [], []>} : vector<16x144xbf16>, vector<144x80xbf16>, vector<16x80xf32> -> vector<16x80xf32>
    %88 = vector.broadcast %75 : vector<16x1xf32> to vector<16x80xf32>
    %89 = arith.addf %87, %88 : vector<16x80xf32>
    %cst_37 = arith.constant 0.000000e+00 : f32
    %90 = vector.broadcast %cst_37 : f32 to vector<16x80xf32>
    %91 = arith.maximumf %89, %90 : vector<16x80xf32>
    %cst_38 = arith.constant 0.000000e+00 : bf16
    %92 = vector.broadcast %cst_38 : bf16 to vector<16x11xbf16>
    %93 = vector.broadcast %1 : vector<1x80xf32> to vector<16x80xf32>
    %94 = arith.mulf %91, %93 : vector<16x80xf32>
    %95 = arith.truncf %94 : vector<16x80xf32> to vector<16x80xbf16>
    %96 = tpu.concatenate %92, %95, %92 in 1 : vector<16x11xbf16>, vector<16x80xbf16>, vector<16x11xbf16> -> vector<16x102xbf16>
    %c3 = arith.constant 3 : index
    %c0_39 = arith.constant 0 : index
    %c0_40 = arith.constant 0 : index
    %97 = vector.load %arg4[%c3, %c0_39, %c0_40] : memref<7x16x144xbf16, #tpu.memory_space<vmem>>, vector<1x16x144xbf16>
    %98 = vector.shape_cast %97 : vector<1x16x144xbf16> to vector<16x144xbf16>
    %c3_41 = arith.constant 3 : index
    %c0_42 = arith.constant 0 : index
    %c0_43 = arith.constant 0 : index
    %99 = vector.load %arg5[%c3_41, %c0_42, %c0_43] : memref<7x16x1xf32, #tpu.memory_space<vmem>>, vector<1x16x1xf32>
    %100 = vector.shape_cast %99 : vector<1x16x1xf32> to vector<16x1xf32>
    %101 = vector.extract_strided_slice %96 {offsets = [0, 0], sizes = [16, 80], strides = [1, 1]} : vector<16x102xbf16> to vector<16x80xbf16>
    %102 = vector.extract_strided_slice %96 {offsets = [0, 1], sizes = [16, 80], strides = [1, 1]} : vector<16x102xbf16> to vector<16x80xbf16>
    %103 = vector.extract_strided_slice %96 {offsets = [0, 2], sizes = [16, 80], strides = [1, 1]} : vector<16x102xbf16> to vector<16x80xbf16>
    %104 = vector.extract_strided_slice %96 {offsets = [0, 10], sizes = [16, 80], strides = [1, 1]} : vector<16x102xbf16> to vector<16x80xbf16>
    %105 = vector.extract_strided_slice %96 {offsets = [0, 11], sizes = [16, 80], strides = [1, 1]} : vector<16x102xbf16> to vector<16x80xbf16>
    %106 = vector.extract_strided_slice %96 {offsets = [0, 12], sizes = [16, 80], strides = [1, 1]} : vector<16x102xbf16> to vector<16x80xbf16>
    %107 = vector.extract_strided_slice %96 {offsets = [0, 20], sizes = [16, 80], strides = [1, 1]} : vector<16x102xbf16> to vector<16x80xbf16>
    %108 = vector.extract_strided_slice %96 {offsets = [0, 21], sizes = [16, 80], strides = [1, 1]} : vector<16x102xbf16> to vector<16x80xbf16>
    %109 = vector.extract_strided_slice %96 {offsets = [0, 22], sizes = [16, 80], strides = [1, 1]} : vector<16x102xbf16> to vector<16x80xbf16>
    %110 = tpu.concatenate %101, %102, %103, %104, %105, %106, %107, %108, %109 in 0 : vector<16x80xbf16>, vector<16x80xbf16>, vector<16x80xbf16>, vector<16x80xbf16>, vector<16x80xbf16>, vector<16x80xbf16>, vector<16x80xbf16>, vector<16x80xbf16>, vector<16x80xbf16> -> vector<144x80xbf16>
    %cst_44 = arith.constant dense<0.000000e+00> : vector<16x80xf32>
    %111 = tpu.matmul %98, %110, %cst_44 {dimension_numbers = #tpu.dot_dimension_numbers<[1], [0], [0], [1], [0, 0, 1, 1], [], []>} : vector<16x144xbf16>, vector<144x80xbf16>, vector<16x80xf32> -> vector<16x80xf32>
    %112 = vector.broadcast %100 : vector<16x1xf32> to vector<16x80xf32>
    %113 = arith.addf %111, %112 : vector<16x80xf32>
    %cst_45 = arith.constant 0.000000e+00 : f32
    %114 = vector.broadcast %cst_45 : f32 to vector<16x11xf32>
    %115 = vector.broadcast %1 : vector<1x80xf32> to vector<16x80xf32>
    %116 = arith.mulf %113, %115 : vector<16x80xf32>
    %117 = tpu.concatenate %114, %116, %114 in 1 : vector<16x11xf32>, vector<16x80xf32>, vector<16x11xf32> -> vector<16x102xf32>
    %118 = arith.addf %71, %117 : vector<16x102xf32>
    %c4 = arith.constant 4 : index
    %c0_46 = arith.constant 0 : index
    %c0_47 = arith.constant 0 : index
    %119 = vector.load %arg4[%c4, %c0_46, %c0_47] : memref<7x16x144xbf16, #tpu.memory_space<vmem>>, vector<1x16x144xbf16>
    %120 = vector.shape_cast %119 : vector<1x16x144xbf16> to vector<16x144xbf16>
    %c4_48 = arith.constant 4 : index
    %c0_49 = arith.constant 0 : index
    %c0_50 = arith.constant 0 : index
    %121 = vector.load %arg5[%c4_48, %c0_49, %c0_50] : memref<7x16x1xf32, #tpu.memory_space<vmem>>, vector<1x16x1xf32>
    %122 = vector.shape_cast %121 : vector<1x16x1xf32> to vector<16x1xf32>
    %123 = arith.truncf %118 : vector<16x102xf32> to vector<16x102xbf16>
    %124 = vector.extract_strided_slice %123 {offsets = [0, 0], sizes = [16, 80], strides = [1, 1]} : vector<16x102xbf16> to vector<16x80xbf16>
    %125 = vector.extract_strided_slice %123 {offsets = [0, 1], sizes = [16, 80], strides = [1, 1]} : vector<16x102xbf16> to vector<16x80xbf16>
    %126 = vector.extract_strided_slice %123 {offsets = [0, 2], sizes = [16, 80], strides = [1, 1]} : vector<16x102xbf16> to vector<16x80xbf16>
    %127 = vector.extract_strided_slice %123 {offsets = [0, 10], sizes = [16, 80], strides = [1, 1]} : vector<16x102xbf16> to vector<16x80xbf16>
    %128 = vector.extract_strided_slice %123 {offsets = [0, 11], sizes = [16, 80], strides = [1, 1]} : vector<16x102xbf16> to vector<16x80xbf16>
    %129 = vector.extract_strided_slice %123 {offsets = [0, 12], sizes = [16, 80], strides = [1, 1]} : vector<16x102xbf16> to vector<16x80xbf16>
    %130 = vector.extract_strided_slice %123 {offsets = [0, 20], sizes = [16, 80], strides = [1, 1]} : vector<16x102xbf16> to vector<16x80xbf16>
    %131 = vector.extract_strided_slice %123 {offsets = [0, 21], sizes = [16, 80], strides = [1, 1]} : vector<16x102xbf16> to vector<16x80xbf16>
    %132 = vector.extract_strided_slice %123 {offsets = [0, 22], sizes = [16, 80], strides = [1, 1]} : vector<16x102xbf16> to vector<16x80xbf16>
    %133 = tpu.concatenate %124, %125, %126, %127, %128, %129, %130, %131, %132 in 0 : vector<16x80xbf16>, vector<16x80xbf16>, vector<16x80xbf16>, vector<16x80xbf16>, vector<16x80xbf16>, vector<16x80xbf16>, vector<16x80xbf16>, vector<16x80xbf16>, vector<16x80xbf16> -> vector<144x80xbf16>
    %cst_51 = arith.constant dense<0.000000e+00> : vector<16x80xf32>
    %134 = tpu.matmul %120, %133, %cst_51 {dimension_numbers = #tpu.dot_dimension_numbers<[1], [0], [0], [1], [0, 0, 1, 1], [], []>} : vector<16x144xbf16>, vector<144x80xbf16>, vector<16x80xf32> -> vector<16x80xf32>
    %135 = vector.broadcast %122 : vector<16x1xf32> to vector<16x80xf32>
    %136 = arith.addf %134, %135 : vector<16x80xf32>
    %cst_52 = arith.constant 0.000000e+00 : f32
    %137 = vector.broadcast %cst_52 : f32 to vector<16x80xf32>
    %138 = arith.maximumf %136, %137 : vector<16x80xf32>
    %cst_53 = arith.constant 0.000000e+00 : bf16
    %139 = vector.broadcast %cst_53 : bf16 to vector<16x11xbf16>
    %140 = vector.broadcast %1 : vector<1x80xf32> to vector<16x80xf32>
    %141 = arith.mulf %138, %140 : vector<16x80xf32>
    %142 = arith.truncf %141 : vector<16x80xf32> to vector<16x80xbf16>
    %143 = tpu.concatenate %139, %142, %139 in 1 : vector<16x11xbf16>, vector<16x80xbf16>, vector<16x11xbf16> -> vector<16x102xbf16>
    %c5 = arith.constant 5 : index
    %c0_54 = arith.constant 0 : index
    %c0_55 = arith.constant 0 : index
    %144 = vector.load %arg4[%c5, %c0_54, %c0_55] : memref<7x16x144xbf16, #tpu.memory_space<vmem>>, vector<1x16x144xbf16>
    %145 = vector.shape_cast %144 : vector<1x16x144xbf16> to vector<16x144xbf16>
    %c5_56 = arith.constant 5 : index
    %c0_57 = arith.constant 0 : index
    %c0_58 = arith.constant 0 : index
    %146 = vector.load %arg5[%c5_56, %c0_57, %c0_58] : memref<7x16x1xf32, #tpu.memory_space<vmem>>, vector<1x16x1xf32>
    %147 = vector.shape_cast %146 : vector<1x16x1xf32> to vector<16x1xf32>
    %148 = vector.extract_strided_slice %143 {offsets = [0, 0], sizes = [16, 80], strides = [1, 1]} : vector<16x102xbf16> to vector<16x80xbf16>
    %149 = vector.extract_strided_slice %143 {offsets = [0, 1], sizes = [16, 80], strides = [1, 1]} : vector<16x102xbf16> to vector<16x80xbf16>
    %150 = vector.extract_strided_slice %143 {offsets = [0, 2], sizes = [16, 80], strides = [1, 1]} : vector<16x102xbf16> to vector<16x80xbf16>
    %151 = vector.extract_strided_slice %143 {offsets = [0, 10], sizes = [16, 80], strides = [1, 1]} : vector<16x102xbf16> to vector<16x80xbf16>
    %152 = vector.extract_strided_slice %143 {offsets = [0, 11], sizes = [16, 80], strides = [1, 1]} : vector<16x102xbf16> to vector<16x80xbf16>
    %153 = vector.extract_strided_slice %143 {offsets = [0, 12], sizes = [16, 80], strides = [1, 1]} : vector<16x102xbf16> to vector<16x80xbf16>
    %154 = vector.extract_strided_slice %143 {offsets = [0, 20], sizes = [16, 80], strides = [1, 1]} : vector<16x102xbf16> to vector<16x80xbf16>
    %155 = vector.extract_strided_slice %143 {offsets = [0, 21], sizes = [16, 80], strides = [1, 1]} : vector<16x102xbf16> to vector<16x80xbf16>
    %156 = vector.extract_strided_slice %143 {offsets = [0, 22], sizes = [16, 80], strides = [1, 1]} : vector<16x102xbf16> to vector<16x80xbf16>
    %157 = tpu.concatenate %148, %149, %150, %151, %152, %153, %154, %155, %156 in 0 : vector<16x80xbf16>, vector<16x80xbf16>, vector<16x80xbf16>, vector<16x80xbf16>, vector<16x80xbf16>, vector<16x80xbf16>, vector<16x80xbf16>, vector<16x80xbf16>, vector<16x80xbf16> -> vector<144x80xbf16>
    %cst_59 = arith.constant dense<0.000000e+00> : vector<16x80xf32>
    %158 = tpu.matmul %145, %157, %cst_59 {dimension_numbers = #tpu.dot_dimension_numbers<[1], [0], [0], [1], [0, 0, 1, 1], [], []>} : vector<16x144xbf16>, vector<144x80xbf16>, vector<16x80xf32> -> vector<16x80xf32>
    %159 = vector.broadcast %147 : vector<16x1xf32> to vector<16x80xf32>
    %160 = arith.addf %158, %159 : vector<16x80xf32>
    %cst_60 = arith.constant 0.000000e+00 : f32
    %161 = vector.broadcast %cst_60 : f32 to vector<16x11xf32>
    %162 = vector.broadcast %1 : vector<1x80xf32> to vector<16x80xf32>
    %163 = arith.mulf %160, %162 : vector<16x80xf32>
    %164 = tpu.concatenate %161, %163, %161 in 1 : vector<16x11xf32>, vector<16x80xf32>, vector<16x11xf32> -> vector<16x102xf32>
    %165 = arith.addf %118, %164 : vector<16x102xf32>
    %c0_61 = arith.constant 0 : index
    %c0_62 = arith.constant 0 : index
    %c0_63 = arith.constant 0 : index
    %166 = vector.load %arg13[%c0_61, %c0_62, %c0_63] : memref<1x16x102xf32, #tpu.memory_space<vmem>>, vector<1x16x102xf32>
    %167 = vector.shape_cast %166 : vector<1x16x102xf32> to vector<16x102xf32>
    %168 = vector.shape_cast %165 : vector<16x102xf32> to vector<1x16x102xf32>
    tpu.vector_store %arg13[%c0_61, %c0_62, %c0_63], %168 {strides = array<i32>} : memref<1x16x102xf32, #tpu.memory_space<vmem>>, vector<1x16x102xf32>,
    %169 = arith.truncf %165 : vector<16x102xf32> to vector<16x102xbf16>
    %c0_64 = arith.constant 0 : index
    %c0_65 = arith.constant 0 : index
    %170 = vector.load %arg7[%c0_64, %c0_65] : memref<16x1xf32, #tpu.memory_space<vmem>>, vector<16x1xf32>
    %171 = vector.shape_cast %170 : vector<16x1xf32> to vector<16x1xf32>
    %172 = vector.broadcast %171 : vector<16x1xf32> to vector<16x80xf32>
    %173 = vector.extract_strided_slice %169 {offsets = [0, 0], sizes = [16, 80], strides = [1, 1]} : vector<16x102xbf16> to vector<16x80xbf16>
    %174 = vector.extract_strided_slice %169 {offsets = [0, 1], sizes = [16, 80], strides = [1, 1]} : vector<16x102xbf16> to vector<16x80xbf16>
    %175 = vector.extract_strided_slice %169 {offsets = [0, 10], sizes = [16, 80], strides = [1, 1]} : vector<16x102xbf16> to vector<16x80xbf16>
    %176 = vector.extract_strided_slice %169 {offsets = [0, 11], sizes = [16, 80], strides = [1, 1]} : vector<16x102xbf16> to vector<16x80xbf16>
    %177 = tpu.concatenate %173, %174, %175, %176 in 0 : vector<16x80xbf16>, vector<16x80xbf16>, vector<16x80xbf16>, vector<16x80xbf16> -> vector<64x80xbf16>
    %c0_66 = arith.constant 0 : index
    %c0_67 = arith.constant 0 : index
    %c0_68 = arith.constant 0 : index
    %178 = vector.load %arg6[%c0_66, %c0_67, %c0_68] : memref<4x16x64xbf16, #tpu.memory_space<vmem>>, vector<1x16x64xbf16>
    %179 = vector.shape_cast %178 : vector<1x16x64xbf16> to vector<16x64xbf16>
    %cst_69 = arith.constant dense<0.000000e+00> : vector<16x80xf32>
    %180 = tpu.matmul %179, %177, %cst_69 {dimension_numbers = #tpu.dot_dimension_numbers<[1], [0], [0], [1], [0, 0, 1, 1], [], []>} : vector<16x64xbf16>, vector<64x80xbf16>, vector<16x80xf32> -> vector<16x80xf32>
    %181 = arith.addf %180, %172 : vector<16x80xf32>
    %cst_70 = arith.constant 0.000000e+00 : f32
    %182 = vector.broadcast %cst_70 : f32 to vector<16x80xf32>
    %183 = arith.maximumf %181, %182 : vector<16x80xf32>
    %cst_71 = arith.constant 0.000000e+00 : bf16
    %184 = vector.broadcast %cst_71 : bf16 to vector<16x11xbf16>
    %185 = vector.broadcast %1 : vector<1x80xf32> to vector<16x80xf32>
    %186 = arith.mulf %183, %185 : vector<16x80xf32>
    %187 = arith.truncf %186 : vector<16x80xf32> to vector<16x80xbf16>
    %188 = tpu.concatenate %184, %187, %184 in 1 : vector<16x11xbf16>, vector<16x80xbf16>, vector<16x11xbf16> -> vector<16x102xbf16>
    %189 = vector.extract_strided_slice %169 {offsets = [0, 1], sizes = [16, 80], strides = [1, 1]} : vector<16x102xbf16> to vector<16x80xbf16>
    %190 = vector.extract_strided_slice %169 {offsets = [0, 2], sizes = [16, 80], strides = [1, 1]} : vector<16x102xbf16> to vector<16x80xbf16>
    %191 = vector.extract_strided_slice %169 {offsets = [0, 11], sizes = [16, 80], strides = [1, 1]} : vector<16x102xbf16> to vector<16x80xbf16>
    %192 = vector.extract_strided_slice %169 {offsets = [0, 12], sizes = [16, 80], strides = [1, 1]} : vector<16x102xbf16> to vector<16x80xbf16>
    %193 = tpu.concatenate %189, %190, %191, %192 in 0 : vector<16x80xbf16>, vector<16x80xbf16>, vector<16x80xbf16>, vector<16x80xbf16> -> vector<64x80xbf16>
    %c1_72 = arith.constant 1 : index
    %c0_73 = arith.constant 0 : index
    %c0_74 = arith.constant 0 : index
    %194 = vector.load %arg6[%c1_72, %c0_73, %c0_74] : memref<4x16x64xbf16, #tpu.memory_space<vmem>>, vector<1x16x64xbf16>
    %195 = vector.shape_cast %194 : vector<1x16x64xbf16> to vector<16x64xbf16>
    %cst_75 = arith.constant dense<0.000000e+00> : vector<16x80xf32>
    %196 = tpu.matmul %195, %193, %cst_75 {dimension_numbers = #tpu.dot_dimension_numbers<[1], [0], [0], [1], [0, 0, 1, 1], [], []>} : vector<16x64xbf16>, vector<64x80xbf16>, vector<16x80xf32> -> vector<16x80xf32>
    %197 = arith.addf %196, %172 : vector<16x80xf32>
    %cst_76 = arith.constant 0.000000e+00 : f32
    %198 = vector.broadcast %cst_76 : f32 to vector<16x80xf32>
    %199 = arith.maximumf %197, %198 : vector<16x80xf32>
    %cst_77 = arith.constant 0.000000e+00 : bf16
    %200 = vector.broadcast %cst_77 : bf16 to vector<16x11xbf16>
    %201 = vector.broadcast %1 : vector<1x80xf32> to vector<16x80xf32>
    %202 = arith.mulf %199, %201 : vector<16x80xf32>
    %203 = arith.truncf %202 : vector<16x80xf32> to vector<16x80xbf16>
    %204 = tpu.concatenate %200, %203, %200 in 1 : vector<16x11xbf16>, vector<16x80xbf16>, vector<16x11xbf16> -> vector<16x102xbf16>
    %205 = vector.extract_strided_slice %169 {offsets = [0, 10], sizes = [16, 80], strides = [1, 1]} : vector<16x102xbf16> to vector<16x80xbf16>
    %206 = vector.extract_strided_slice %169 {offsets = [0, 11], sizes = [16, 80], strides = [1, 1]} : vector<16x102xbf16> to vector<16x80xbf16>
    %207 = vector.extract_strided_slice %169 {offsets = [0, 20], sizes = [16, 80], strides = [1, 1]} : vector<16x102xbf16> to vector<16x80xbf16>
    %208 = vector.extract_strided_slice %169 {offsets = [0, 21], sizes = [16, 80], strides = [1, 1]} : vector<16x102xbf16> to vector<16x80xbf16>
    %209 = tpu.concatenate %205, %206, %207, %208 in 0 : vector<16x80xbf16>, vector<16x80xbf16>, vector<16x80xbf16>, vector<16x80xbf16> -> vector<64x80xbf16>
    %c2_78 = arith.constant 2 : index
    %c0_79 = arith.constant 0 : index
    %c0_80 = arith.constant 0 : index
    %210 = vector.load %arg6[%c2_78, %c0_79, %c0_80] : memref<4x16x64xbf16, #tpu.memory_space<vmem>>, vector<1x16x64xbf16>
    %211 = vector.shape_cast %210 : vector<1x16x64xbf16> to vector<16x64xbf16>
    %cst_81 = arith.constant dense<0.000000e+00> : vector<16x80xf32>
    %212 = tpu.matmul %211, %209, %cst_81 {dimension_numbers = #tpu.dot_dimension_numbers<[1], [0], [0], [1], [0, 0, 1, 1], [], []>} : vector<16x64xbf16>, vector<64x80xbf16>, vector<16x80xf32> -> vector<16x80xf32>
    %213 = arith.addf %212, %172 : vector<16x80xf32>
    %cst_82 = arith.constant 0.000000e+00 : f32
    %214 = vector.broadcast %cst_82 : f32 to vector<16x80xf32>
    %215 = arith.maximumf %213, %214 : vector<16x80xf32>
    %cst_83 = arith.constant 0.000000e+00 : bf16
    %216 = vector.broadcast %cst_83 : bf16 to vector<16x11xbf16>
    %217 = vector.broadcast %1 : vector<1x80xf32> to vector<16x80xf32>
    %218 = arith.mulf %215, %217 : vector<16x80xf32>
    %219 = arith.truncf %218 : vector<16x80xf32> to vector<16x80xbf16>
    %220 = tpu.concatenate %216, %219, %216 in 1 : vector<16x11xbf16>, vector<16x80xbf16>, vector<16x11xbf16> -> vector<16x102xbf16>
    %221 = vector.extract_strided_slice %169 {offsets = [0, 11], sizes = [16, 80], strides = [1, 1]} : vector<16x102xbf16> to vector<16x80xbf16>
    %222 = vector.extract_strided_slice %169 {offsets = [0, 12], sizes = [16, 80], strides = [1, 1]} : vector<16x102xbf16> to vector<16x80xbf16>
    %223 = vector.extract_strided_slice %169 {offsets = [0, 21], sizes = [16, 80], strides = [1, 1]} : vector<16x102xbf16> to vector<16x80xbf16>
    %224 = vector.extract_strided_slice %169 {offsets = [0, 22], sizes = [16, 80], strides = [1, 1]} : vector<16x102xbf16> to vector<16x80xbf16>
    %225 = tpu.concatenate %221, %222, %223, %224 in 0 : vector<16x80xbf16>, vector<16x80xbf16>, vector<16x80xbf16>, vector<16x80xbf16> -> vector<64x80xbf16>
    %c3_84 = arith.constant 3 : index
    %c0_85 = arith.constant 0 : index
    %c0_86 = arith.constant 0 : index
    %226 = vector.load %arg6[%c3_84, %c0_85, %c0_86] : memref<4x16x64xbf16, #tpu.memory_space<vmem>>, vector<1x16x64xbf16>
    %227 = vector.shape_cast %226 : vector<1x16x64xbf16> to vector<16x64xbf16>
    %cst_87 = arith.constant dense<0.000000e+00> : vector<16x80xf32>
    %228 = tpu.matmul %227, %225, %cst_87 {dimension_numbers = #tpu.dot_dimension_numbers<[1], [0], [0], [1], [0, 0, 1, 1], [], []>} : vector<16x64xbf16>, vector<64x80xbf16>, vector<16x80xf32> -> vector<16x80xf32>
    %229 = arith.addf %228, %172 : vector<16x80xf32>
    %cst_88 = arith.constant 0.000000e+00 : f32
    %230 = vector.broadcast %cst_88 : f32 to vector<16x80xf32>
    %231 = arith.maximumf %229, %230 : vector<16x80xf32>
    %cst_89 = arith.constant 0.000000e+00 : bf16
    %232 = vector.broadcast %cst_89 : bf16 to vector<16x11xbf16>
    %233 = vector.broadcast %1 : vector<1x80xf32> to vector<16x80xf32>
    %234 = arith.mulf %231, %233 : vector<16x80xf32>
    %235 = arith.truncf %234 : vector<16x80xf32> to vector<16x80xbf16>
    %236 = tpu.concatenate %232, %235, %232 in 1 : vector<16x11xbf16>, vector<16x80xbf16>, vector<16x11xbf16> -> vector<16x102xbf16>
    %237 = vector.extract_strided_slice %236 {offsets = [0, 0], sizes = [16, 80], strides = [1, 1]} : vector<16x102xbf16> to vector<16x80xbf16>
    %238 = vector.extract_strided_slice %220 {offsets = [0, 1], sizes = [16, 80], strides = [1, 1]} : vector<16x102xbf16> to vector<16x80xbf16>
    %239 = vector.extract_strided_slice %204 {offsets = [0, 10], sizes = [16, 80], strides = [1, 1]} : vector<16x102xbf16> to vector<16x80xbf16>
    %240 = vector.extract_strided_slice %188 {offsets = [0, 11], sizes = [16, 80], strides = [1, 1]} : vector<16x102xbf16> to vector<16x80xbf16>
    %241 = tpu.concatenate %237, %238, %239, %240 in 1 : vector<16x80xbf16>, vector<16x80xbf16>, vector<16x80xbf16>, vector<16x80xbf16> -> vector<16x320xbf16>
    %242 = vector.extract_strided_slice %220 {offsets = [0, 1], sizes = [16, 80], strides = [1, 1]} : vector<16x102xbf16> to vector<16x80xbf16>
    %243 = vector.extract_strided_slice %236 {offsets = [0, 1], sizes = [16, 80], strides = [1, 1]} : vector<16x102xbf16> to vector<16x80xbf16>
    %244 = vector.extract_strided_slice %188 {offsets = [0, 11], sizes = [16, 80], strides = [1, 1]} : vector<16x102xbf16> to vector<16x80xbf16>
    %245 = vector.extract_strided_slice %204 {offsets = [0, 11], sizes = [16, 80], strides = [1, 1]} : vector<16x102xbf16> to vector<16x80xbf16>
    %246 = tpu.concatenate %242, %243, %244, %245 in 1 : vector<16x80xbf16>, vector<16x80xbf16>, vector<16x80xbf16>, vector<16x80xbf16> -> vector<16x320xbf16>
    %247 = vector.extract_strided_slice %236 {offsets = [0, 1], sizes = [16, 80], strides = [1, 1]} : vector<16x102xbf16> to vector<16x80xbf16>
    %248 = vector.extract_strided_slice %220 {offsets = [0, 2], sizes = [16, 80], strides = [1, 1]} : vector<16x102xbf16> to vector<16x80xbf16>
    %249 = vector.extract_strided_slice %204 {offsets = [0, 11], sizes = [16, 80], strides = [1, 1]} : vector<16x102xbf16> to vector<16x80xbf16>
    %250 = vector.extract_strided_slice %188 {offsets = [0, 12], sizes = [16, 80], strides = [1, 1]} : vector<16x102xbf16> to vector<16x80xbf16>
    %251 = tpu.concatenate %247, %248, %249, %250 in 1 : vector<16x80xbf16>, vector<16x80xbf16>, vector<16x80xbf16>, vector<16x80xbf16> -> vector<16x320xbf16>
    %252 = vector.extract_strided_slice %204 {offsets = [0, 10], sizes = [16, 80], strides = [1, 1]} : vector<16x102xbf16> to vector<16x80xbf16>
    %253 = vector.extract_strided_slice %188 {offsets = [0, 11], sizes = [16, 80], strides = [1, 1]} : vector<16x102xbf16> to vector<16x80xbf16>
    %254 = vector.extract_strided_slice %236 {offsets = [0, 10], sizes = [16, 80], strides = [1, 1]} : vector<16x102xbf16> to vector<16x80xbf16>
    %255 = vector.extract_strided_slice %220 {offsets = [0, 11], sizes = [16, 80], strides = [1, 1]} : vector<16x102xbf16> to vector<16x80xbf16>
    %256 = tpu.concatenate %252, %253, %254, %255 in 1 : vector<16x80xbf16>, vector<16x80xbf16>, vector<16x80xbf16>, vector<16x80xbf16> -> vector<16x320xbf16>
    %257 = vector.extract_strided_slice %188 {offsets = [0, 11], sizes = [16, 80], strides = [1, 1]} : vector<16x102xbf16> to vector<16x80xbf16>
    %258 = vector.extract_strided_slice %204 {offsets = [0, 11], sizes = [16, 80], strides = [1, 1]} : vector<16x102xbf16> to vector<16x80xbf16>
    %259 = vector.extract_strided_slice %220 {offsets = [0, 11], sizes = [16, 80], strides = [1, 1]} : vector<16x102xbf16> to vector<16x80xbf16>
    %260 = vector.extract_strided_slice %236 {offsets = [0, 11], sizes = [16, 80], strides = [1, 1]} : vector<16x102xbf16> to vector<16x80xbf16>
    %261 = tpu.concatenate %257, %258, %259, %260 in 1 : vector<16x80xbf16>, vector<16x80xbf16>, vector<16x80xbf16>, vector<16x80xbf16> -> vector<16x320xbf16>
    %262 = vector.extract_strided_slice %204 {offsets = [0, 11], sizes = [16, 80], strides = [1, 1]} : vector<16x102xbf16> to vector<16x80xbf16>
    %263 = vector.extract_strided_slice %188 {offsets = [0, 12], sizes = [16, 80], strides = [1, 1]} : vector<16x102xbf16> to vector<16x80xbf16>
    %264 = vector.extract_strided_slice %236 {offsets = [0, 11], sizes = [16, 80], strides = [1, 1]} : vector<16x102xbf16> to vector<16x80xbf16>
    %265 = vector.extract_strided_slice %220 {offsets = [0, 12], sizes = [16, 80], strides = [1, 1]} : vector<16x102xbf16> to vector<16x80xbf16>
    %266 = tpu.concatenate %262, %263, %264, %265 in 1 : vector<16x80xbf16>, vector<16x80xbf16>, vector<16x80xbf16>, vector<16x80xbf16> -> vector<16x320xbf16>
    %267 = vector.extract_strided_slice %236 {offsets = [0, 10], sizes = [16, 80], strides = [1, 1]} : vector<16x102xbf16> to vector<16x80xbf16>
    %268 = vector.extract_strided_slice %220 {offsets = [0, 11], sizes = [16, 80], strides = [1, 1]} : vector<16x102xbf16> to vector<16x80xbf16>
    %269 = vector.extract_strided_slice %204 {offsets = [0, 20], sizes = [16, 80], strides = [1, 1]} : vector<16x102xbf16> to vector<16x80xbf16>
    %270 = vector.extract_strided_slice %188 {offsets = [0, 21], sizes = [16, 80], strides = [1, 1]} : vector<16x102xbf16> to vector<16x80xbf16>
    %271 = tpu.concatenate %267, %268, %269, %270 in 1 : vector<16x80xbf16>, vector<16x80xbf16>, vector<16x80xbf16>, vector<16x80xbf16> -> vector<16x320xbf16>
    %272 = vector.extract_strided_slice %220 {offsets = [0, 11], sizes = [16, 80], strides = [1, 1]} : vector<16x102xbf16> to vector<16x80xbf16>
    %273 = vector.extract_strided_slice %236 {offsets = [0, 11], sizes = [16, 80], strides = [1, 1]} : vector<16x102xbf16> to vector<16x80xbf16>
    %274 = vector.extract_strided_slice %188 {offsets = [0, 21], sizes = [16, 80], strides = [1, 1]} : vector<16x102xbf16> to vector<16x80xbf16>
    %275 = vector.extract_strided_slice %204 {offsets = [0, 21], sizes = [16, 80], strides = [1, 1]} : vector<16x102xbf16> to vector<16x80xbf16>
    %276 = tpu.concatenate %272, %273, %274, %275 in 1 : vector<16x80xbf16>, vector<16x80xbf16>, vector<16x80xbf16>, vector<16x80xbf16> -> vector<16x320xbf16>
    %277 = vector.extract_strided_slice %236 {offsets = [0, 11], sizes = [16, 80], strides = [1, 1]} : vector<16x102xbf16> to vector<16x80xbf16>
    %278 = vector.extract_strided_slice %220 {offsets = [0, 12], sizes = [16, 80], strides = [1, 1]} : vector<16x102xbf16> to vector<16x80xbf16>
    %279 = vector.extract_strided_slice %204 {offsets = [0, 21], sizes = [16, 80], strides = [1, 1]} : vector<16x102xbf16> to vector<16x80xbf16>
    %280 = vector.extract_strided_slice %188 {offsets = [0, 22], sizes = [16, 80], strides = [1, 1]} : vector<16x102xbf16> to vector<16x80xbf16>
    %281 = tpu.concatenate %277, %278, %279, %280 in 1 : vector<16x80xbf16>, vector<16x80xbf16>, vector<16x80xbf16>, vector<16x80xbf16> -> vector<16x320xbf16>
    %282 = tpu.concatenate %241, %246, %251, %256, %261, %266, %271, %276, %281 in 0 : vector<16x320xbf16>, vector<16x320xbf16>, vector<16x320xbf16>, vector<16x320xbf16>, vector<16x320xbf16>, vector<16x320xbf16>, vector<16x320xbf16>, vector<16x320xbf16>, vector<16x320xbf16> -> vector<144x320xbf16>
    %c6 = arith.constant 6 : index
    %c0_90 = arith.constant 0 : index
    %c0_91 = arith.constant 0 : index
    %283 = vector.load %arg4[%c6, %c0_90, %c0_91] : memref<7x16x144xbf16, #tpu.memory_space<vmem>>, vector<1x16x144xbf16>
    %284 = vector.shape_cast %283 : vector<1x16x144xbf16> to vector<16x144xbf16>
    %cst_92 = arith.constant dense<0.000000e+00> : vector<16x320xf32>
    %285 = tpu.matmul %284, %282, %cst_92 {dimension_numbers = #tpu.dot_dimension_numbers<[1], [0], [0], [1], [0, 0, 1, 1], [], []>} : vector<16x144xbf16>, vector<144x320xbf16>, vector<16x320xf32> -> vector<16x320xf32>
    %c6_93 = arith.constant 6 : index
    %c0_94 = arith.constant 0 : index
    %c0_95 = arith.constant 0 : index
    %286 = vector.load %arg5[%c6_93, %c0_94, %c0_95] : memref<7x16x1xf32, #tpu.memory_space<vmem>>, vector<1x16x1xf32>
    %287 = vector.shape_cast %286 : vector<1x16x1xf32> to vector<16x1xf32>
    %288 = vector.broadcast %287 : vector<16x1xf32> to vector<16x320xf32>
    %289 = arith.addf %285, %288 : vector<16x320xf32>
    %cst_96 = arith.constant 0.000000e+00 : f32
    %290 = vector.broadcast %cst_96 : f32 to vector<16x320xf32>
    %291 = arith.maximumf %289, %290 : vector<16x320xf32>
    %c0_97 = arith.constant 0 : index
    %c0_98 = arith.constant 0 : index
    %c0_99 = arith.constant 0 : index
    %292 = vector.load %arg14[%c0_97, %c0_98, %c0_99] : memref<1x16x320xf32, #tpu.memory_space<vmem>>, vector<1x16x320xf32>
    %293 = vector.shape_cast %292 : vector<1x16x320xf32> to vector<16x320xf32>
    %294 = vector.shape_cast %291 : vector<16x320xf32> to vector<1x16x320xf32>
    tpu.vector_store %arg14[%c0_97, %c0_98, %c0_99], %294 {strides = array<i32>} : memref<1x16x320xf32, #tpu.memory_space<vmem>>, vector<1x16x320xf32>,
    %c0_100 = arith.constant 0 : index
    %c0_101 = arith.constant 0 : index
    %295 = vector.load %arg8[%c0_100, %c0_101] : memref<4x16xbf16, #tpu.memory_space<vmem>>, vector<4x16xbf16>
    %296 = arith.truncf %291 : vector<16x320xf32> to vector<16x320xbf16>
    %cst_102 = arith.constant dense<0.000000e+00> : vector<4x320xf32>
    %297 = tpu.matmul %295, %296, %cst_102 {dimension_numbers = #tpu.dot_dimension_numbers<[1], [0], [0], [1], [0, 0, 1, 1], [], []>} : vector<4x16xbf16>, vector<16x320xbf16>, vector<4x320xf32> -> vector<4x320xf32>
    %c0_103 = arith.constant 0 : index
    %c0_104 = arith.constant 0 : index
    %298 = vector.load %arg9[%c0_103, %c0_104] : memref<4x1xf32, #tpu.memory_space<vmem>>, vector<4x1xf32>
    %299 = vector.broadcast %298 : vector<4x1xf32> to vector<4x320xf32>
    %300 = arith.addf %297, %299 : vector<4x320xf32>
    %cst_105 = arith.constant 0.000000e+00 : f32
    %301 = vector.broadcast %cst_105 : f32 to vector<4x320xf32>
    %302 = arith.maximumf %300, %301 : vector<4x320xf32>
    %c0_106 = arith.constant 0 : index
    %c0_107 = arith.constant 0 : index
    %c0_108 = arith.constant 0 : index
    %303 = vector.load %arg15[%c0_106, %c0_107, %c0_108] : memref<1x4x320xf32, #tpu.memory_space<vmem>>, vector<1x4x320xf32>
    %304 = vector.shape_cast %303 : vector<1x4x320xf32> to vector<4x320xf32>
    %305 = vector.shape_cast %302 : vector<4x320xf32> to vector<1x4x320xf32>
    tpu.vector_store %arg15[%c0_106, %c0_107, %c0_108], %305 {strides = array<i32>} : memref<1x4x320xf32, #tpu.memory_space<vmem>>, vector<1x4x320xf32>,
    return
  }
  func.func @transform_0(%arg0: i32) -> (i32, i32, i32) {
    %c0_i32 = arith.constant 0 : i32
    %c0_i32_0 = arith.constant 0 : i32
    %c0_i32_1 = arith.constant 0 : i32
    return %arg0, %c0_i32, %c0_i32_0 : i32, i32, i32
  }
  func.func @transform_1(%arg0: i32) -> (i32, i32) {
    %c0_i32 = arith.constant 0 : i32
    %c0_i32_0 = arith.constant 0 : i32
    %c0_i32_1 = arith.constant 0 : i32
    return %c0_i32, %c0_i32_0 : i32, i32
  }
  func.func @transform_2(%arg0: i32) -> (i32, i32) {
    %c0_i32 = arith.constant 0 : i32
    %c0_i32_0 = arith.constant 0 : i32
    %c0_i32_1 = arith.constant 0 : i32
    return %c0_i32, %c0_i32_0 : i32, i32
  }
  func.func @transform_3(%arg0: i32) -> (i32, i32, i32) {
    %c0_i32 = arith.constant 0 : i32
    %c0_i32_0 = arith.constant 0 : i32
    %c0_i32_1 = arith.constant 0 : i32
    %c0_i32_2 = arith.constant 0 : i32
    return %c0_i32, %c0_i32_0, %c0_i32_1 : i32, i32, i32
  }
  func.func @transform_4(%arg0: i32) -> (i32, i32, i32) {
    %c0_i32 = arith.constant 0 : i32
    %c0_i32_0 = arith.constant 0 : i32
    %c0_i32_1 = arith.constant 0 : i32
    %c0_i32_2 = arith.constant 0 : i32
    return %c0_i32, %c0_i32_0, %c0_i32_1 : i32, i32, i32
  }
  func.func @transform_5(%arg0: i32) -> (i32, i32, i32) {
    %c0_i32 = arith.constant 0 : i32
    %c0_i32_0 = arith.constant 0 : i32
    %c0_i32_1 = arith.constant 0 : i32
    %c0_i32_2 = arith.constant 0 : i32
    return %c0_i32, %c0_i32_0, %c0_i32_1 : i32, i32, i32
  }
  func.func @transform_6(%arg0: i32) -> (i32, i32) {
    %c0_i32 = arith.constant 0 : i32
    %c0_i32_0 = arith.constant 0 : i32
    %c0_i32_1 = arith.constant 0 : i32
    return %c0_i32, %c0_i32_0 : i32, i32
  }
  func.func @transform_7(%arg0: i32) -> (i32, i32) {
    %c0_i32 = arith.constant 0 : i32
    %c0_i32_0 = arith.constant 0 : i32
    %c0_i32_1 = arith.constant 0 : i32
    return %c0_i32, %c0_i32_0 : i32, i32
  }
  func.func @transform_8(%arg0: i32) -> (i32, i32) {
    %c0_i32 = arith.constant 0 : i32
    %c0_i32_0 = arith.constant 0 : i32
    %c0_i32_1 = arith.constant 0 : i32
    return %c0_i32, %c0_i32_0 : i32, i32
  }
  func.func @transform_9(%arg0: i32) -> (i32, i32) {
    %c0_i32 = arith.constant 0 : i32
    %c0_i32_0 = arith.constant 0 : i32
    %c0_i32_1 = arith.constant 0 : i32
    return %c0_i32, %c0_i32_0 : i32, i32
  }
  func.func @transform_10(%arg0: i32) -> (i32, i32) {
    %c0_i32 = arith.constant 0 : i32
    %c0_i32_0 = arith.constant 0 : i32
    %c0_i32_1 = arith.constant 0 : i32
    return %c0_i32, %c0_i32_0 : i32, i32
  }
  func.func @transform_11(%arg0: i32) -> (i32, i32) {
    %c0_i32 = arith.constant 0 : i32
    %c0_i32_0 = arith.constant 0 : i32
    %c0_i32_1 = arith.constant 0 : i32
    return %c0_i32, %c0_i32_0 : i32, i32
  }
  func.func @transform_12(%arg0: i32) -> (i32, i32, i32) {
    %c0_i32 = arith.constant 0 : i32
    %c0_i32_0 = arith.constant 0 : i32
    %c0_i32_1 = arith.constant 0 : i32
    return %arg0, %c0_i32, %c0_i32_0 : i32, i32, i32
  }
  func.func @transform_13(%arg0: i32) -> (i32, i32, i32) {
    %c0_i32 = arith.constant 0 : i32
    %c0_i32_0 = arith.constant 0 : i32
    %c0_i32_1 = arith.constant 0 : i32
    return %arg0, %c0_i32, %c0_i32_0 : i32, i32, i32
  }
  func.func @transform_14(%arg0: i32) -> (i32, i32, i32) {
    %c0_i32 = arith.constant 0 : i32
    %c0_i32_0 = arith.constant 0 : i32
    %c0_i32_1 = arith.constant 0 : i32
    return %arg0, %c0_i32, %c0_i32_0 : i32, i32, i32
  }
}

</mosaic_0001>

<llo_original>
// kernel: tpu_custom_call.1
$region0: #{tpu_custom_call.1}
  #allocation0 [shape = 'u32[]', space=smem, size = 0x4, offset = 0x4, fixed_abs, tag = 'smem constant byte address 0x4 - core index']
  #allocation1 [shape = 'u32[144,128]{1,0:T(1,128)}', space=vmem, size = 0x12000, scoped, tag = 'internal scratch']
  %s0 = inlined_call_operand.vmem [shape: f32[2,8,326], index: 0, kind: input, shape index: {}]
  %s1 = inlined_call_operand.hbm [shape: bf16[16,72], index: 1, kind: input, shape index: {}]
  %s2 = inlined_call_operand.vmem [shape: f32[16,1], index: 2, kind: input, shape index: {}]
  %s3 = inlined_call_operand.vmem [shape: bf16[7,16,144], index: 3, kind: input, shape index: {}]
  %s4 = inlined_call_operand.vmem [shape: f32[7,16,1], index: 4, kind: input, shape index: {}]
  %s5 = inlined_call_operand.hbm [shape: bf16[4,16,64], index: 5, kind: input, shape index: {}]
  %s6 = inlined_call_operand.vmem [shape: f32[16,1], index: 6, kind: input, shape index: {}]
  %s7 = inlined_call_operand.vmem [shape: bf16[4,16], index: 7, kind: input, shape index: {}]
  %s8 = inlined_call_operand.vmem [shape: f32[4,1], index: 8, kind: input, shape index: {}]
  %s9 = inlined_call_operand.hbm [shape: f32[288,102], index: 9, kind: input, shape index: {}]
  %s10 = inlined_call_operand.vmem [shape: f32[1,288], index: 10, kind: input, shape index: {}]
  %s11 = inlined_call_operand.vmem [shape: f32[1,80], index: 11, kind: input, shape index: {}]
  %s12 = inlined_call_operand.hbm [shape: f32[2,16,102], index: 12, kind: output, shape index: {0}]
  %s13 = inlined_call_operand.hbm [shape: f32[2,16,320], index: 13, kind: output, shape index: {1}]
  %s14 = inlined_call_operand.hbm [shape: f32[2,4,320], index: 14, kind: output, shape index: {2}]
  %15 = xla_tuple %s12, %s13, %s14
  %s16 = sld [smem:[#allocation0]]
  $region109: #{tpu_custom_call.1} parent=0
    _
  %s18 = ssub.s32 1, %s16
  %s19 = scalar_select 0, %s18, %s16
  $region1: #{tpu_custom_call.1} parent=0
    #allocation2 [shape = 'u8[4096]{0}', space=vmem, size = 0x1000, scoped, tag = 'input window, operand 1, single buffered']
    #allocation3 [shape = 's32[2]{0}', space=sflag, size = 0x8, scoped, tag = 'scoped memory for tpu_custom_call.1']
    #allocation4 [shape = 's32[2]{0}', space=sflag, size = 0x8, scoped, tag = 'scoped memory for tpu_custom_call.1']
    #allocation5 [shape = 'u8[16384]{0}', space=vmem, size = 0x4000, scoped, tag = 'input window, operand 5, single buffered']
    #allocation6 [shape = 's32[1]{0}', space=sflag, size = 0x4, scoped, tag = 'scoped memory for tpu_custom_call.1']
    #allocation7 [shape = 'u8[147456]{0}', space=vmem, size = 0x24000, scoped, tag = 'input window, operand 9, single buffered']
    #allocation8 [shape = 'u8[16384]{0}', space=vmem, size = 0x4000, scoped, tag = 'output window, operand 0']
    #allocation9 [shape = 'u8[49152]{0}', space=vmem, size = 0xc000, scoped, tag = 'output window, operand 1']
    #allocation10 [shape = 's32[2]{0}', space=sflag, size = 0x8, scoped, tag = 'scoped memory for tpu_custom_call.1']
    #allocation11 [shape = 'u8[12288]{0}', space=vmem, size = 0x3000, scoped, tag = 'output window, operand 2']
    %20 = vsyncpa [#allocation3], 0
    %21 = vsyncpa [#allocation6], 0
    %22 = vsyncpa [#allocation4], 0
    %s23 = scalar_lea.sflag [#allocation4], 1
    %24 = vsyncpa %s23, 0
    %25 = vsyncpa [#allocation10], 0
    %s26 = scalar_lea.sflag [#allocation10], 1
    %27 = vsyncpa %s26, 0
    loop: start=0, step=1, limit=4
    $region2: #{tpu_custom_call.1} parent=1 // loop_pre_header
      _
    $region3: #{tpu_custom_call.1} parent=1 // loop_header
      %s29 = sphi 0, %s33
      %p30 = scmp.ge.s32.totalorder %s29, 4
      %s39 = sphi 0, %s41
      %s42 = sphi 0, %s39
      %s43 = sphi 0, %s42
      %s59 = sphi 0, %s43
      %s63 = sphi 0, %s63
      %s65 = sphi 0, %s63
      %s66 = sphi 0, %s65
      %s80 = sphi 0, %s66
      %s84 = sphi 0, %s84
      %s86 = sphi 0, %s84
      %s87 = sphi 0, %s86
      %s101 = sphi 0, %s87
      %s105 = sphi 0, %s105
      %s107 = sphi 0, %s105
      %s108 = sphi 0, %s107
      %s122 = sphi 0, %s108
      %s126 = sphi 0, %s126
      %s128 = sphi 0, %s126
      %s129 = sphi 0, %s128
      %s143 = sphi 0, %s129
      %s147 = sphi 0, %s147
      %s149 = sphi 0, %s147
      %s150 = sphi 0, %s149
      %s164 = sphi 0, %s150
      %s168 = sphi 0, %s168
      %s170 = sphi 0, %s168
      %s171 = sphi 0, %s170
      %s185 = sphi 0, %s171
      %s189 = sphi 0, %s189
      %s191 = sphi 0, %s189
      %s192 = sphi 0, %s191
      %s206 = sphi 0, %s192
      %s210 = sphi 0, %s210
      %s212 = sphi 0, %s210
      %s213 = sphi 0, %s212
      %s227 = sphi 0, %s213
      %s231 = sphi 0, %s231
      %s233 = sphi 0, %s231
      %s234 = sphi 0, %s233
      %s248 = sphi 0, %s234
      %s252 = sphi 0, %s252
      %s254 = sphi 0, %s252
      %s255 = sphi 0, %s254
      %s269 = sphi 0, %s255
      %s273 = sphi 0, %s273
      %s275 = sphi 0, %s273
      %s276 = sphi 0, %s275
      %s290 = sphi 0, %s276
      %s296 = sphi 0, %s298
      %s299 = sphi 0, %s296
      %s300 = sphi 0, %s299
      %s316 = sphi 0, %s300
      %s322 = sphi 0, %s324
      %s325 = sphi 0, %s322
      %s326 = sphi 0, %s325
      %s342 = sphi 0, %s326
      %s348 = sphi 0, %s350
      %s351 = sphi 0, %s348
      %s352 = sphi 0, %s351
      %s368 = sphi 0, %s352
    $region4: #{tpu_custom_call.1} parent=1 // loop_header_branch
      %32 = sbr.rel (%p30) target = $region8
    $region5: #{tpu_custom_call.1} parent=1 // loop_body
      %s34 = ssub.s32 %s29, 1
      %s35 = ssub.s32 %s29, 2
      %s36 = sadd.s32 %s29, 1
      %s37 = ssub.s32 %s29, %s36
      %p38 = scmp.eq.s32.totalorder %s37, 0
      %s40 = sadd.s32 %s39, 1
      %s41 = scalar_select %p38, %s39, %s40
      %p44 = pneg %p38
      %p45 = scmp.eq.s32.totalorder %s29, 1
      %p46 = por %p44, %p45
      %p47 = scmp.ne.s32.totalorder %s39, %s42
      %p48 = scmp.eq.s32.totalorder %s29, 0
      %p49 = por %p47, %p48
      %p50 = scmp.ne.s32.totalorder %s39, %s42
      %p51 = scmp.eq.s32.totalorder %s34, 1
      %p52 = por %p50, %p51
      %p53 = scmp.ne.s32.totalorder %s42, %s43
      %p54 = scmp.eq.s32.totalorder %s34, 0
      %p55 = por %p53, %p54
      %p56 = scmp.ne.s32.totalorder %s42, %s43
      %p57 = scmp.eq.s32.totalorder %s35, 1
      %p58 = por %p56, %p57
      %p60 = scmp.ne.s32.totalorder %s43, %s59
      %p61 = scmp.eq.s32.totalorder %s35, 0
      %p62 = por %p60, %p61
      %s64 = sadd.s32 %s63, 1
      %p67 = scmp.eq.s32.totalorder %s29, 1
      %p68 = scmp.ne.s32.totalorder %s63, %s65
      %p69 = scmp.eq.s32.totalorder %s29, 0
      %p70 = por %p68, %p69
      %p71 = scmp.ne.s32.totalorder %s63, %s65
      %p72 = scmp.eq.s32.totalorder %s34, 1
      %p73 = por %p71, %p72
      %p74 = scmp.ne.s32.totalorder %s65, %s66
      %p75 = scmp.eq.s32.totalorder %s34, 0
      %p76 = por %p74, %p75
      %p77 = scmp.ne.s32.totalorder %s65, %s66
      %p78 = scmp.eq.s32.totalorder %s35, 1
      %p79 = por %p77, %p78
      %p81 = scmp.ne.s32.totalorder %s66, %s80
      %p82 = scmp.eq.s32.totalorder %s35, 0
      %p83 = por %p81, %p82
      %s85 = sadd.s32 %s84, 1
      %p88 = scmp.eq.s32.totalorder %s29, 1
      %p89 = scmp.ne.s32.totalorder %s84, %s86
      %p90 = scmp.eq.s32.totalorder %s29, 0
      %p91 = por %p89, %p90
      %p92 = scmp.ne.s32.totalorder %s84, %s86
      %p93 = scmp.eq.s32.totalorder %s34, 1
      %p94 = por %p92, %p93
      %p95 = scmp.ne.s32.totalorder %s86, %s87
      %p96 = scmp.eq.s32.totalorder %s34, 0
      %p97 = por %p95, %p96
      %p98 = scmp.ne.s32.totalorder %s86, %s87
      %p99 = scmp.eq.s32.totalorder %s35, 1
      %p100 = por %p98, %p99
      %p102 = scmp.ne.s32.totalorder %s87, %s101
      %p103 = scmp.eq.s32.totalorder %s35, 0
      %p104 = por %p102, %p103
      %s106 = sadd.s32 %s105, 1
      %p109 = scmp.eq.s32.totalorder %s29, 1
      %p110 = scmp.ne.s32.totalorder %s105, %s107
      %p111 = scmp.eq.s32.totalorder %s29, 0
      %p112 = por %p110, %p111
      %p113 = scmp.ne.s32.totalorder %s105, %s107
      %p114 = scmp.eq.s32.totalorder %s34, 1
      %p115 = por %p113, %p114
      %p116 = scmp.ne.s32.totalorder %s107, %s108
      %p117 = scmp.eq.s32.totalorder %s34, 0
      %p118 = por %p116, %p117
      %p119 = scmp.ne.s32.totalorder %s107, %s108
      %p120 = scmp.eq.s32.totalorder %s35, 1
      %p121 = por %p119, %p120
      %p123 = scmp.ne.s32.totalorder %s108, %s122
      %p124 = scmp.eq.s32.totalorder %s35, 0
      %p125 = por %p123, %p124
      %s127 = sadd.s32 %s126, 1
      %p130 = scmp.eq.s32.totalorder %s29, 1
      %p131 = scmp.ne.s32.totalorder %s126, %s128
      %p132 = scmp.eq.s32.totalorder %s29, 0
      %p133 = por %p131, %p132
      %p134 = scmp.ne.s32.totalorder %s126, %s128
      %p135 = scmp.eq.s32.totalorder %s34, 1
      %p136 = por %p134, %p135
      %p137 = scmp.ne.s32.totalorder %s128, %s129
      %p138 = scmp.eq.s32.totalorder %s34, 0
      %p139 = por %p137, %p138
      %p140 = scmp.ne.s32.totalorder %s128, %s129
      %p141 = scmp.eq.s32.totalorder %s35, 1
      %p142 = por %p140, %p141
      %p144 = scmp.ne.s32.totalorder %s129, %s143
      %p145 = scmp.eq.s32.totalorder %s35, 0
      %p146 = por %p144, %p145
      %s148 = sadd.s32 %s147, 1
      %p151 = scmp.eq.s32.totalorder %s29, 1
      %p152 = scmp.ne.s32.totalorder %s147, %s149
      %p153 = scmp.eq.s32.totalorder %s29, 0
      %p154 = por %p152, %p153
      %p155 = scmp.ne.s32.totalorder %s147, %s149
      %p156 = scmp.eq.s32.totalorder %s34, 1
      %p157 = por %p155, %p156
      %p158 = scmp.ne.s32.totalorder %s149, %s150
      %p159 = scmp.eq.s32.totalorder %s34, 0
      %p160 = por %p158, %p159
      %p161 = scmp.ne.s32.totalorder %s149, %s150
      %p162 = scmp.eq.s32.totalorder %s35, 1
      %p163 = por %p161, %p162
      %p165 = scmp.ne.s32.totalorder %s150, %s164
      %p166 = scmp.eq.s32.totalorder %s35, 0
      %p167 = por %p165, %p166
      %s169 = sadd.s32 %s168, 1
      %p172 = scmp.eq.s32.totalorder %s29, 1
      %p173 = scmp.ne.s32.totalorder %s168, %s170
      %p174 = scmp.eq.s32.totalorder %s29, 0
      %p175 = por %p173, %p174
      %p176 = scmp.ne.s32.totalorder %s168, %s170
      %p177 = scmp.eq.s32.totalorder %s34, 1
      %p178 = por %p176, %p177
      %p179 = scmp.ne.s32.totalorder %s170, %s171
      %p180 = scmp.eq.s32.totalorder %s34, 0
      %p181 = por %p179, %p180
      %p182 = scmp.ne.s32.totalorder %s170, %s171
      %p183 = scmp.eq.s32.totalorder %s35, 1
      %p184 = por %p182, %p183
      %p186 = scmp.ne.s32.totalorder %s171, %s185
      %p187 = scmp.eq.s32.totalorder %s35, 0
      %p188 = por %p186, %p187
      %s190 = sadd.s32 %s189, 1
      %p193 = scmp.eq.s32.totalorder %s29, 1
      %p194 = scmp.ne.s32.totalorder %s189, %s191
      %p195 = scmp.eq.s32.totalorder %s29, 0
      %p196 = por %p194, %p195
      %p197 = scmp.ne.s32.totalorder %s189, %s191
      %p198 = scmp.eq.s32.totalorder %s34, 1
      %p199 = por %p197, %p198
      %p200 = scmp.ne.s32.totalorder %s191, %s192
      %p201 = scmp.eq.s32.totalorder %s34, 0
      %p202 = por %p200, %p201
      %p203 = scmp.ne.s32.totalorder %s191, %s192
      %p204 = scmp.eq.s32.totalorder %s35, 1
      %p205 = por %p203, %p204
      %p207 = scmp.ne.s32.totalorder %s192, %s206
      %p208 = scmp.eq.s32.totalorder %s35, 0
      %p209 = por %p207, %p208
      %s211 = sadd.s32 %s210, 1
      %p214 = scmp.eq.s32.totalorder %s29, 1
      %p215 = scmp.ne.s32.totalorder %s210, %s212
      %p216 = scmp.eq.s32.totalorder %s29, 0
      %p217 = por %p215, %p216
      %p218 = scmp.ne.s32.totalorder %s210, %s212
      %p219 = scmp.eq.s32.totalorder %s34, 1
      %p220 = por %p218, %p219
      %p221 = scmp.ne.s32.totalorder %s212, %s213
      %p222 = scmp.eq.s32.totalorder %s34, 0
      %p223 = por %p221, %p222
      %p224 = scmp.ne.s32.totalorder %s212, %s213
      %p225 = scmp.eq.s32.totalorder %s35, 1
      %p226 = por %p224, %p225
      %p228 = scmp.ne.s32.totalorder %s213, %s227
      %p229 = scmp.eq.s32.totalorder %s35, 0
      %p230 = por %p228, %p229
      %s232 = sadd.s32 %s231, 1
      %p235 = scmp.eq.s32.totalorder %s29, 1
      %p236 = scmp.ne.s32.totalorder %s231, %s233
      %p237 = scmp.eq.s32.totalorder %s29, 0
      %p238 = por %p236, %p237
      %p239 = scmp.ne.s32.totalorder %s231, %s233
      %p240 = scmp.eq.s32.totalorder %s34, 1
      %p241 = por %p239, %p240
      %p242 = scmp.ne.s32.totalorder %s233, %s234
      %p243 = scmp.eq.s32.totalorder %s34, 0
      %p244 = por %p242, %p243
      %p245 = scmp.ne.s32.totalorder %s233, %s234
      %p246 = scmp.eq.s32.totalorder %s35, 1
      %p247 = por %p245, %p246
      %p249 = scmp.ne.s32.totalorder %s234, %s248
      %p250 = scmp.eq.s32.totalorder %s35, 0
      %p251 = por %p249, %p250
      %s253 = sadd.s32 %s252, 1
      %p256 = scmp.eq.s32.totalorder %s29, 1
      %p257 = scmp.ne.s32.totalorder %s252, %s254
      %p258 = scmp.eq.s32.totalorder %s29, 0
      %p259 = por %p257, %p258
      %p260 = scmp.ne.s32.totalorder %s252, %s254
      %p261 = scmp.eq.s32.totalorder %s34, 1
      %p262 = por %p260, %p261
      %p263 = scmp.ne.s32.totalorder %s254, %s255
      %p264 = scmp.eq.s32.totalorder %s34, 0
      %p265 = por %p263, %p264
      %p266 = scmp.ne.s32.totalorder %s254, %s255
      %p267 = scmp.eq.s32.totalorder %s35, 1
      %p268 = por %p266, %p267
      %p270 = scmp.ne.s32.totalorder %s255, %s269
      %p271 = scmp.eq.s32.totalorder %s35, 0
      %p272 = por %p270, %p271
      %s274 = sadd.s32 %s273, 1
      %p277 = scmp.eq.s32.totalorder %s29, 1
      %p278 = scmp.ne.s32.totalorder %s273, %s275
      %p279 = scmp.eq.s32.totalorder %s29, 0
      %p280 = por %p278, %p279
      %p281 = scmp.ne.s32.totalorder %s273, %s275
      %p282 = scmp.eq.s32.totalorder %s34, 1
      %p283 = por %p281, %p282
      %p284 = scmp.ne.s32.totalorder %s275, %s276
      %p285 = scmp.eq.s32.totalorder %s34, 0
      %p286 = por %p284, %p285
      %p287 = scmp.ne.s32.totalorder %s275, %s276
      %p288 = scmp.eq.s32.totalorder %s35, 1
      %p289 = por %p287, %p288
      %p291 = scmp.ne.s32.totalorder %s276, %s290
      %p292 = scmp.eq.s32.totalorder %s35, 0
      %p293 = por %p291, %p292
      %s294 = ssub.s32 %s29, %s36
      %p295 = scmp.eq.s32.totalorder %s294, 0
      %s297 = sadd.s32 %s296, 1
      %s298 = scalar_select %p295, %s296, %s297
      %p301 = pneg %p295
      %p302 = scmp.eq.s32.totalorder %s29, 1
      %p303 = por %p301, %p302
      %p304 = scmp.ne.s32.totalorder %s296, %s299
      %p305 = scmp.eq.s32.totalorder %s29, 0
      %p306 = por %p304, %p305
      %p307 = scmp.ne.s32.totalorder %s296, %s299
      %p308 = scmp.eq.s32.totalorder %s34, 1
      %p309 = por %p307, %p308
      %p310 = scmp.ne.s32.totalorder %s299, %s300
      %p311 = scmp.eq.s32.totalorder %s34, 0
      %p312 = por %p310, %p311
      %p313 = scmp.ne.s32.totalorder %s299, %s300
      %p314 = scmp.eq.s32.totalorder %s35, 1
      %p315 = por %p313, %p314
      %p317 = scmp.ne.s32.totalorder %s300, %s316
      %p318 = scmp.eq.s32.totalorder %s35, 0
      %p319 = por %p317, %p318
      %s320 = ssub.s32 %s29, %s36
      %p321 = scmp.eq.s32.totalorder %s320, 0
      %s323 = sadd.s32 %s322, 1
      %s324 = scalar_select %p321, %s322, %s323
      %p327 = pneg %p321
      %p328 = scmp.eq.s32.totalorder %s29, 1
      %p329 = por %p327, %p328
      %p330 = scmp.ne.s32.totalorder %s322, %s325
      %p331 = scmp.eq.s32.totalorder %s29, 0
      %p332 = por %p330, %p331
      %p333 = scmp.ne.s32.totalorder %s322, %s325
      %p334 = scmp.eq.s32.totalorder %s34, 1
      %p335 = por %p333, %p334
      %p336 = scmp.ne.s32.totalorder %s325, %s326
      %p337 = scmp.eq.s32.totalorder %s34, 0
      %p338 = por %p336, %p337
      %p339 = scmp.ne.s32.totalorder %s325, %s326
      %p340 = scmp.eq.s32.totalorder %s35, 1
      %p341 = por %p339, %p340
      %p343 = scmp.ne.s32.totalorder %s326, %s342
      %p344 = scmp.eq.s32.totalorder %s35, 0
      %p345 = por %p343, %p344
      %s346 = ssub.s32 %s29, %s36
      %p347 = scmp.eq.s32.totalorder %s346, 0
      %s349 = sadd.s32 %s348, 1
      %s350 = scalar_select %p347, %s348, %s349
      %p353 = pneg %p347
      %p354 = scmp.eq.s32.totalorder %s29, 1
      %p355 = por %p353, %p354
      %p356 = scmp.ne.s32.totalorder %s348, %s351
      %p357 = scmp.eq.s32.totalorder %s29, 0
      %p358 = por %p356, %p357
      %p359 = scmp.ne.s32.totalorder %s348, %s351
      %p360 = scmp.eq.s32.totalorder %s34, 1
      %p361 = por %p359, %p360
      %p362 = scmp.ne.s32.totalorder %s351, %s352
      %p363 = scmp.eq.s32.totalorder %s34, 0
      %p364 = por %p362, %p363
      %p365 = scmp.ne.s32.totalorder %s351, %s352
      %p366 = scmp.eq.s32.totalorder %s35, 1
      %p367 = por %p365, %p366
      %p369 = scmp.ne.s32.totalorder %s352, %s368
      %p370 = scmp.eq.s32.totalorder %s35, 0
      %p371 = por %p369, %p370
      %p372 = scmp.le.s32.totalorder 1, %s29
      %p373 = scmp.lt.s32.totalorder %s29, 3
      %p374 = pnand %p372, %p373
      %p375 = pneg %p374
      // Predicated region
      $region9: #{tpu_custom_call.1} parent=5 // pred_check
        _
      $region10: #{tpu_custom_call.1} parent=5 // pred_check_branch
        %377 = sbr.rel (%p374) target = $region12
      $region11: #{tpu_custom_call.1} parent=5 // pred_region
        %s378 = ssub.s32 %s29, 1
        // Predicated region
        $region13: #{tpu_custom_call.1} parent=11 // pred_check
          %p379 = pneg %p76
        $region14: #{tpu_custom_call.1} parent=11 // pred_check_branch
          %381 = sbr.rel (%p379) target = $region16
        $region15: #{tpu_custom_call.1} parent=11 // pred_region
          %s383 = ssub.s32 128, 128
          %384 = vsyncadd [#allocation3], %s383
          %s385 = sshll.u32 [#allocation2], 4
          %s386 = int_to_ptr.vmem [resolvable:$true] %s385
          %391 = dma.hbm_to_vmem [thread:$0]  %s1, 128, %s386, [#allocation3], 64, 64, 4
        $region16: #{tpu_custom_call.1} parent=11 // pred_fallthru
          _
        // Predicated region
        $region17: #{tpu_custom_call.1} parent=11 // pred_check
          %p392 = pneg %p97
        $region18: #{tpu_custom_call.1} parent=11 // pred_check_branch
          %394 = sbr.rel (%p392) target = $region20
        $region19: #{tpu_custom_call.1} parent=11 // pred_region
          _
        $region20: #{tpu_custom_call.1} parent=11 // pred_fallthru
          _
        // Predicated region
        $region21: #{tpu_custom_call.1} parent=11 // pred_check
          %p395 = pneg %p118
        $region22: #{tpu_custom_call.1} parent=11 // pred_check_branch
          %397 = sbr.rel (%p395) target = $region24
        $region23: #{tpu_custom_call.1} parent=11 // pred_region
          _
        $region24: #{tpu_custom_call.1} parent=11 // pred_fallthru
          _
        // Predicated region
        $region25: #{tpu_custom_call.1} parent=11 // pred_check
          %p398 = pneg %p139
        $region26: #{tpu_custom_call.1} parent=11 // pred_check_branch
          %400 = sbr.rel (%p398) target = $region28
        $region27: #{tpu_custom_call.1} parent=11 // pred_region
          _
        $region28: #{tpu_custom_call.1} parent=11 // pred_fallthru
          _
        // Predicated region
        $region29: #{tpu_custom_call.1} parent=11 // pred_check
          %p401 = pneg %p160
        $region30: #{tpu_custom_call.1} parent=11 // pred_check_branch
          %403 = sbr.rel (%p401) target = $region32
        $region31: #{tpu_custom_call.1} parent=11 // pred_region
          %s405 = ssub.s32 512, 512
          %406 = vsyncadd [#allocation6], %s405
          %s407 = sshll.u32 [#allocation5], 4
          %s408 = int_to_ptr.vmem [resolvable:$true] %s407
          %413 = dma.hbm_to_vmem [thread:$0]  %s5, 512, %s408, [#allocation6], 64, 64, 4
        $region32: #{tpu_custom_call.1} parent=11 // pred_fallthru
          _
        // Predicated region
        $region33: #{tpu_custom_call.1} parent=11 // pred_check
          %p414 = pneg %p181
        $region34: #{tpu_custom_call.1} parent=11 // pred_check_branch
          %416 = sbr.rel (%p414) target = $region36
        $region35: #{tpu_custom_call.1} parent=11 // pred_region
          _
        $region36: #{tpu_custom_call.1} parent=11 // pred_fallthru
          _
        // Predicated region
        $region37: #{tpu_custom_call.1} parent=11 // pred_check
          %p417 = pneg %p202
        $region38: #{tpu_custom_call.1} parent=11 // pred_check_branch
          %419 = sbr.rel (%p417) target = $region40
        $region39: #{tpu_custom_call.1} parent=11 // pred_region
          _
        $region40: #{tpu_custom_call.1} parent=11 // pred_fallthru
          _
        // Predicated region
        $region41: #{tpu_custom_call.1} parent=11 // pred_check
          %p420 = pneg %p223
        $region42: #{tpu_custom_call.1} parent=11 // pred_check_branch
          %422 = sbr.rel (%p420) target = $region44
        $region43: #{tpu_custom_call.1} parent=11 // pred_region
          _
        $region44: #{tpu_custom_call.1} parent=11 // pred_fallthru
          _
        // Predicated region
        $region45: #{tpu_custom_call.1} parent=11 // pred_check
          %p423 = pneg %p244
        $region46: #{tpu_custom_call.1} parent=11 // pred_check_branch
          %425 = sbr.rel (%p423) target = $region48
        $region47: #{tpu_custom_call.1} parent=11 // pred_region
          %s427 = ssub.s32 4608, 4608
          %428 = vsyncadd [#allocation6], %s427
          %s429 = sshll.u32 [#allocation7], 4
          %s430 = int_to_ptr.vmem [resolvable:$true] %s429
          %435 = dma.hbm_to_vmem [thread:$0]  %s9, 4608, %s430, [#allocation6], 128, 128, 8
        $region48: #{tpu_custom_call.1} parent=11 // pred_fallthru
          _
        // Predicated region
        $region49: #{tpu_custom_call.1} parent=11 // pred_check
          %p436 = pneg %p265
        $region50: #{tpu_custom_call.1} parent=11 // pred_check_branch
          %438 = sbr.rel (%p436) target = $region52
        $region51: #{tpu_custom_call.1} parent=11 // pred_region
          _
        $region52: #{tpu_custom_call.1} parent=11 // pred_fallthru
          _
        // Predicated region
        $region53: #{tpu_custom_call.1} parent=11 // pred_check
          %p439 = pneg %p286
        $region54: #{tpu_custom_call.1} parent=11 // pred_check_branch
          %441 = sbr.rel (%p439) target = $region56
        $region55: #{tpu_custom_call.1} parent=11 // pred_region
          _
        $region56: #{tpu_custom_call.1} parent=11 // pred_fallthru
          _
      $region12: #{tpu_custom_call.1} parent=5 // pred_fallthru
        _
      %p442 = scmp.lt.s32.totalorder %s29, 2
      // Predicated region
      $region57: #{tpu_custom_call.1} parent=5 // pred_check
        %p443 = pneg %p442
      $region58: #{tpu_custom_call.1} parent=5 // pred_check_branch
        %445 = sbr.rel (%p443) target = $region60
      $region59: #{tpu_custom_call.1} parent=5 // pred_region
        // Predicated region
        $region61: #{tpu_custom_call.1} parent=59 // pred_check
          %p446 = pneg %p49
        $region62: #{tpu_custom_call.1} parent=59 // pred_check_branch
          %448 = sbr.rel (%p446) target = $region64
        $region63: #{tpu_custom_call.1} parent=59 // pred_region
          %p449 = scmp.lt.s32.totalorder %s29, 1
          %s450 = scalar_select %p449, %s29, 1
          %s451 = smul.addr %s450, 3
          %s452 = smul.addr %s451, 8
          %s453 = scalar_lea.vmem %s0, %s452
        $region64: #{tpu_custom_call.1} parent=59 // pred_fallthru
          _
      $region60: #{tpu_custom_call.1} parent=5 // pred_fallthru
        _
      %p454 = scmp.le.s32.totalorder 1, %s29
      %p455 = scmp.lt.s32.totalorder %s29, 3
      %p456 = pnand %p454, %p455
      %p457 = pneg %p456
      // Predicated region
      $region65: #{tpu_custom_call.1} parent=5 // pred_check
        _
      $region66: #{tpu_custom_call.1} parent=5 // pred_check_branch
        %459 = sbr.rel (%p456) target = $region68
      $region67: #{tpu_custom_call.1} parent=5 // pred_region
        %s460 = ssub.s32 %s29, 1
        // Predicated region
        $region69: #{tpu_custom_call.1} parent=67 // pred_check
          %p461 = pneg %p76
        $region70: #{tpu_custom_call.1} parent=67 // pred_check_branch
          %463 = sbr.rel (%p461) target = $region72
        $region71: #{tpu_custom_call.1} parent=67 // pred_region
          %464 = dma.done [#allocation3], 128
        $region72: #{tpu_custom_call.1} parent=67 // pred_fallthru
          _
        // Predicated region
        $region73: #{tpu_custom_call.1} parent=67 // pred_check
          %p465 = pneg %p160
        $region74: #{tpu_custom_call.1} parent=67 // pred_check_branch
          %467 = sbr.rel (%p465) target = $region76
        $region75: #{tpu_custom_call.1} parent=67 // pred_region
          %468 = dma.done [#allocation6], 512
        $region76: #{tpu_custom_call.1} parent=67 // pred_fallthru
          _
        // Predicated region
        $region77: #{tpu_custom_call.1} parent=67 // pred_check
          %p469 = pneg %p244
        $region78: #{tpu_custom_call.1} parent=67 // pred_check_branch
          %471 = sbr.rel (%p469) target = $region80
        $region79: #{tpu_custom_call.1} parent=67 // pred_region
          %472 = dma.done [#allocation6], 4608
        $region80: #{tpu_custom_call.1} parent=67 // pred_fallthru
          _
        %p473 = scmp.lt.s32.totalorder %s34, 1
        %s474 = scalar_select %p473, %s34, 1
        %s475 = smul.addr %s474, 3
        %s476 = smul.addr %s475, 8
        %s477 = scalar_lea.vmem %s0, %s476
        %p478 = pneg %p55
        %p479 = pneg %p52
        %p480 = pneg %p76
        %p481 = pneg %p73
        %p482 = pneg %p97
        %p483 = pneg %p94
        %p484 = pneg %p118
        %p485 = pneg %p115
        %p486 = pneg %p139
        %p487 = pneg %p136
        %p488 = pneg %p160
        %p489 = pneg %p157
        %p490 = pneg %p181
        %p491 = pneg %p178
        %p492 = pneg %p202
        %p493 = pneg %p199
        %p494 = pneg %p223
        %p495 = pneg %p220
        %p496 = pneg %p244
        %p497 = pneg %p241
        %p498 = pneg %p265
        %p499 = pneg %p262
        %p500 = pneg %p286
        %p501 = pneg %p283
        %p502 = pneg %p312
        %p503 = pneg %p309
        %s504 = sand.u32 %s299, 1
        %s505 = scalar_lea.sflag [#allocation4], %s504
        %s506 = sand.u32 %s299, 1
        %s507 = smul.addr %s506, 16
        %s508 = scalar_lea.vmem [#allocation8], %s507
        %p509 = pneg %p338
        %p510 = pneg %p335
        %s511 = sand.u32 %s34, 1
        %s512 = scalar_lea.sflag [#allocation10], %s511
        %s513 = sand.u32 %s325, 1
        %s514 = smul.addr %s513, 48
        %s515 = scalar_lea.vmem [#allocation9], %s514
        %p516 = pneg %p364
        %p517 = pneg %p361
        %s518 = sand.u32 %s34, 1
        %s519 = scalar_lea.sflag [#allocation10], %s518
        %s520 = sand.u32 %s351, 1
        %s521 = smul.addr %s520, 12
        %s522 = scalar_lea.vmem [#allocation11], %s521
        %p523 = scmp.lt.s32.totalorder %s34, 1
        %s524 = scalar_select %p523, %s34, 1
        %s525 = smul.addr %s524, 3
        %s526 = smul.addr %s525, 8
        %s527 = scalar_lea.vmem %s0, %s526
        %v529 = vld [vmem:[%s10] sm:$0x7]
        %v530 = vld [vmem:[%s11] sm:$0x1]
        %v531 = vld [vmem:[%s527] sm:$0xff]
        %v532 = vld [vmem:[%s527 + $0x8] sm:$0xff]
        %v533 = vld [vmem:[%s527 + $0x10] sm:$0xff]
        %v534 = vld [vmem:[#allocation2] sm:$0xf]
        %v535 = vld [vmem:[#allocation2 + $0x4] sm:$0xf]
        %v536 = vld [vmem:[%s2] sm:$0xff]
        %v537 = vld [vmem:[%s2 + $0x8] sm:$0xff]
        %v538 = vpack.c.bf16 %v531, %v531
        %v539 = vpack.c.bf16 %v532, %v532
        %v540 = vpack.c.bf16 %v533, %v533
        %v544 = vrot.slane %v538, 4
        %v545 = vrot.slane %v539, 4
        %v546 = vrot.slane %v540, 4
        %547 = vrot.lane.b32.xlu0 %v544, 127
        %v548 = vpop.permute.xlu0 %547
        %549 = vrot.lane.b32.xlu0 %v545, 127
        %v550 = vpop.permute.xlu0 %549
        %551 = vrot.lane.b32.xlu0 %v546, 127
        %v552 = vpop.permute.xlu0 %551
        %vm553 = vcmask 1039360
        %v554 = vsel %vm553, %v548, %v550
        %v555 = vsel %vm553, %v550, %v552
        %556 = vrot.lane.b32.xlu0 %v538, 126
        %v557 = vpop.permute.xlu0 %556
        %558 = vrot.lane.b32.xlu0 %v539, 126
        %v559 = vpop.permute.xlu0 %558
        %560 = vrot.lane.b32.xlu0 %v540, 126
        %v561 = vpop.permute.xlu0 %560
        %vm562 = vcmask 1031168
        %v563 = vsel %vm562, %v557, %v559
        %v564 = vsel %vm562, %v559, %v561
        %565 = vrot.lane.b32.xlu0 %v544, 110
        %v566 = vpop.permute.xlu0 %565
        %567 = vrot.lane.b32.xlu0 %v545, 110
        %v568 = vpop.permute.xlu0 %567
        %569 = vrot.lane.b32.xlu0 %v546, 110
        %v570 = vpop.permute.xlu0 %569
        %vm571 = vcmask 900096
        %v572 = vsel %vm571, %v566, %v568
        %v573 = vsel %vm571, %v568, %v570
        %574 = vrot.lane.b32.xlu0 %v538, 109
        %v575 = vpop.permute.xlu0 %574
        %576 = vrot.lane.b32.xlu0 %v539, 109
        %v577 = vpop.permute.xlu0 %576
        %578 = vrot.lane.b32.xlu0 %v540, 109
        %v579 = vpop.permute.xlu0 %578
        %vm580 = vcmask 891904
        %v581 = vsel %vm580, %v575, %v577
        %v582 = vsel %vm580, %v577, %v579
        %583 = vrot.lane.b32.xlu0 %v544, 108
        %v584 = vpop.permute.xlu0 %583
        %585 = vrot.lane.b32.xlu0 %v545, 108
        %v586 = vpop.permute.xlu0 %585
        %587 = vrot.lane.b32.xlu0 %v546, 108
        %v588 = vpop.permute.xlu0 %587
        %vm589 = vcmask 883712
        %v590 = vsel %vm589, %v584, %v586
        %v591 = vsel %vm589, %v586, %v588
        %592 = vrot.lane.b32.xlu0 %v538, 92
        %v593 = vpop.permute.xlu0 %592
        %594 = vrot.lane.b32.xlu0 %v539, 92
        %v595 = vpop.permute.xlu0 %594
        %596 = vrot.lane.b32.xlu0 %v540, 92
        %v597 = vpop.permute.xlu0 %596
        %vm598 = vcmask 752640
        %v599 = vsel %vm598, %v593, %v595
        %v600 = vsel %vm598, %v595, %v597
        %601 = vrot.lane.b32.xlu0 %v544, 91
        %v602 = vpop.permute.xlu0 %601
        %603 = vrot.lane.b32.xlu0 %v545, 91
        %v604 = vpop.permute.xlu0 %603
        %605 = vrot.lane.b32.xlu0 %v546, 91
        %v606 = vpop.permute.xlu0 %605
        %vm607 = vcmask 744448
        %v608 = vsel %vm607, %v602, %v604
        %v609 = vsel %vm607, %v604, %v606
        %610 = vrot.lane.b32.xlu0 %v538, 90
        %v611 = vpop.permute.xlu0 %610
        %612 = vrot.lane.b32.xlu0 %v539, 90
        %v613 = vpop.permute.xlu0 %612
        %614 = vrot.lane.b32.xlu0 %v540, 90
        %v615 = vpop.permute.xlu0 %614
        %vm616 = vcmask 736256
        %v617 = vsel %vm616, %v611, %v613
        %v618 = vsel %vm616, %v613, %v615
        %vm619 = vcmask 1043456
        %v622 = vsel %vm619, %v538, %v554
        %v626 = vsel %vm619, %v539, %v555
        %v630 = vsel %vm619, %v540, %v552
        %v634 = vsel %vm619, %v563, %v572
        %v638 = vsel %vm619, %v564, %v573
        %v642 = vsel %vm619, %v561, %v570
        %v646 = vsel %vm619, %v581, %v590
        %v650 = vsel %vm619, %v582, %v591
        %v654 = vsel %vm619, %v579, %v588
        %v658 = vsel %vm619, %v599, %v608
        %v662 = vsel %vm619, %v600, %v609
        %v666 = vsel %vm619, %v597, %v606
        %669 = vset.pattern.permute.xlu0 0
        %670 = vperm.xlu0 %669, %v536
        %v671 = vpop.permute.xlu0 %670
        %674 = vset.pattern.permute.xlu0 0
        %675 = vperm.xlu0 %674, %v537
        %v676 = vpop.permute.xlu0 %675
        %v680 = vunpack.c.l.b16 %v534
        %v681 = vunpack.c.l.b16 %v535
        %v682 = vpack.c.b16 %v681, %v680
        %vm683 = vcmask 588800
        %v685 = vsel %vm683, %v682, 0
        %v688 = vsel %vm619, %v617, 0
        %v691 = vsel %vm619, %v618, 0
        %v694 = vsel %vm619, %v615, 0
        %696 = vmatprep.subr.bf16.mxu0 0
        %697 = vmatpush1.bf16.msra.mxu0 0
        %698 = vmatprep.subr.bf16.mxu0 0
        %699 = vmatpush1.bf16.msra.mxu0 0
        %700 = vmatprep.subr.bf16.mxu0 0
        %701 = vmatpush1.bf16.msra.mxu0 0
        %702 = vmatprep.subr.bf16.mxu0 %v691
        %703 = vmatpush1.bf16.msra.mxu0 %v688
        %704 = vmatprep.subr.bf16.mxu0 %v662
        %705 = vmatpush1.bf16.msra.mxu0 %v658
        %706 = vmatprep.subr.bf16.mxu0 %v650
        %707 = vmatpush1.bf16.msra.mxu0 %v646
        %708 = vmatprep.subr.bf16.mxu0 %v638
        %709 = vmatpush1.bf16.msra.mxu0 %v634
        %710 = vmatprep.subr.bf16.mxu0 %v626
        %711 = vmatpush1.bf16.msra.mxu0 %v622
        %712 = vmatprep.subr.bf16.mxu0 0
        %713 = vmatpush2.bf16.msra.mxu0 0
        %714 = vmatprep.subr.bf16.mxu0 0
        %715 = vmatpush2.bf16.msra.mxu0 0
        %716 = vmatprep.subr.bf16.mxu0 0
        %717 = vmatpush2.bf16.msra.mxu0 0
        %718 = vmatprep.subr.bf16.mxu0 0
        %719 = vmatpush2.bf16.msra.mxu0 0
        %720 = vmatprep.subr.bf16.mxu0 0
        %721 = vmatpush2.bf16.msra.mxu0 0
        %722 = vmatprep.subr.bf16.mxu0 0
        %723 = vmatpush2.bf16.msra.mxu0 0
        %724 = vmatprep.subr.bf16.mxu0 0
        %725 = vmatpush2.bf16.msra.mxu0 0
        %726 = vmatprep.subr.bf16.mxu0 0
        %727 = vmatpush2.bf16.msra.mxu0 0
        %728 = vmatprep.mubr.bf16.mxu0 0
        %729 = vmatmul.mubr.bf16.gmra.mxu0 %v685
        %v730 = vpop.f32.mrf.mxu0
        %v731 = vadd.f32 %v671, %v730
        %v732 = vpop.f32.mrf.mxu0
        %v733 = vadd.f32 %v671, %v732
        %v734 = vpop.f32.mrf.mxu0
        %v735 = vadd.f32 %v676, %v734
        %v736 = vpop.f32.mrf.mxu0
        %v737 = vadd.f32 %v676, %v736
        %738 = vdwg.mxu0
        %739 = vmatprep.subr.bf16.mxu0 0
        %740 = vmatpush1.bf16.msra.mxu0 0
        %741 = vmatprep.subr.bf16.mxu0 0
        %742 = vmatpush1.bf16.msra.mxu0 0
        %743 = vmatprep.subr.bf16.mxu0 0
        %744 = vmatpush1.bf16.msra.mxu0 0
        %745 = vmatprep.subr.bf16.mxu0 0
        %746 = vmatpush1.bf16.msra.mxu0 %v694
        %747 = vmatprep.subr.bf16.mxu0 0
        %748 = vmatpush1.bf16.msra.mxu0 %v666
        %749 = vmatprep.subr.bf16.mxu0 0
        %750 = vmatpush1.bf16.msra.mxu0 %v654
        %751 = vmatprep.subr.bf16.mxu0 0
        %752 = vmatpush1.bf16.msra.mxu0 %v642
        %753 = vmatprep.subr.bf16.mxu0 0
        %754 = vmatpush1.bf16.msra.mxu0 %v630
        %755 = vmatprep.subr.bf16.mxu0 0
        %756 = vmatpush2.bf16.msra.mxu0 0
        %757 = vmatprep.subr.bf16.mxu0 0
        %758 = vmatpush2.bf16.msra.mxu0 0
        %759 = vmatprep.subr.bf16.mxu0 0
        %760 = vmatpush2.bf16.msra.mxu0 0
        %761 = vmatprep.subr.bf16.mxu0 0
        %762 = vmatpush2.bf16.msra.mxu0 0
        %763 = vmatprep.subr.bf16.mxu0 0
        %764 = vmatpush2.bf16.msra.mxu0 0
        %765 = vmatprep.subr.bf16.mxu0 0
        %766 = vmatpush2.bf16.msra.mxu0 0
        %767 = vmatprep.subr.bf16.mxu0 0
        %768 = vmatpush2.bf16.msra.mxu0 0
        %769 = vmatprep.subr.bf16.mxu0 0
        %770 = vmatpush2.bf16.msra.mxu0 0
        %771 = vmatprep.mubr.bf16.mxu0 0
        %772 = vmatmul.mubr.bf16.gmra.mxu0 %v685
        %v773 = vpop.f32.mrf.mxu0
        %v774 = vadd.f32 %v671, %v773
        %v775 = vpop.f32.mrf.mxu0
        %v776 = vpop.f32.mrf.mxu0
        %v777 = vadd.f32 %v676, %v776
        %v778 = vpop.f32.mrf.mxu0
        %779 = vdwg.mxu0
        %v780 = vmax.f32 %v731, 0.0
        %v781 = vmax.f32 %v733, 0.0
        %v782 = vmax.f32 %v774, 0.0
        %v783 = vmax.f32 %v735, 0.0
        %v784 = vmax.f32 %v737, 0.0
        %v785 = vmax.f32 %v777, 0.0
        %v787 = vlaneseq
        %v788 = vshrl.u32 %v787, 7
        %v789 = vsub.s32 0, %v788
        %v790 = vrot.slane %v529, %v789
        %v791 = vlaneseq
        %v792 = vshrl.u32 %v791, 7
        %v793 = vsub.s32 1, %v792
        %v794 = vrot.slane %v529, %v793
        %v795 = vlaneseq
        %v796 = vshrl.u32 %v795, 7
        %v797 = vsub.s32 2, %v796
        %v798 = vrot.slane %v529, %v797
        %v802 = vmul.f32 %v780, %v790
        %v803 = vmul.f32 %v781, %v794
        %v804 = vmul.f32 %v782, %v798
        %v805 = vmul.f32 %v783, %v790
        %v806 = vmul.f32 %v784, %v794
        %v807 = vmul.f32 %v785, %v798
        %v808 = vpack.c.bf16 %v805, %v802
        %v809 = vpack.c.bf16 %v806, %v803
        %v810 = vpack.c.bf16 %v807, %v804
        %814 = vrot.lane.b32.xlu0 %v808, 19
        %v815 = vpop.permute.xlu0 %814
        %816 = vrot.lane.b32.xlu0 %v809, 19
        %v817 = vpop.permute.xlu0 %816
        %818 = vrot.lane.b32.xlu0 %v810, 19
        %v819 = vpop.permute.xlu0 %818
        %vm820 = vcmask 154624
        %v821 = vsel %vm820, %v815, %v817
        %v822 = vsel %vm820, %v817, %v819
        %vm824 = vcmask 154624
        %v827 = vsel %vm824, 0, %v815
        %vm829 = vcmask 416768
        %v831 = vsel %vm829, %v822, 0
        %v833 = vld [vmem:[%s3] sm:$0xff]
        %v834 = vld [vmem:[%s3 + $0x8] sm:$0xff]
        %v835 = vld [vmem:[%s4] sm:$0xff]
        %v836 = vld [vmem:[%s4 + $0x8] sm:$0xff]
        %839 = vrot.lane.b32.xlu0 %v827, 127
        %v840 = vpop.permute.xlu0 %839
        %841 = vrot.lane.b32.xlu0 %v821, 127
        %v842 = vpop.permute.xlu0 %841
        %843 = vrot.lane.b32.xlu0 %v831, 127
        %v844 = vpop.permute.xlu0 %843
        %v845 = vsel %vm553, %v840, %v842
        %v846 = vsel %vm553, %v842, %v844
        %850 = vrot.lane.b32.xlu0 %v827, 126
        %v851 = vpop.permute.xlu0 %850
        %852 = vrot.lane.b32.xlu0 %v821, 126
        %v853 = vpop.permute.xlu0 %852
        %854 = vrot.lane.b32.xlu0 %v831, 126
        %v855 = vpop.permute.xlu0 %854
        %v856 = vsel %vm562, %v851, %v853
        %v857 = vsel %vm562, %v853, %v855
        %861 = vrot.lane.b32.xlu0 %v827, 110
        %v862 = vpop.permute.xlu0 %861
        %863 = vrot.lane.b32.xlu0 %v821, 110
        %v864 = vpop.permute.xlu0 %863
        %865 = vrot.lane.b32.xlu0 %v831, 110
        %v866 = vpop.permute.xlu0 %865
        %v867 = vsel %vm571, %v862, %v864
        %v868 = vsel %vm571, %v864, %v866
        %872 = vrot.lane.b32.xlu0 %v827, 109
        %v873 = vpop.permute.xlu0 %872
        %874 = vrot.lane.b32.xlu0 %v821, 109
        %v875 = vpop.permute.xlu0 %874
        %876 = vrot.lane.b32.xlu0 %v831, 109
        %v877 = vpop.permute.xlu0 %876
        %v878 = vsel %vm580, %v873, %v875
        %v879 = vsel %vm580, %v875, %v877
        %883 = vrot.lane.b32.xlu0 %v827, 108
        %v884 = vpop.permute.xlu0 %883
        %885 = vrot.lane.b32.xlu0 %v821, 108
        %v886 = vpop.permute.xlu0 %885
        %887 = vrot.lane.b32.xlu0 %v831, 108
        %v888 = vpop.permute.xlu0 %887
        %v889 = vsel %vm589, %v884, %v886
        %v890 = vsel %vm589, %v886, %v888
        %894 = vrot.lane.b32.xlu0 %v827, 92
        %v895 = vpop.permute.xlu0 %894
        %896 = vrot.lane.b32.xlu0 %v821, 92
        %v897 = vpop.permute.xlu0 %896
        %898 = vrot.lane.b32.xlu0 %v831, 92
        %v899 = vpop.permute.xlu0 %898
        %v900 = vsel %vm598, %v895, %v897
        %v901 = vsel %vm598, %v897, %v899
        %905 = vrot.lane.b32.xlu0 %v827, 91
        %v906 = vpop.permute.xlu0 %905
        %907 = vrot.lane.b32.xlu0 %v821, 91
        %v908 = vpop.permute.xlu0 %907
        %909 = vrot.lane.b32.xlu0 %v831, 91
        %v910 = vpop.permute.xlu0 %909
        %v911 = vsel %vm607, %v906, %v908
        %v912 = vsel %vm607, %v908, %v910
        %916 = vrot.lane.b32.xlu0 %v827, 90
        %v917 = vpop.permute.xlu0 %916
        %918 = vrot.lane.b32.xlu0 %v821, 90
        %v919 = vpop.permute.xlu0 %918
        %920 = vrot.lane.b32.xlu0 %v831, 90
        %v921 = vpop.permute.xlu0 %920
        %v922 = vsel %vm616, %v917, %v919
        %v923 = vsel %vm616, %v919, %v921
        %928 = vset.pattern.permute.xlu0 0
        %929 = vperm.xlu0 %928, %v835
        %v930 = vpop.permute.xlu0 %929
        %933 = vset.pattern.permute.xlu0 0
        %934 = vperm.xlu0 %933, %v836
        %v935 = vpop.permute.xlu0 %934
        %v939 = vunpack.c.l.b16 %v833
        %v940 = vunpack.c.h.b16 %v833
        %v941 = vunpack.c.l.b16 %v834
        %v942 = vunpack.c.h.b16 %v834
        %v943 = vpack.c.b16 %v941, %v939
        %v944 = vpack.c.b16 %v942, %v940
        %vm946 = vcmask 130048
        %v948 = vsel %vm946, %v944, 0
        %950 = vmatprep.subr.bf16.mxu0 %v912
        %951 = vmatpush1.bf16.msra.mxu0 %v911
        %952 = vmatprep.subr.bf16.mxu0 %v901
        %953 = vmatpush1.bf16.msra.mxu0 %v900
        %954 = vmatprep.subr.bf16.mxu0 %v890
        %955 = vmatpush1.bf16.msra.mxu0 %v889
        %956 = vmatprep.subr.bf16.mxu0 %v879
        %957 = vmatpush1.bf16.msra.mxu0 %v878
        %958 = vmatprep.subr.bf16.mxu0 %v868
        %959 = vmatpush1.bf16.msra.mxu0 %v867
        %960 = vmatprep.subr.bf16.mxu0 %v857
        %961 = vmatpush1.bf16.msra.mxu0 %v856
        %962 = vmatprep.subr.bf16.mxu0 %v846
        %963 = vmatpush1.bf16.msra.mxu0 %v845
        %964 = vmatprep.subr.bf16.mxu0 %v821
        %965 = vmatpush1.bf16.msra.mxu0 %v827
        %966 = vmatprep.subr.bf16.mxu0 0
        %967 = vmatpush2.bf16.msra.mxu0 0
        %968 = vmatprep.subr.bf16.mxu0 0
        %969 = vmatpush2.bf16.msra.mxu0 0
        %970 = vmatprep.subr.bf16.mxu0 0
        %971 = vmatpush2.bf16.msra.mxu0 0
        %972 = vmatprep.subr.bf16.mxu0 0
        %973 = vmatpush2.bf16.msra.mxu0 0
        %974 = vmatprep.subr.bf16.mxu0 0
        %975 = vmatpush2.bf16.msra.mxu0 0
        %976 = vmatprep.subr.bf16.mxu0 0
        %977 = vmatpush2.bf16.msra.mxu0 0
        %978 = vmatprep.subr.bf16.mxu0 0
        %979 = vmatpush2.bf16.msra.mxu0 0
        %980 = vmatprep.subr.bf16.mxu0 %v923
        %981 = vmatpush2.bf16.msra.mxu0 %v922
        %982 = vmatprep.mubr.bf16.mxu0 %v948
        %983 = vmatmul.mubr.bf16.gmra.mxu0 %v943
        %v984 = vpop.f32.mrf.mxu0
        %v985 = vadd.f32 %v930, %v984
        %v986 = vpop.f32.mrf.mxu0
        %v987 = vadd.f32 %v930, %v986
        %v988 = vpop.f32.mrf.mxu0
        %v989 = vadd.f32 %v935, %v988
        %v990 = vpop.f32.mrf.mxu0
        %v991 = vadd.f32 %v935, %v990
        %992 = vdwg.mxu0
        %993 = vmatprep.subr.bf16.mxu0 0
        %994 = vmatpush1.bf16.msra.mxu0 %v910
        %995 = vmatprep.subr.bf16.mxu0 0
        %996 = vmatpush1.bf16.msra.mxu0 %v899
        %997 = vmatprep.subr.bf16.mxu0 0
        %998 = vmatpush1.bf16.msra.mxu0 %v888
        %999 = vmatprep.subr.bf16.mxu0 0
        %1000 = vmatpush1.bf16.msra.mxu0 %v877
        %1001 = vmatprep.subr.bf16.mxu0 0
        %1002 = vmatpush1.bf16.msra.mxu0 %v866
        %1003 = vmatprep.subr.bf16.mxu0 0
        %1004 = vmatpush1.bf16.msra.mxu0 %v855
        %1005 = vmatprep.subr.bf16.mxu0 0
        %1006 = vmatpush1.bf16.msra.mxu0 %v844
        %1007 = vmatprep.subr.bf16.mxu0 0
        %1008 = vmatpush1.bf16.msra.mxu0 %v831
        %1009 = vmatprep.subr.bf16.mxu0 0
        %1010 = vmatpush2.bf16.msra.mxu0 0
        %1011 = vmatprep.subr.bf16.mxu0 0
        %1012 = vmatpush2.bf16.msra.mxu0 0
        %1013 = vmatprep.subr.bf16.mxu0 0
        %1014 = vmatpush2.bf16.msra.mxu0 0
        %1015 = vmatprep.subr.bf16.mxu0 0
        %1016 = vmatpush2.bf16.msra.mxu0 0
        %1017 = vmatprep.subr.bf16.mxu0 0
        %1018 = vmatpush2.bf16.msra.mxu0 0
        %1019 = vmatprep.subr.bf16.mxu0 0
        %1020 = vmatpush2.bf16.msra.mxu0 0
        %1021 = vmatprep.subr.bf16.mxu0 0
        %1022 = vmatpush2.bf16.msra.mxu0 0
        %1023 = vmatprep.subr.bf16.mxu0 0
        %1024 = vmatpush2.bf16.msra.mxu0 %v921
        %1025 = vmatprep.mubr.bf16.mxu0 %v948
        %1026 = vmatmul.mubr.bf16.gmra.mxu0 %v943
        %v1027 = vpop.f32.mrf.mxu0
        %v1028 = vadd.f32 %v930, %v1027
        %v1029 = vpop.f32.mrf.mxu0
        %v1030 = vpop.f32.mrf.mxu0
        %v1031 = vadd.f32 %v935, %v1030
        %v1032 = vpop.f32.mrf.mxu0
        %1033 = vdwg.mxu0
        %v1034 = vmax.f32 %v985, 0.0
        %v1035 = vmax.f32 %v987, 0.0
        %v1036 = vmax.f32 %v1028, 0.0
        %v1037 = vmax.f32 %v989, 0.0
        %v1038 = vmax.f32 %v991, 0.0
        %v1039 = vmax.f32 %v1031, 0.0
        %v1040 = vmul.f32 %v1034, %v790
        %v1041 = vmul.f32 %v1035, %v794
        %v1042 = vmul.f32 %v1036, %v798
        %v1043 = vmul.f32 %v1037, %v790
        %v1044 = vmul.f32 %v1038, %v794
        %v1045 = vmul.f32 %v1039, %v798
        %v1046 = vpack.c.bf16 %v1043, %v1040
        %v1047 = vpack.c.bf16 %v1044, %v1041
        %v1048 = vpack.c.bf16 %v1045, %v1042
        %1052 = vrot.lane.b32.xlu0 %v1046, 19
        %v1053 = vpop.permute.xlu0 %1052
        %1054 = vrot.lane.b32.xlu0 %v1047, 19
        %v1055 = vpop.permute.xlu0 %1054
        %1056 = vrot.lane.b32.xlu0 %v1048, 19
        %v1057 = vpop.permute.xlu0 %1056
        %v1058 = vsel %vm820, %v1053, %v1055
        %v1059 = vsel %vm820, %v1055, %v1057
        %v1062 = vsel %vm824, 0, %v1053
        %v1065 = vsel %vm829, %v1059, 0
        %s1067 = scalar_lea.vmem %s3, 16
        %v1068 = vld [vmem:[%s1067] sm:$0xff]
        %v1069 = vld [vmem:[%s1067 + $0x8] sm:$0xff]
        %s1070 = scalar_lea.vmem %s4, 16
        %v1071 = vld [vmem:[%s1070] sm:$0xff]
        %v1072 = vld [vmem:[%s1070 + $0x8] sm:$0xff]
        %1075 = vrot.lane.b32.xlu0 %v1062, 127
        %v1076 = vpop.permute.xlu0 %1075
        %1077 = vrot.lane.b32.xlu0 %v1058, 127
        %v1078 = vpop.permute.xlu0 %1077
        %1079 = vrot.lane.b32.xlu0 %v1065, 127
        %v1080 = vpop.permute.xlu0 %1079
        %v1081 = vsel %vm553, %v1076, %v1078
        %v1082 = vsel %vm553, %v1078, %v1080
        %1086 = vrot.lane.b32.xlu0 %v1062, 126
        %v1087 = vpop.permute.xlu0 %1086
        %1088 = vrot.lane.b32.xlu0 %v1058, 126
        %v1089 = vpop.permute.xlu0 %1088
        %1090 = vrot.lane.b32.xlu0 %v1065, 126
        %v1091 = vpop.permute.xlu0 %1090
        %v1092 = vsel %vm562, %v1087, %v1089
        %v1093 = vsel %vm562, %v1089, %v1091
        %1097 = vrot.lane.b32.xlu0 %v1062, 110
        %v1098 = vpop.permute.xlu0 %1097
        %1099 = vrot.lane.b32.xlu0 %v1058, 110
        %v1100 = vpop.permute.xlu0 %1099
        %1101 = vrot.lane.b32.xlu0 %v1065, 110
        %v1102 = vpop.permute.xlu0 %1101
        %v1103 = vsel %vm571, %v1098, %v1100
        %v1104 = vsel %vm571, %v1100, %v1102
        %1108 = vrot.lane.b32.xlu0 %v1062, 109
        %v1109 = vpop.permute.xlu0 %1108
        %1110 = vrot.lane.b32.xlu0 %v1058, 109
        %v1111 = vpop.permute.xlu0 %1110
        %1112 = vrot.lane.b32.xlu0 %v1065, 109
        %v1113 = vpop.permute.xlu0 %1112
        %v1114 = vsel %vm580, %v1109, %v1111
        %v1115 = vsel %vm580, %v1111, %v1113
        %1119 = vrot.lane.b32.xlu0 %v1062, 108
        %v1120 = vpop.permute.xlu0 %1119
        %1121 = vrot.lane.b32.xlu0 %v1058, 108
        %v1122 = vpop.permute.xlu0 %1121
        %1123 = vrot.lane.b32.xlu0 %v1065, 108
        %v1124 = vpop.permute.xlu0 %1123
        %v1125 = vsel %vm589, %v1120, %v1122
        %v1126 = vsel %vm589, %v1122, %v1124
        %1130 = vrot.lane.b32.xlu0 %v1062, 92
        %v1131 = vpop.permute.xlu0 %1130
        %1132 = vrot.lane.b32.xlu0 %v1058, 92
        %v1133 = vpop.permute.xlu0 %1132
        %1134 = vrot.lane.b32.xlu0 %v1065, 92
        %v1135 = vpop.permute.xlu0 %1134
        %v1136 = vsel %vm598, %v1131, %v1133
        %v1137 = vsel %vm598, %v1133, %v1135
        %1141 = vrot.lane.b32.xlu0 %v1062, 91
        %v1142 = vpop.permute.xlu0 %1141
        %1143 = vrot.lane.b32.xlu0 %v1058, 91
        %v1144 = vpop.permute.xlu0 %1143
        %1145 = vrot.lane.b32.xlu0 %v1065, 91
        %v1146 = vpop.permute.xlu0 %1145
        %v1147 = vsel %vm607, %v1142, %v1144
        %v1148 = vsel %vm607, %v1144, %v1146
        %1152 = vrot.lane.b32.xlu0 %v1062, 90
        %v1153 = vpop.permute.xlu0 %1152
        %1154 = vrot.lane.b32.xlu0 %v1058, 90
        %v1155 = vpop.permute.xlu0 %1154
        %1156 = vrot.lane.b32.xlu0 %v1065, 90
        %v1157 = vpop.permute.xlu0 %1156
        %v1158 = vsel %vm616, %v1153, %v1155
        %v1159 = vsel %vm616, %v1155, %v1157
        %1164 = vset.pattern.permute.xlu0 0
        %1165 = vperm.xlu0 %1164, %v1071
        %v1166 = vpop.permute.xlu0 %1165
        %1169 = vset.pattern.permute.xlu0 0
        %1170 = vperm.xlu0 %1169, %v1072
        %v1171 = vpop.permute.xlu0 %1170
        %v1175 = vunpack.c.l.b16 %v1068
        %v1176 = vunpack.c.h.b16 %v1068
        %v1177 = vunpack.c.l.b16 %v1069
        %v1178 = vunpack.c.h.b16 %v1069
        %v1179 = vpack.c.b16 %v1177, %v1175
        %v1180 = vpack.c.b16 %v1178, %v1176
        %v1183 = vsel %vm946, %v1180, 0
        %1185 = vmatprep.subr.bf16.mxu0 %v1148
        %1186 = vmatpush1.bf16.msra.mxu0 %v1147
        %1187 = vmatprep.subr.bf16.mxu0 %v1137
        %1188 = vmatpush1.bf16.msra.mxu0 %v1136
        %1189 = vmatprep.subr.bf16.mxu0 %v1126
        %1190 = vmatpush1.bf16.msra.mxu0 %v1125
        %1191 = vmatprep.subr.bf16.mxu0 %v1115
        %1192 = vmatpush1.bf16.msra.mxu0 %v1114
        %1193 = vmatprep.subr.bf16.mxu0 %v1104
        %1194 = vmatpush1.bf16.msra.mxu0 %v1103
        %1195 = vmatprep.subr.bf16.mxu0 %v1093
        %1196 = vmatpush1.bf16.msra.mxu0 %v1092
        %1197 = vmatprep.subr.bf16.mxu0 %v1082
        %1198 = vmatpush1.bf16.msra.mxu0 %v1081
        %1199 = vmatprep.subr.bf16.mxu0 %v1058
        %1200 = vmatpush1.bf16.msra.mxu0 %v1062
        %1201 = vmatprep.subr.bf16.mxu0 0
        %1202 = vmatpush2.bf16.msra.mxu0 0
        %1203 = vmatprep.subr.bf16.mxu0 0
        %1204 = vmatpush2.bf16.msra.mxu0 0
        %1205 = vmatprep.subr.bf16.mxu0 0
        %1206 = vmatpush2.bf16.msra.mxu0 0
        %1207 = vmatprep.subr.bf16.mxu0 0
        %1208 = vmatpush2.bf16.msra.mxu0 0
        %1209 = vmatprep.subr.bf16.mxu0 0
        %1210 = vmatpush2.bf16.msra.mxu0 0
        %1211 = vmatprep.subr.bf16.mxu0 0
        %1212 = vmatpush2.bf16.msra.mxu0 0
        %1213 = vmatprep.subr.bf16.mxu0 0
        %1214 = vmatpush2.bf16.msra.mxu0 0
        %1215 = vmatprep.subr.bf16.mxu0 %v1159
        %1216 = vmatpush2.bf16.msra.mxu0 %v1158
        %1217 = vmatprep.mubr.bf16.mxu0 %v1183
        %1218 = vmatmul.mubr.bf16.gmra.mxu0 %v1179
        %v1219 = vpop.f32.mrf.mxu0
        %v1220 = vadd.f32 %v1166, %v1219
        %v1221 = vpop.f32.mrf.mxu0
        %v1222 = vadd.f32 %v1166, %v1221
        %v1223 = vpop.f32.mrf.mxu0
        %v1224 = vadd.f32 %v1171, %v1223
        %v1225 = vpop.f32.mrf.mxu0
        %v1226 = vadd.f32 %v1171, %v1225
        %1227 = vdwg.mxu0
        %1228 = vmatprep.subr.bf16.mxu0 0
        %1229 = vmatpush1.bf16.msra.mxu0 %v1146
        %1230 = vmatprep.subr.bf16.mxu0 0
        %1231 = vmatpush1.bf16.msra.mxu0 %v1135
        %1232 = vmatprep.subr.bf16.mxu0 0
        %1233 = vmatpush1.bf16.msra.mxu0 %v1124
        %1234 = vmatprep.subr.bf16.mxu0 0
        %1235 = vmatpush1.bf16.msra.mxu0 %v1113
        %1236 = vmatprep.subr.bf16.mxu0 0
        %1237 = vmatpush1.bf16.msra.mxu0 %v1102
        %1238 = vmatprep.subr.bf16.mxu0 0
        %1239 = vmatpush1.bf16.msra.mxu0 %v1091
        %1240 = vmatprep.subr.bf16.mxu0 0
        %1241 = vmatpush1.bf16.msra.mxu0 %v1080
        %1242 = vmatprep.subr.bf16.mxu0 0
        %1243 = vmatpush1.bf16.msra.mxu0 %v1065
        %1244 = vmatprep.subr.bf16.mxu0 0
        %1245 = vmatpush2.bf16.msra.mxu0 0
        %1246 = vmatprep.subr.bf16.mxu0 0
        %1247 = vmatpush2.bf16.msra.mxu0 0
        %1248 = vmatprep.subr.bf16.mxu0 0
        %1249 = vmatpush2.bf16.msra.mxu0 0
        %1250 = vmatprep.subr.bf16.mxu0 0
        %1251 = vmatpush2.bf16.msra.mxu0 0
        %1252 = vmatprep.subr.bf16.mxu0 0
        %1253 = vmatpush2.bf16.msra.mxu0 0
        %1254 = vmatprep.subr.bf16.mxu0 0
        %1255 = vmatpush2.bf16.msra.mxu0 0
        %1256 = vmatprep.subr.bf16.mxu0 0
        %1257 = vmatpush2.bf16.msra.mxu0 0
        %1258 = vmatprep.subr.bf16.mxu0 0
        %1259 = vmatpush2.bf16.msra.mxu0 %v1157
        %1260 = vmatprep.mubr.bf16.mxu0 %v1183
        %1261 = vmatmul.mubr.bf16.gmra.mxu0 %v1179
        %v1262 = vpop.f32.mrf.mxu0
        %v1263 = vadd.f32 %v1166, %v1262
        %v1264 = vpop.f32.mrf.mxu0
        %v1265 = vpop.f32.mrf.mxu0
        %v1266 = vadd.f32 %v1171, %v1265
        %v1267 = vpop.f32.mrf.mxu0
        %1268 = vdwg.mxu0
        %v1269 = vmax.f32 %v1220, 0.0
        %v1270 = vmax.f32 %v1222, 0.0
        %v1271 = vmax.f32 %v1263, 0.0
        %v1272 = vmax.f32 %v1224, 0.0
        %v1273 = vmax.f32 %v1226, 0.0
        %v1274 = vmax.f32 %v1266, 0.0
        %v1275 = vld [vmem:[#allocation7] sm:$0xff]
        %v1276 = vld [vmem:[#allocation7 + $0x8] sm:$0xff]
        %v1277 = vld [vmem:[#allocation7 + $0x10] sm:$0xff]
        %v1278 = vld [vmem:[#allocation7 + $0x18] sm:$0xff]
        %v1279 = vld [vmem:[#allocation7 + $0x20] sm:$0xff]
        %v1280 = vld [vmem:[#allocation7 + $0x28] sm:$0xff]
        %v1281 = vld [vmem:[#allocation7 + $0x30] sm:$0xff]
        %v1282 = vld [vmem:[#allocation7 + $0x38] sm:$0xff]
        %v1283 = vld [vmem:[#allocation7 + $0x40] sm:$0xff]
        %v1284 = vld [vmem:[#allocation7 + $0x48] sm:$0xff]
        %v1285 = vld [vmem:[#allocation7 + $0x50] sm:$0xff]
        %v1286 = vld [vmem:[#allocation7 + $0x58] sm:$0xff]
        %v1287 = vld [vmem:[#allocation7 + $0x60] sm:$0xff]
        %v1288 = vld [vmem:[#allocation7 + $0x68] sm:$0xff]
        %v1289 = vld [vmem:[#allocation7 + $0x70] sm:$0xff]
        %v1290 = vld [vmem:[#allocation7 + $0x78] sm:$0xff]
        %v1291 = vld [vmem:[#allocation7 + $0x80] sm:$0xff]
        %v1292 = vld [vmem:[#allocation7 + $0x88] sm:$0xff]
        %v1293 = vld [vmem:[#allocation7 + $0x90] sm:$0xff]
        %v1294 = vld [vmem:[#allocation7 + $0x98] sm:$0xff]
        %v1295 = vld [vmem:[#allocation7 + $0xa0] sm:$0xff]
        %v1296 = vld [vmem:[#allocation7 + $0xa8] sm:$0xff]
        %v1297 = vld [vmem:[#allocation7 + $0xb0] sm:$0xff]
        %v1298 = vld [vmem:[#allocation7 + $0xb8] sm:$0xff]
        %v1299 = vld [vmem:[#allocation7 + $0xc0] sm:$0xff]
        %v1300 = vld [vmem:[#allocation7 + $0xc8] sm:$0xff]
        %v1301 = vld [vmem:[#allocation7 + $0xd0] sm:$0xff]
        %v1302 = vld [vmem:[#allocation7 + $0xd8] sm:$0xff]
        %v1303 = vld [vmem:[#allocation7 + $0xe0] sm:$0xff]
        %v1304 = vld [vmem:[#allocation7 + $0xe8] sm:$0xff]
        %v1305 = vld [vmem:[#allocation7 + $0xf0] sm:$0xff]
        %v1306 = vld [vmem:[#allocation7 + $0xf8] sm:$0xff]
        %v1307 = vld [vmem:[#allocation7 + $0x100] sm:$0xff]
        %v1308 = vld [vmem:[#allocation7 + $0x108] sm:$0xff]
        %v1309 = vld [vmem:[#allocation7 + $0x110] sm:$0xff]
        %v1310 = vld [vmem:[#allocation7 + $0x118] sm:$0xff]
        %vm1311 = vcmask 261120
        %v1313 = vsel %vm1311, %v1271, 0
        %v1316 = vsel %vm1311, %v1274, 0
        %1318 = vmatprep.subr.mxu0 0.0
        %1319 = vmatpush1.msra.mxu0 %v1290
        %1320 = vmatprep.subr.mxu0 0.0
        %1321 = vmatpush1.msra.mxu0 %v1289
        %1322 = vmatprep.subr.mxu0 0.0
        %1323 = vmatpush1.msra.mxu0 %v1288
        %1324 = vmatprep.subr.mxu0 0.0
        %1325 = vmatpush1.msra.mxu0 %v1287
        %1326 = vmatprep.subr.mxu0 0.0
        %1327 = vmatpush1.msra.mxu0 %v1286
        %1328 = vmatprep.subr.mxu0 0.0
        %1329 = vmatpush1.msra.mxu0 %v1285
        %1330 = vmatprep.subr.mxu0 0.0
        %1331 = vmatpush1.msra.mxu0 %v1284
        %1332 = vmatprep.subr.mxu0 0.0
        %1333 = vmatpush1.msra.mxu0 %v1283
        %1334 = vmatprep.subr.mxu0 0.0
        %1335 = vmatpush1.msra.mxu0 %v1282
        %1336 = vmatprep.subr.mxu0 0.0
        %1337 = vmatpush1.msra.mxu0 %v1281
        %1338 = vmatprep.subr.mxu0 0.0
        %1339 = vmatpush1.msra.mxu0 %v1280
        %1340 = vmatprep.subr.mxu0 0.0
        %1341 = vmatpush1.msra.mxu0 %v1279
        %1342 = vmatprep.subr.mxu0 0.0
        %1343 = vmatpush1.msra.mxu0 %v1278
        %1344 = vmatprep.subr.mxu0 0.0
        %1345 = vmatpush1.msra.mxu0 %v1277
        %1346 = vmatprep.subr.mxu0 0.0
        %1347 = vmatpush1.msra.mxu0 %v1276
        %1348 = vmatprep.subr.mxu0 0.0
        %1349 = vmatpush1.msra.mxu0 %v1275
        %1350 = vmatprep.subr.mxu0 0.0
        %1351 = vmatpush2.msra.mxu0 %v1306
        %1352 = vmatprep.subr.mxu0 0.0
        %1353 = vmatpush2.msra.mxu0 %v1305
        %1354 = vmatprep.subr.mxu0 0.0
        %1355 = vmatpush2.msra.mxu0 %v1304
        %1356 = vmatprep.subr.mxu0 0.0
        %1357 = vmatpush2.msra.mxu0 %v1303
        %1358 = vmatprep.subr.mxu0 0.0
        %1359 = vmatpush2.msra.mxu0 %v1302
        %1360 = vmatprep.subr.mxu0 0.0
        %1361 = vmatpush2.msra.mxu0 %v1301
        %1362 = vmatprep.subr.mxu0 0.0
        %1363 = vmatpush2.msra.mxu0 %v1300
        %1364 = vmatprep.subr.mxu0 0.0
        %1365 = vmatpush2.msra.mxu0 %v1299
        %1366 = vmatprep.subr.mxu0 0.0
        %1367 = vmatpush2.msra.mxu0 %v1298
        %1368 = vmatprep.subr.mxu0 0.0
        %1369 = vmatpush2.msra.mxu0 %v1297
        %1370 = vmatprep.subr.mxu0 0.0
        %1371 = vmatpush2.msra.mxu0 %v1296
        %1372 = vmatprep.subr.mxu0 0.0
        %1373 = vmatpush2.msra.mxu0 %v1295
        %1374 = vmatprep.subr.mxu0 0.0
        %1375 = vmatpush2.msra.mxu0 %v1294
        %1376 = vmatprep.subr.mxu0 0.0
        %1377 = vmatpush2.msra.mxu0 %v1293
        %1378 = vmatprep.subr.mxu0 0.0
        %1379 = vmatpush2.msra.mxu0 %v1292
        %1380 = vmatprep.subr.mxu0 0.0
        %1381 = vmatpush2.msra.mxu0 %v1291
        %1382 = vmatprep.mubr.f32.mxu0 %v1270
        %1383 = vmatmul.mubr.f32.gmra.mxu0 %v1269
        %v1384 = vpop.f32.mrf.mxu0
        %v1385 = vadd.f32 0.0, %v1384
        %v1386 = vpop.f32.mrf.mxu0
        %1387 = vmatprep.mubr.f32.mxu0 %v1273
        %1388 = vmatmul.mubr.f32.gmra.mxu0 %v1272
        %v1389 = vpop.f32.mrf.mxu0
        %v1390 = vadd.f32 0.0, %v1389
        %v1391 = vpop.f32.mrf.mxu0
        %1392 = vdwg.mxu0
        %1393 = vmatprep.subr.mxu0 0.0
        %1394 = vmatpush1.msra.mxu0 0.0
        %1395 = vmatprep.subr.mxu0 0.0
        %1396 = vmatpush1.msra.mxu0 0.0
        %1397 = vmatprep.subr.mxu0 0.0
        %1398 = vmatpush1.msra.mxu0 0.0
        %1399 = vmatprep.subr.mxu0 0.0
        %1400 = vmatpush1.msra.mxu0 0.0
        %1401 = vmatprep.subr.mxu0 0.0
        %1402 = vmatpush1.msra.mxu0 0.0
        %1403 = vmatprep.subr.mxu0 0.0
        %1404 = vmatpush1.msra.mxu0 0.0
        %1405 = vmatprep.subr.mxu0 0.0
        %1406 = vmatpush1.msra.mxu0 0.0
        %1407 = vmatprep.subr.mxu0 0.0
        %1408 = vmatpush1.msra.mxu0 0.0
        %1409 = vmatprep.subr.mxu0 0.0
        %1410 = vmatpush1.msra.mxu0 0.0
        %1411 = vmatprep.subr.mxu0 0.0
        %1412 = vmatpush1.msra.mxu0 0.0
        %1413 = vmatprep.subr.mxu0 0.0
        %1414 = vmatpush1.msra.mxu0 0.0
        %1415 = vmatprep.subr.mxu0 0.0
        %1416 = vmatpush1.msra.mxu0 0.0
        %1417 = vmatprep.subr.mxu0 0.0
        %1418 = vmatpush1.msra.mxu0 %v1310
        %1419 = vmatprep.subr.mxu0 0.0
        %1420 = vmatpush1.msra.mxu0 %v1309
        %1421 = vmatprep.subr.mxu0 0.0
        %1422 = vmatpush1.msra.mxu0 %v1308
        %1423 = vmatprep.subr.mxu0 0.0
        %1424 = vmatpush1.msra.mxu0 %v1307
        %1425 = vmatprep.subr.mxu0 0.0
        %1426 = vmatpush2.msra.mxu0 0.0
        %1427 = vmatprep.subr.mxu0 0.0
        %1428 = vmatpush2.msra.mxu0 0.0
        %1429 = vmatprep.subr.mxu0 0.0
        %1430 = vmatpush2.msra.mxu0 0.0
        %1431 = vmatprep.subr.mxu0 0.0
        %1432 = vmatpush2.msra.mxu0 0.0
        %1433 = vmatprep.subr.mxu0 0.0
        %1434 = vmatpush2.msra.mxu0 0.0
        %1435 = vmatprep.subr.mxu0 0.0
        %1436 = vmatpush2.msra.mxu0 0.0
        %1437 = vmatprep.subr.mxu0 0.0
        %1438 = vmatpush2.msra.mxu0 0.0
        %1439 = vmatprep.subr.mxu0 0.0
        %1440 = vmatpush2.msra.mxu0 0.0
        %1441 = vmatprep.subr.mxu0 0.0
        %1442 = vmatpush2.msra.mxu0 0.0
        %1443 = vmatprep.subr.mxu0 0.0
        %1444 = vmatpush2.msra.mxu0 0.0
        %1445 = vmatprep.subr.mxu0 0.0
        %1446 = vmatpush2.msra.mxu0 0.0
        %1447 = vmatprep.subr.mxu0 0.0
        %1448 = vmatpush2.msra.mxu0 0.0
        %1449 = vmatprep.subr.mxu0 0.0
        %1450 = vmatpush2.msra.mxu0 0.0
        %1451 = vmatprep.subr.mxu0 0.0
        %1452 = vmatpush2.msra.mxu0 0.0
        %1453 = vmatprep.subr.mxu0 0.0
        %1454 = vmatpush2.msra.mxu0 0.0
        %1455 = vmatprep.subr.mxu0 0.0
        %1456 = vmatpush2.msra.mxu0 0.0
        %1457 = vmatprep.mubr.f32.mxu0 0.0
        %1458 = vmatmul.mubr.f32.gmra.mxu0 %v1313
        %v1459 = vpop.f32.mrf.mxu0
        %v1460 = vadd.f32 %v1385, %v1459
        %v1461 = vpop.f32.mrf.mxu0
        %1462 = vmatprep.mubr.f32.mxu0 0.0
        %1463 = vmatmul.mubr.f32.gmra.mxu0 %v1316
        %v1464 = vpop.f32.mrf.mxu0
        %v1465 = vadd.f32 %v1390, %v1464
        %v1466 = vpop.f32.mrf.mxu0
        %1467 = vdwg.mxu0
        %s1468 = scalar_lea.vmem %s3, 32
        %v1469 = vld [vmem:[%s1468] sm:$0xff]
        %v1470 = vld [vmem:[%s1468 + $0x8] sm:$0xff]
        %s1471 = scalar_lea.vmem %s4, 32
        %v1472 = vld [vmem:[%s1471] sm:$0xff]
        %v1473 = vld [vmem:[%s1471 + $0x8] sm:$0xff]
        %v1474 = vpack.c.bf16 %v1465, %v1460
        %1476 = vrot.lane.b32.xlu0 %v1474, 127
        %v1477 = vpop.permute.xlu0 %1476
        %1479 = vrot.lane.b32.xlu0 %v1474, 126
        %v1480 = vpop.permute.xlu0 %1479
        %1482 = vrot.lane.b32.xlu0 %v1474, 118
        %v1483 = vpop.permute.xlu0 %1482
        %1485 = vrot.lane.b32.xlu0 %v1474, 117
        %v1486 = vpop.permute.xlu0 %1485
        %1488 = vrot.lane.b32.xlu0 %v1474, 116
        %v1489 = vpop.permute.xlu0 %1488
        %1491 = vrot.lane.b32.xlu0 %v1474, 108
        %v1492 = vpop.permute.xlu0 %1491
        %1494 = vrot.lane.b32.xlu0 %v1474, 107
        %v1495 = vpop.permute.xlu0 %1494
        %1497 = vrot.lane.b32.xlu0 %v1474, 106
        %v1498 = vpop.permute.xlu0 %1497
        %1501 = vset.pattern.permute.xlu0 0
        %1502 = vperm.xlu0 %1501, %v1472
        %v1503 = vpop.permute.xlu0 %1502
        %1506 = vset.pattern.permute.xlu0 0
        %1507 = vperm.xlu0 %1506, %v1473
        %v1508 = vpop.permute.xlu0 %1507
        %v1512 = vunpack.c.l.b16 %v1469
        %v1513 = vunpack.c.h.b16 %v1469
        %v1514 = vunpack.c.l.b16 %v1470
        %v1515 = vunpack.c.h.b16 %v1470
        %v1516 = vpack.c.b16 %v1514, %v1512
        %v1517 = vpack.c.b16 %v1515, %v1513
        %v1520 = vsel %vm946, %v1517, 0
        %1522 = vmatprep.subr.bf16.mxu0 0
        %1523 = vmatpush1.bf16.msra.mxu0 %v1495
        %1524 = vmatprep.subr.bf16.mxu0 0
        %1525 = vmatpush1.bf16.msra.mxu0 %v1492
        %1526 = vmatprep.subr.bf16.mxu0 0
        %1527 = vmatpush1.bf16.msra.mxu0 %v1489
        %1528 = vmatprep.subr.bf16.mxu0 0
        %1529 = vmatpush1.bf16.msra.mxu0 %v1486
        %1530 = vmatprep.subr.bf16.mxu0 0
        %1531 = vmatpush1.bf16.msra.mxu0 %v1483
        %1532 = vmatprep.subr.bf16.mxu0 0
        %1533 = vmatpush1.bf16.msra.mxu0 %v1480
        %1534 = vmatprep.subr.bf16.mxu0 0
        %1535 = vmatpush1.bf16.msra.mxu0 %v1477
        %1536 = vmatprep.subr.bf16.mxu0 0
        %1537 = vmatpush1.bf16.msra.mxu0 %v1474
        %1538 = vmatprep.subr.bf16.mxu0 0
        %1539 = vmatpush2.bf16.msra.mxu0 0
        %1540 = vmatprep.subr.bf16.mxu0 0
        %1541 = vmatpush2.bf16.msra.mxu0 0
        %1542 = vmatprep.subr.bf16.mxu0 0
        %1543 = vmatpush2.bf16.msra.mxu0 0
        %1544 = vmatprep.subr.bf16.mxu0 0
        %1545 = vmatpush2.bf16.msra.mxu0 0
        %1546 = vmatprep.subr.bf16.mxu0 0
        %1547 = vmatpush2.bf16.msra.mxu0 0
        %1548 = vmatprep.subr.bf16.mxu0 0
        %1549 = vmatpush2.bf16.msra.mxu0 0
        %1550 = vmatprep.subr.bf16.mxu0 0
        %1551 = vmatpush2.bf16.msra.mxu0 0
        %1552 = vmatprep.subr.bf16.mxu0 0
        %1553 = vmatpush2.bf16.msra.mxu0 %v1498
        %1554 = vmatprep.mubr.bf16.mxu0 %v1520
        %1555 = vmatmul.mubr.bf16.gmra.mxu0 %v1516
        %v1556 = vpop.f32.mrf.mxu0
        %v1557 = vadd.f32 %v1503, %v1556
        %v1558 = vpop.f32.mrf.mxu0
        %v1559 = vpop.f32.mrf.mxu0
        %v1560 = vadd.f32 %v1508, %v1559
        %v1561 = vpop.f32.mrf.mxu0
        %1562 = vdwg.mxu0
        %v1563 = vmax.f32 %v1557, 0.0
        %v1564 = vmax.f32 %v1560, 0.0
        %v1566 = vlaneseq
        %v1567 = vshrl.u32 %v1566, 7
        %v1568 = vsub.s32 0, %v1567
        %v1569 = vrot.slane %v530, %v1568
        %v1571 = vmul.f32 %v1563, %v1569
        %v1572 = vmul.f32 %v1564, %v1569
        %v1573 = vpack.c.bf16 %v1572, %v1571
        %1575 = vrot.lane.b32.xlu0 %v1573, 11
        %v1576 = vpop.permute.xlu0 %1575
        %vm1577 = vcmask 89088
        %v1579 = vsel %vm1577, 0, %v1576
        %vm1580 = vcmask 744448
        %v1581 = vsel %vm1580, %v1579, 0
        %s1583 = scalar_lea.vmem %s3, 48
        %v1584 = vld [vmem:[%s1583] sm:$0xff]
        %v1585 = vld [vmem:[%s1583 + $0x8] sm:$0xff]
        %s1586 = scalar_lea.vmem %s4, 48
        %v1587 = vld [vmem:[%s1586] sm:$0xff]
        %v1588 = vld [vmem:[%s1586 + $0x8] sm:$0xff]
        %1590 = vrot.lane.b32.xlu0 %v1581, 127
        %v1591 = vpop.permute.xlu0 %1590
        %1593 = vrot.lane.b32.xlu0 %v1581, 126
        %v1594 = vpop.permute.xlu0 %1593
        %1596 = vrot.lane.b32.xlu0 %v1581, 118
        %v1597 = vpop.permute.xlu0 %1596
        %1599 = vrot.lane.b32.xlu0 %v1581, 117
        %v1600 = vpop.permute.xlu0 %1599
        %1602 = vrot.lane.b32.xlu0 %v1581, 116
        %v1603 = vpop.permute.xlu0 %1602
        %1605 = vrot.lane.b32.xlu0 %v1581, 108
        %v1606 = vpop.permute.xlu0 %1605
        %1608 = vrot.lane.b32.xlu0 %v1581, 107
        %v1609 = vpop.permute.xlu0 %1608
        %1611 = vrot.lane.b32.xlu0 %v1581, 106
        %v1612 = vpop.permute.xlu0 %1611
        %1615 = vset.pattern.permute.xlu0 0
        %1616 = vperm.xlu0 %1615, %v1587
        %v1617 = vpop.permute.xlu0 %1616
        %1620 = vset.pattern.permute.xlu0 0
        %1621 = vperm.xlu0 %1620, %v1588
        %v1622 = vpop.permute.xlu0 %1621
        %v1626 = vunpack.c.l.b16 %v1584
        %v1627 = vunpack.c.h.b16 %v1584
        %v1628 = vunpack.c.l.b16 %v1585
        %v1629 = vunpack.c.h.b16 %v1585
        %v1630 = vpack.c.b16 %v1628, %v1626
        %v1631 = vpack.c.b16 %v1629, %v1627
        %v1634 = vsel %vm946, %v1631, 0
        %1636 = vmatprep.subr.bf16.mxu0 0
        %1637 = vmatpush1.bf16.msra.mxu0 %v1609
        %1638 = vmatprep.subr.bf16.mxu0 0
        %1639 = vmatpush1.bf16.msra.mxu0 %v1606
        %1640 = vmatprep.subr.bf16.mxu0 0
        %1641 = vmatpush1.bf16.msra.mxu0 %v1603
        %1642 = vmatprep.subr.bf16.mxu0 0
        %1643 = vmatpush1.bf16.msra.mxu0 %v1600
        %1644 = vmatprep.subr.bf16.mxu0 0
        %1645 = vmatpush1.bf16.msra.mxu0 %v1597
        %1646 = vmatprep.subr.bf16.mxu0 0
        %1647 = vmatpush1.bf16.msra.mxu0 %v1594
        %1648 = vmatprep.subr.bf16.mxu0 0
        %1649 = vmatpush1.bf16.msra.mxu0 %v1591
        %1650 = vmatprep.subr.bf16.mxu0 0
        %1651 = vmatpush1.bf16.msra.mxu0 %v1581
        %1652 = vmatprep.subr.bf16.mxu0 0
        %1653 = vmatpush2.bf16.msra.mxu0 0
        %1654 = vmatprep.subr.bf16.mxu0 0
        %1655 = vmatpush2.bf16.msra.mxu0 0
        %1656 = vmatprep.subr.bf16.mxu0 0
        %1657 = vmatpush2.bf16.msra.mxu0 0
        %1658 = vmatprep.subr.bf16.mxu0 0
        %1659 = vmatpush2.bf16.msra.mxu0 0
        %1660 = vmatprep.subr.bf16.mxu0 0
        %1661 = vmatpush2.bf16.msra.mxu0 0
        %1662 = vmatprep.subr.bf16.mxu0 0
        %1663 = vmatpush2.bf16.msra.mxu0 0
        %1664 = vmatprep.subr.bf16.mxu0 0
        %1665 = vmatpush2.bf16.msra.mxu0 0
        %1666 = vmatprep.subr.bf16.mxu0 0
        %1667 = vmatpush2.bf16.msra.mxu0 %v1612
        %1668 = vmatprep.mubr.bf16.mxu0 %v1634
        %1669 = vmatmul.mubr.bf16.gmra.mxu0 %v1630
        %v1670 = vpop.f32.mrf.mxu0
        %v1671 = vadd.f32 %v1617, %v1670
        %v1672 = vpop.f32.mrf.mxu0
        %v1673 = vpop.f32.mrf.mxu0
        %v1674 = vadd.f32 %v1622, %v1673
        %v1675 = vpop.f32.mrf.mxu0
        %1676 = vdwg.mxu0
        %v1677 = vmul.f32 %v1671, %v1569
        %v1678 = vmul.f32 %v1674, %v1569
        %1681 = vrot.lane.b32.xlu0 %v1677, 11
        %v1682 = vpop.permute.xlu0 %1681
        %1683 = vrot.lane.b32.xlu0 %v1678, 11
        %v1684 = vpop.permute.xlu0 %1683
        %v1687 = vsel %vm1577, 0.0, %v1682
        %v1688 = vsel %vm1577, 0.0, %v1684
        %v1689 = vsel %vm1580, %v1687, 0.0
        %v1690 = vsel %vm1580, %v1688, 0.0
        %v1691 = vadd.f32 %v1460, %v1689
        %v1692 = vadd.f32 %v1465, %v1690
        %s1693 = scalar_lea.vmem %s3, 64
        %v1694 = vld [vmem:[%s1693] sm:$0xff]
        %v1695 = vld [vmem:[%s1693 + $0x8] sm:$0xff]
        %s1696 = scalar_lea.vmem %s4, 64
        %v1697 = vld [vmem:[%s1696] sm:$0xff]
        %v1698 = vld [vmem:[%s1696 + $0x8] sm:$0xff]
        %v1699 = vpack.c.bf16 %v1692, %v1691
        %1701 = vrot.lane.b32.xlu0 %v1699, 127
        %v1702 = vpop.permute.xlu0 %1701
        %1704 = vrot.lane.b32.xlu0 %v1699, 126
        %v1705 = vpop.permute.xlu0 %1704
        %1707 = vrot.lane.b32.xlu0 %v1699, 118
        %v1708 = vpop.permute.xlu0 %1707
        %1710 = vrot.lane.b32.xlu0 %v1699, 117
        %v1711 = vpop.permute.xlu0 %1710
        %1713 = vrot.lane.b32.xlu0 %v1699, 116
        %v1714 = vpop.permute.xlu0 %1713
        %1716 = vrot.lane.b32.xlu0 %v1699, 108
        %v1717 = vpop.permute.xlu0 %1716
        %1719 = vrot.lane.b32.xlu0 %v1699, 107
        %v1720 = vpop.permute.xlu0 %1719
        %1722 = vrot.lane.b32.xlu0 %v1699, 106
        %v1723 = vpop.permute.xlu0 %1722
        %1726 = vset.pattern.permute.xlu0 0
        %1727 = vperm.xlu0 %1726, %v1697
        %v1728 = vpop.permute.xlu0 %1727
        %1731 = vset.pattern.permute.xlu0 0
        %1732 = vperm.xlu0 %1731, %v1698
        %v1733 = vpop.permute.xlu0 %1732
        %v1737 = vunpack.c.l.b16 %v1694
        %v1738 = vunpack.c.h.b16 %v1694
        %v1739 = vunpack.c.l.b16 %v1695
        %v1740 = vunpack.c.h.b16 %v1695
        %v1741 = vpack.c.b16 %v1739, %v1737
        %v1742 = vpack.c.b16 %v1740, %v1738
        %v1745 = vsel %vm946, %v1742, 0
        %1747 = vmatprep.subr.bf16.mxu0 0
        %1748 = vmatpush1.bf16.msra.mxu0 %v1720
        %1749 = vmatprep.subr.bf16.mxu0 0
        %1750 = vmatpush1.bf16.msra.mxu0 %v1717
        %1751 = vmatprep.subr.bf16.mxu0 0
        %1752 = vmatpush1.bf16.msra.mxu0 %v1714
        %1753 = vmatprep.subr.bf16.mxu0 0
        %1754 = vmatpush1.bf16.msra.mxu0 %v1711
        %1755 = vmatprep.subr.bf16.mxu0 0
        %1756 = vmatpush1.bf16.msra.mxu0 %v1708
        %1757 = vmatprep.subr.bf16.mxu0 0
        %1758 = vmatpush1.bf16.msra.mxu0 %v1705
        %1759 = vmatprep.subr.bf16.mxu0 0
        %1760 = vmatpush1.bf16.msra.mxu0 %v1702
        %1761 = vmatprep.subr.bf16.mxu0 0
        %1762 = vmatpush1.bf16.msra.mxu0 %v1699
        %1763 = vmatprep.subr.bf16.mxu0 0
        %1764 = vmatpush2.bf16.msra.mxu0 0
        %1765 = vmatprep.subr.bf16.mxu0 0
        %1766 = vmatpush2.bf16.msra.mxu0 0
        %1767 = vmatprep.subr.bf16.mxu0 0
        %1768 = vmatpush2.bf16.msra.mxu0 0
        %1769 = vmatprep.subr.bf16.mxu0 0
        %1770 = vmatpush2.bf16.msra.mxu0 0
        %1771 = vmatprep.subr.bf16.mxu0 0
        %1772 = vmatpush2.bf16.msra.mxu0 0
        %1773 = vmatprep.subr.bf16.mxu0 0
        %1774 = vmatpush2.bf16.msra.mxu0 0
        %1775 = vmatprep.subr.bf16.mxu0 0
        %1776 = vmatpush2.bf16.msra.mxu0 0
        %1777 = vmatprep.subr.bf16.mxu0 0
        %1778 = vmatpush2.bf16.msra.mxu0 %v1723
        %1779 = vmatprep.mubr.bf16.mxu0 %v1745
        %1780 = vmatmul.mubr.bf16.gmra.mxu0 %v1741
        %v1781 = vpop.f32.mrf.mxu0
        %v1782 = vadd.f32 %v1728, %v1781
        %v1783 = vpop.f32.mrf.mxu0
        %v1784 = vpop.f32.mrf.mxu0
        %v1785 = vadd.f32 %v1733, %v1784
        %v1786 = vpop.f32.mrf.mxu0
        %1787 = vdwg.mxu0
        %v1788 = vmax.f32 %v1782, 0.0
        %v1789 = vmax.f32 %v1785, 0.0
        %v1790 = vmul.f32 %v1788, %v1569
        %v1791 = vmul.f32 %v1789, %v1569
        %v1792 = vpack.c.bf16 %v1791, %v1790
        %1794 = vrot.lane.b32.xlu0 %v1792, 11
        %v1795 = vpop.permute.xlu0 %1794
        %v1797 = vsel %vm1577, 0, %v1795
        %v1798 = vsel %vm1580, %v1797, 0
        %s1800 = scalar_lea.vmem %s3, 80
        %v1801 = vld [vmem:[%s1800] sm:$0xff]
        %v1802 = vld [vmem:[%s1800 + $0x8] sm:$0xff]
        %s1803 = scalar_lea.vmem %s4, 80
        %v1804 = vld [vmem:[%s1803] sm:$0xff]
        %v1805 = vld [vmem:[%s1803 + $0x8] sm:$0xff]
        %1807 = vrot.lane.b32.xlu0 %v1798, 127
        %v1808 = vpop.permute.xlu0 %1807
        %1810 = vrot.lane.b32.xlu0 %v1798, 126
        %v1811 = vpop.permute.xlu0 %1810
        %1813 = vrot.lane.b32.xlu0 %v1798, 118
        %v1814 = vpop.permute.xlu0 %1813
        %1816 = vrot.lane.b32.xlu0 %v1798, 117
        %v1817 = vpop.permute.xlu0 %1816
        %1819 = vrot.lane.b32.xlu0 %v1798, 116
        %v1820 = vpop.permute.xlu0 %1819
        %1822 = vrot.lane.b32.xlu0 %v1798, 108
        %v1823 = vpop.permute.xlu0 %1822
        %1825 = vrot.lane.b32.xlu0 %v1798, 107
        %v1826 = vpop.permute.xlu0 %1825
        %1828 = vrot.lane.b32.xlu0 %v1798, 106
        %v1829 = vpop.permute.xlu0 %1828
        %1832 = vset.pattern.permute.xlu0 0
        %1833 = vperm.xlu0 %1832, %v1804
        %v1834 = vpop.permute.xlu0 %1833
        %1837 = vset.pattern.permute.xlu0 0
        %1838 = vperm.xlu0 %1837, %v1805
        %v1839 = vpop.permute.xlu0 %1838
        %v1843 = vunpack.c.l.b16 %v1801
        %v1844 = vunpack.c.h.b16 %v1801
        %v1845 = vunpack.c.l.b16 %v1802
        %v1846 = vunpack.c.h.b16 %v1802
        %v1847 = vpack.c.b16 %v1845, %v1843
        %v1848 = vpack.c.b16 %v1846, %v1844
        %v1851 = vsel %vm946, %v1848, 0
        %1853 = vmatprep.subr.bf16.mxu0 0
        %1854 = vmatpush1.bf16.msra.mxu0 %v1826
        %1855 = vmatprep.subr.bf16.mxu0 0
        %1856 = vmatpush1.bf16.msra.mxu0 %v1823
        %1857 = vmatprep.subr.bf16.mxu0 0
        %1858 = vmatpush1.bf16.msra.mxu0 %v1820
        %1859 = vmatprep.subr.bf16.mxu0 0
        %1860 = vmatpush1.bf16.msra.mxu0 %v1817
        %1861 = vmatprep.subr.bf16.mxu0 0
        %1862 = vmatpush1.bf16.msra.mxu0 %v1814
        %1863 = vmatprep.subr.bf16.mxu0 0
        %1864 = vmatpush1.bf16.msra.mxu0 %v1811
        %1865 = vmatprep.subr.bf16.mxu0 0
        %1866 = vmatpush1.bf16.msra.mxu0 %v1808
        %1867 = vmatprep.subr.bf16.mxu0 0
        %1868 = vmatpush1.bf16.msra.mxu0 %v1798
        %1869 = vmatprep.subr.bf16.mxu0 0
        %1870 = vmatpush2.bf16.msra.mxu0 0
        %1871 = vmatprep.subr.bf16.mxu0 0
        %1872 = vmatpush2.bf16.msra.mxu0 0
        %1873 = vmatprep.subr.bf16.mxu0 0
        %1874 = vmatpush2.bf16.msra.mxu0 0
        %1875 = vmatprep.subr.bf16.mxu0 0
        %1876 = vmatpush2.bf16.msra.mxu0 0
        %1877 = vmatprep.subr.bf16.mxu0 0
        %1878 = vmatpush2.bf16.msra.mxu0 0
        %1879 = vmatprep.subr.bf16.mxu0 0
        %1880 = vmatpush2.bf16.msra.mxu0 0
        %1881 = vmatprep.subr.bf16.mxu0 0
        %1882 = vmatpush2.bf16.msra.mxu0 0
        %1883 = vmatprep.subr.bf16.mxu0 0
        %1884 = vmatpush2.bf16.msra.mxu0 %v1829
        %1885 = vmatprep.mubr.bf16.mxu0 %v1851
        %1886 = vmatmul.mubr.bf16.gmra.mxu0 %v1847
        %v1887 = vpop.f32.mrf.mxu0
        %v1888 = vadd.f32 %v1834, %v1887
        %v1889 = vpop.f32.mrf.mxu0
        %v1890 = vpop.f32.mrf.mxu0
        %v1891 = vadd.f32 %v1839, %v1890
        %v1892 = vpop.f32.mrf.mxu0
        %1893 = vdwg.mxu0
        %v1894 = vmul.f32 %v1888, %v1569
        %v1895 = vmul.f32 %v1891, %v1569
        %1898 = vrot.lane.b32.xlu0 %v1894, 11
        %v1899 = vpop.permute.xlu0 %1898
        %1900 = vrot.lane.b32.xlu0 %v1895, 11
        %v1901 = vpop.permute.xlu0 %1900
        %v1904 = vsel %vm1577, 0.0, %v1899
        %v1905 = vsel %vm1577, 0.0, %v1901
        %v1906 = vsel %vm1580, %v1904, 0.0
        %v1907 = vsel %vm1580, %v1905, 0.0
        %v1908 = vadd.f32 %v1691, %v1906
        %v1909 = vadd.f32 %v1692, %v1907
        %vm1910 = vcmask 834560
        %1911 = vst.msk [vmem:[%s508] sm:$0xff] %vm1910, %v1908
        %1912 = vst.msk [vmem:[%s508 + $0x8] sm:$0xff] %vm1910, %v1909
        %v1913 = vpack.c.bf16 %v1909, %v1908
        %v1914 = vld [vmem:[%s6] sm:$0xff]
        %v1915 = vld [vmem:[%s6 + $0x8] sm:$0xff]
        %1917 = vset.pattern.permute.xlu0 0
        %1918 = vperm.xlu0 %1917, %v1914
        %v1919 = vpop.permute.xlu0 %1918
        %1922 = vset.pattern.permute.xlu0 0
        %1923 = vperm.xlu0 %1922, %v1915
        %v1924 = vpop.permute.xlu0 %1923
        %1927 = vrot.lane.b32.xlu0 %v1913, 127
        %v1928 = vpop.permute.xlu0 %1927
        %1930 = vrot.lane.b32.xlu0 %v1913, 118
        %v1931 = vpop.permute.xlu0 %1930
        %1933 = vrot.lane.b32.xlu0 %v1913, 117
        %v1934 = vpop.permute.xlu0 %1933
        %v1936 = vld [vmem:[#allocation5] sm:$0xf]
        %v1937 = vld [vmem:[#allocation5 + $0x4] sm:$0xf]
        %v1940 = vunpack.c.l.b16 %v1936
        %v1941 = vunpack.c.l.b16 %v1937
        %v1942 = vpack.c.b16 %v1941, %v1940
        %vm1943 = vcmask 523264
        %v1945 = vsel %vm1943, %v1942, 0
        %1947 = vmatprep.subr.bf16.mxu0 0
        %1948 = vmatpush1.bf16.msra.mxu0 0
        %1949 = vmatprep.subr.bf16.mxu0 0
        %1950 = vmatpush1.bf16.msra.mxu0 0
        %1951 = vmatprep.subr.bf16.mxu0 0
        %1952 = vmatpush1.bf16.msra.mxu0 0
        %1953 = vmatprep.subr.bf16.mxu0 0
        %1954 = vmatpush1.bf16.msra.mxu0 0
        %1955 = vmatprep.subr.bf16.mxu0 0
        %1956 = vmatpush1.bf16.msra.mxu0 %v1934
        %1957 = vmatprep.subr.bf16.mxu0 0
        %1958 = vmatpush1.bf16.msra.mxu0 %v1931
        %1959 = vmatprep.subr.bf16.mxu0 0
        %1960 = vmatpush1.bf16.msra.mxu0 %v1928
        %1961 = vmatprep.subr.bf16.mxu0 0
        %1962 = vmatpush1.bf16.msra.mxu0 %v1913
        %1963 = vmatprep.subr.bf16.mxu0 0
        %1964 = vmatpush2.bf16.msra.mxu0 0
        %1965 = vmatprep.subr.bf16.mxu0 0
        %1966 = vmatpush2.bf16.msra.mxu0 0
        %1967 = vmatprep.subr.bf16.mxu0 0
        %1968 = vmatpush2.bf16.msra.mxu0 0
        %1969 = vmatprep.subr.bf16.mxu0 0
        %1970 = vmatpush2.bf16.msra.mxu0 0
        %1971 = vmatprep.subr.bf16.mxu0 0
        %1972 = vmatpush2.bf16.msra.mxu0 0
        %1973 = vmatprep.subr.bf16.mxu0 0
        %1974 = vmatpush2.bf16.msra.mxu0 0
        %1975 = vmatprep.subr.bf16.mxu0 0
        %1976 = vmatpush2.bf16.msra.mxu0 0
        %1977 = vmatprep.subr.bf16.mxu0 0
        %1978 = vmatpush2.bf16.msra.mxu0 0
        %1979 = vmatprep.mubr.bf16.mxu0 0
        %1980 = vmatmul.mubr.bf16.gmra.mxu0 %v1945
        %v1981 = vpop.f32.mrf.mxu0
        %v1982 = vadd.f32 %v1919, %v1981
        %v1983 = vpop.f32.mrf.mxu0
        %v1984 = vpop.f32.mrf.mxu0
        %v1985 = vadd.f32 %v1924, %v1984
        %v1986 = vpop.f32.mrf.mxu0
        %1987 = vdwg.mxu0
        %v1988 = vmax.f32 %v1982, 0.0
        %v1989 = vmax.f32 %v1985, 0.0
        %v1990 = vmul.f32 %v1988, %v1569
        %v1991 = vmul.f32 %v1989, %v1569
        %v1992 = vpack.c.bf16 %v1991, %v1990
        %1994 = vrot.lane.b32.xlu0 %v1992, 11
        %v1995 = vpop.permute.xlu0 %1994
        %v1997 = vsel %vm1577, 0, %v1995
        %v1998 = vsel %vm1580, %v1997, 0
        %s1999 = scalar_lea.vmem [#allocation5], 8
        %v2000 = vld [vmem:[%s1999] sm:$0xf]
        %v2001 = vld [vmem:[%s1999 + $0x4] sm:$0xf]
        %v2004 = vunpack.c.l.b16 %v2000
        %v2005 = vunpack.c.l.b16 %v2001
        %v2006 = vpack.c.b16 %v2005, %v2004
        %2007 = vrot.lane.b32.xlu0 %v1928, 127
        %v2008 = vpop.permute.xlu0 %2007
        %2009 = vrot.lane.b32.xlu0 %v1931, 127
        %v2010 = vpop.permute.xlu0 %2009
        %2011 = vrot.lane.b32.xlu0 %v1934, 127
        %v2012 = vpop.permute.xlu0 %2011
        %v2017 = vsel %vm1943, %v2006, 0
        %2019 = vmatprep.subr.bf16.mxu0 0
        %2020 = vmatpush1.bf16.msra.mxu0 0
        %2021 = vmatprep.subr.bf16.mxu0 0
        %2022 = vmatpush1.bf16.msra.mxu0 0
        %2023 = vmatprep.subr.bf16.mxu0 0
        %2024 = vmatpush1.bf16.msra.mxu0 0
        %2025 = vmatprep.subr.bf16.mxu0 0
        %2026 = vmatpush1.bf16.msra.mxu0 0
        %2027 = vmatprep.subr.bf16.mxu0 0
        %2028 = vmatpush1.bf16.msra.mxu0 %v2012
        %2029 = vmatprep.subr.bf16.mxu0 0
        %2030 = vmatpush1.bf16.msra.mxu0 %v2010
        %2031 = vmatprep.subr.bf16.mxu0 0
        %2032 = vmatpush1.bf16.msra.mxu0 %v2008
        %2033 = vmatprep.subr.bf16.mxu0 0
        %2034 = vmatpush1.bf16.msra.mxu0 %v1928
        %2035 = vmatprep.subr.bf16.mxu0 0
        %2036 = vmatpush2.bf16.msra.mxu0 0
        %2037 = vmatprep.subr.bf16.mxu0 0
        %2038 = vmatpush2.bf16.msra.mxu0 0
        %2039 = vmatprep.subr.bf16.mxu0 0
        %2040 = vmatpush2.bf16.msra.mxu0 0
        %2041 = vmatprep.subr.bf16.mxu0 0
        %2042 = vmatpush2.bf16.msra.mxu0 0
        %2043 = vmatprep.subr.bf16.mxu0 0
        %2044 = vmatpush2.bf16.msra.mxu0 0
        %2045 = vmatprep.subr.bf16.mxu0 0
        %2046 = vmatpush2.bf16.msra.mxu0 0
        %2047 = vmatprep.subr.bf16.mxu0 0
        %2048 = vmatpush2.bf16.msra.mxu0 0
        %2049 = vmatprep.subr.bf16.mxu0 0
        %2050 = vmatpush2.bf16.msra.mxu0 0
        %2051 = vmatprep.mubr.bf16.mxu0 0
        %2052 = vmatmul.mubr.bf16.gmra.mxu0 %v2017
        %v2053 = vpop.f32.mrf.mxu0
        %v2054 = vadd.f32 %v1919, %v2053
        %v2055 = vpop.f32.mrf.mxu0
        %v2056 = vpop.f32.mrf.mxu0
        %v2057 = vadd.f32 %v1924, %v2056
        %v2058 = vpop.f32.mrf.mxu0
        %2059 = vdwg.mxu0
        %v2060 = vmax.f32 %v2054, 0.0
        %v2061 = vmax.f32 %v2057, 0.0
        %v2062 = vmul.f32 %v2060, %v1569
        %v2063 = vmul.f32 %v2061, %v1569
        %v2064 = vpack.c.bf16 %v2063, %v2062
        %2066 = vrot.lane.b32.xlu0 %v2064, 11
        %v2067 = vpop.permute.xlu0 %2066
        %v2069 = vsel %vm1577, 0, %v2067
        %v2070 = vsel %vm1580, %v2069, 0
        %s2071 = scalar_lea.vmem [#allocation5], 16
        %v2072 = vld [vmem:[%s2071] sm:$0xf]
        %v2073 = vld [vmem:[%s2071 + $0x4] sm:$0xf]
        %v2076 = vunpack.c.l.b16 %v2072
        %v2077 = vunpack.c.l.b16 %v2073
        %v2078 = vpack.c.b16 %v2077, %v2076
        %2079 = vrot.lane.b32.xlu0 %v1928, 118
        %v2080 = vpop.permute.xlu0 %2079
        %2081 = vrot.lane.b32.xlu0 %v1931, 118
        %v2082 = vpop.permute.xlu0 %2081
        %2083 = vrot.lane.b32.xlu0 %v1934, 118
        %v2084 = vpop.permute.xlu0 %2083
        %v2089 = vsel %vm1943, %v2078, 0
        %2091 = vmatprep.subr.bf16.mxu0 0
        %2092 = vmatpush1.bf16.msra.mxu0 0
        %2093 = vmatprep.subr.bf16.mxu0 0
        %2094 = vmatpush1.bf16.msra.mxu0 0
        %2095 = vmatprep.subr.bf16.mxu0 0
        %2096 = vmatpush1.bf16.msra.mxu0 0
        %2097 = vmatprep.subr.bf16.mxu0 0
        %2098 = vmatpush1.bf16.msra.mxu0 0
        %2099 = vmatprep.subr.bf16.mxu0 0
        %2100 = vmatpush1.bf16.msra.mxu0 %v2084
        %2101 = vmatprep.subr.bf16.mxu0 0
        %2102 = vmatpush1.bf16.msra.mxu0 %v2082
        %2103 = vmatprep.subr.bf16.mxu0 0
        %2104 = vmatpush1.bf16.msra.mxu0 %v2080
        %2105 = vmatprep.subr.bf16.mxu0 0
        %2106 = vmatpush1.bf16.msra.mxu0 %v1931
        %2107 = vmatprep.subr.bf16.mxu0 0
        %2108 = vmatpush2.bf16.msra.mxu0 0
        %2109 = vmatprep.subr.bf16.mxu0 0
        %2110 = vmatpush2.bf16.msra.mxu0 0
        %2111 = vmatprep.subr.bf16.mxu0 0
        %2112 = vmatpush2.bf16.msra.mxu0 0
        %2113 = vmatprep.subr.bf16.mxu0 0
        %2114 = vmatpush2.bf16.msra.mxu0 0
        %2115 = vmatprep.subr.bf16.mxu0 0
        %2116 = vmatpush2.bf16.msra.mxu0 0
        %2117 = vmatprep.subr.bf16.mxu0 0
        %2118 = vmatpush2.bf16.msra.mxu0 0
        %2119 = vmatprep.subr.bf16.mxu0 0
        %2120 = vmatpush2.bf16.msra.mxu0 0
        %2121 = vmatprep.subr.bf16.mxu0 0
        %2122 = vmatpush2.bf16.msra.mxu0 0
        %2123 = vmatprep.mubr.bf16.mxu0 0
        %2124 = vmatmul.mubr.bf16.gmra.mxu0 %v2089
        %v2125 = vpop.f32.mrf.mxu0
        %v2126 = vadd.f32 %v1919, %v2125
        %v2127 = vpop.f32.mrf.mxu0
        %v2128 = vpop.f32.mrf.mxu0
        %v2129 = vadd.f32 %v1924, %v2128
        %v2130 = vpop.f32.mrf.mxu0
        %2131 = vdwg.mxu0
        %v2132 = vmax.f32 %v2126, 0.0
        %v2133 = vmax.f32 %v2129, 0.0
        %v2134 = vmul.f32 %v2132, %v1569
        %v2135 = vmul.f32 %v2133, %v1569
        %v2136 = vpack.c.bf16 %v2135, %v2134
        %2138 = vrot.lane.b32.xlu0 %v2136, 11
        %v2139 = vpop.permute.xlu0 %2138
        %v2141 = vsel %vm1577, 0, %v2139
        %v2142 = vsel %vm1580, %v2141, 0
        %s2143 = scalar_lea.vmem [#allocation5], 24
        %v2144 = vld [vmem:[%s2143] sm:$0xf]
        %v2145 = vld [vmem:[%s2143 + $0x4] sm:$0xf]
        %v2148 = vunpack.c.l.b16 %v2144
        %v2149 = vunpack.c.l.b16 %v2145
        %v2150 = vpack.c.b16 %v2149, %v2148
        %2151 = vrot.lane.b32.xlu0 %v1928, 117
        %v2152 = vpop.permute.xlu0 %2151
        %2153 = vrot.lane.b32.xlu0 %v1931, 117
        %v2154 = vpop.permute.xlu0 %2153
        %2155 = vrot.lane.b32.xlu0 %v1934, 117
        %v2156 = vpop.permute.xlu0 %2155
        %v2161 = vsel %vm1943, %v2150, 0
        %2163 = vmatprep.subr.bf16.mxu0 0
        %2164 = vmatpush1.bf16.msra.mxu0 0
        %2165 = vmatprep.subr.bf16.mxu0 0
        %2166 = vmatpush1.bf16.msra.mxu0 0
        %2167 = vmatprep.subr.bf16.mxu0 0
        %2168 = vmatpush1.bf16.msra.mxu0 0
        %2169 = vmatprep.subr.bf16.mxu0 0
        %2170 = vmatpush1.bf16.msra.mxu0 0
        %2171 = vmatprep.subr.bf16.mxu0 0
        %2172 = vmatpush1.bf16.msra.mxu0 %v2156
        %2173 = vmatprep.subr.bf16.mxu0 0
        %2174 = vmatpush1.bf16.msra.mxu0 %v2154
        %2175 = vmatprep.subr.bf16.mxu0 0
        %2176 = vmatpush1.bf16.msra.mxu0 %v2152
        %2177 = vmatprep.subr.bf16.mxu0 0
        %2178 = vmatpush1.bf16.msra.mxu0 %v1934
        %2179 = vmatprep.subr.bf16.mxu0 0
        %2180 = vmatpush2.bf16.msra.mxu0 0
        %2181 = vmatprep.subr.bf16.mxu0 0
        %2182 = vmatpush2.bf16.msra.mxu0 0
        %2183 = vmatprep.subr.bf16.mxu0 0
        %2184 = vmatpush2.bf16.msra.mxu0 0
        %2185 = vmatprep.subr.bf16.mxu0 0
        %2186 = vmatpush2.bf16.msra.mxu0 0
        %2187 = vmatprep.subr.bf16.mxu0 0
        %2188 = vmatpush2.bf16.msra.mxu0 0
        %2189 = vmatprep.subr.bf16.mxu0 0
        %2190 = vmatpush2.bf16.msra.mxu0 0
        %2191 = vmatprep.subr.bf16.mxu0 0
        %2192 = vmatpush2.bf16.msra.mxu0 0
        %2193 = vmatprep.subr.bf16.mxu0 0
        %2194 = vmatpush2.bf16.msra.mxu0 0
        %2195 = vmatprep.mubr.bf16.mxu0 0
        %2196 = vmatmul.mubr.bf16.gmra.mxu0 %v2161
        %v2197 = vpop.f32.mrf.mxu0
        %v2198 = vadd.f32 %v1919, %v2197
        %v2199 = vpop.f32.mrf.mxu0
        %v2200 = vpop.f32.mrf.mxu0
        %v2201 = vadd.f32 %v1924, %v2200
        %v2202 = vpop.f32.mrf.mxu0
        %2203 = vdwg.mxu0
        %v2204 = vmax.f32 %v2198, 0.0
        %v2205 = vmax.f32 %v2201, 0.0
        %v2206 = vmul.f32 %v2204, %v1569
        %v2207 = vmul.f32 %v2205, %v1569
        %v2208 = vpack.c.bf16 %v2207, %v2206
        %2210 = vrot.lane.b32.xlu0 %v2208, 11
        %v2211 = vpop.permute.xlu0 %2210
        %v2213 = vsel %vm1577, 0, %v2211
        %v2214 = vsel %vm1580, %v2213, 0
        %2216 = vrot.lane.b32.xlu0 %v2142, 79
        %v2217 = vpop.permute.xlu0 %2216
        %2219 = vrot.lane.b32.xlu0 %v2070, 22
        %v2220 = vpop.permute.xlu0 %2219
        %2222 = vrot.lane.b32.xlu0 %v1998, 101
        %v2223 = vpop.permute.xlu0 %2222
        %vm2225 = vcmask 654336
        %v2227 = vsel %vm2225, %v2214, %v2217
        %v2230 = vsel %vm1311, %v2217, %v2220
        %vm2231 = vcmask 916480
        %v2233 = vsel %vm2231, %v2230, %v2223
        %2235 = vrot.lane.b32.xlu0 %v2142, 127
        %v2236 = vpop.permute.xlu0 %2235
        %2238 = vrot.lane.b32.xlu0 %v2214, 79
        %v2239 = vpop.permute.xlu0 %2238
        %2240 = vrot.lane.b32.xlu0 %v1998, 21
        %v2241 = vpop.permute.xlu0 %2240
        %2242 = vrot.lane.b32.xlu0 %v2070, 101
        %v2243 = vpop.permute.xlu0 %2242
        %v2247 = vsel %vm2225, %v2236, %v2239
        %v2250 = vsel %vm1311, %v2239, %v2241
        %v2252 = vsel %vm2231, %v2250, %v2243
        %2254 = vrot.lane.b32.xlu0 %v2214, 127
        %v2255 = vpop.permute.xlu0 %2254
        %2256 = vrot.lane.b32.xlu0 %v2142, 78
        %v2257 = vpop.permute.xlu0 %2256
        %2258 = vrot.lane.b32.xlu0 %v2070, 21
        %v2259 = vpop.permute.xlu0 %2258
        %2260 = vrot.lane.b32.xlu0 %v1998, 100
        %v2261 = vpop.permute.xlu0 %2260
        %v2265 = vsel %vm2225, %v2255, %v2257
        %v2268 = vsel %vm1311, %v2257, %v2259
        %v2270 = vsel %vm2231, %v2268, %v2261
        %2272 = vrot.lane.b32.xlu0 %v2070, 118
        %v2273 = vpop.permute.xlu0 %2272
        %2274 = vrot.lane.b32.xlu0 %v1998, 69
        %v2275 = vpop.permute.xlu0 %2274
        %2276 = vrot.lane.b32.xlu0 %v2214, 22
        %v2277 = vpop.permute.xlu0 %2276
        %2278 = vrot.lane.b32.xlu0 %v2142, 101
        %v2279 = vpop.permute.xlu0 %2278
        %v2283 = vsel %vm2225, %v2273, %v2275
        %v2286 = vsel %vm1311, %v2275, %v2277
        %v2288 = vsel %vm2231, %v2286, %v2279
        %2290 = vrot.lane.b32.xlu0 %v1998, 117
        %v2291 = vpop.permute.xlu0 %2290
        %2292 = vrot.lane.b32.xlu0 %v2070, 69
        %v2293 = vpop.permute.xlu0 %2292
        %2294 = vrot.lane.b32.xlu0 %v2142, 21
        %v2295 = vpop.permute.xlu0 %2294
        %2296 = vrot.lane.b32.xlu0 %v2214, 101
        %v2297 = vpop.permute.xlu0 %2296
        %v2301 = vsel %vm2225, %v2291, %v2293
        %v2304 = vsel %vm1311, %v2293, %v2295
        %v2306 = vsel %vm2231, %v2304, %v2297
        %2308 = vrot.lane.b32.xlu0 %v2070, 117
        %v2309 = vpop.permute.xlu0 %2308
        %2310 = vrot.lane.b32.xlu0 %v1998, 68
        %v2311 = vpop.permute.xlu0 %2310
        %2312 = vrot.lane.b32.xlu0 %v2214, 21
        %v2313 = vpop.permute.xlu0 %2312
        %2314 = vrot.lane.b32.xlu0 %v2142, 100
        %v2315 = vpop.permute.xlu0 %2314
        %v2319 = vsel %vm2225, %v2309, %v2311
        %v2322 = vsel %vm1311, %v2311, %v2313
        %v2324 = vsel %vm2231, %v2322, %v2315
        %2326 = vrot.lane.b32.xlu0 %v2214, 118
        %v2327 = vpop.permute.xlu0 %2326
        %2328 = vrot.lane.b32.xlu0 %v2142, 69
        %v2329 = vpop.permute.xlu0 %2328
        %2330 = vrot.lane.b32.xlu0 %v2070, 12
        %v2331 = vpop.permute.xlu0 %2330
        %2332 = vrot.lane.b32.xlu0 %v1998, 91
        %v2333 = vpop.permute.xlu0 %2332
        %v2337 = vsel %vm2225, %v2327, %v2329
        %v2340 = vsel %vm1311, %v2329, %v2331
        %v2342 = vsel %vm2231, %v2340, %v2333
        %2344 = vrot.lane.b32.xlu0 %v2142, 117
        %v2345 = vpop.permute.xlu0 %2344
        %2346 = vrot.lane.b32.xlu0 %v2214, 69
        %v2347 = vpop.permute.xlu0 %2346
        %2348 = vrot.lane.b32.xlu0 %v1998, 11
        %v2349 = vpop.permute.xlu0 %2348
        %2350 = vrot.lane.b32.xlu0 %v2070, 91
        %v2351 = vpop.permute.xlu0 %2350
        %v2355 = vsel %vm2225, %v2345, %v2347
        %v2358 = vsel %vm1311, %v2347, %v2349
        %v2360 = vsel %vm2231, %v2358, %v2351
        %2362 = vrot.lane.b32.xlu0 %v2214, 117
        %v2363 = vpop.permute.xlu0 %2362
        %2364 = vrot.lane.b32.xlu0 %v2142, 68
        %v2365 = vpop.permute.xlu0 %2364
        %2366 = vrot.lane.b32.xlu0 %v2070, 11
        %v2367 = vpop.permute.xlu0 %2366
        %2368 = vrot.lane.b32.xlu0 %v1998, 90
        %v2369 = vpop.permute.xlu0 %2368
        %v2373 = vsel %vm2225, %v2363, %v2365
        %v2376 = vsel %vm1311, %v2365, %v2367
        %v2378 = vsel %vm2231, %v2376, %v2369
        %s2380 = scalar_lea.vmem %s3, 96
        %v2381 = vld [vmem:[%s2380] sm:$0xff]
        %v2382 = vld [vmem:[%s2380 + $0x8] sm:$0xff]
        %s2383 = scalar_lea.vmem %s4, 96
        %v2384 = vld [vmem:[%s2383] sm:$0xff]
        %v2385 = vld [vmem:[%s2383 + $0x8] sm:$0xff]
        %2387 = vset.pattern.permute.xlu0 0
        %2388 = vperm.xlu0 %2387, %v2384
        %v2389 = vpop.permute.xlu0 %2388
        %2392 = vset.pattern.permute.xlu0 0
        %2393 = vperm.xlu0 %2392, %v2385
        %v2394 = vpop.permute.xlu0 %2393
        %v2398 = vunpack.c.l.b16 %v2381
        %v2399 = vunpack.c.h.b16 %v2381
        %v2400 = vunpack.c.l.b16 %v2382
        %v2401 = vunpack.c.h.b16 %v2382
        %v2402 = vpack.c.b16 %v2400, %v2398
        %v2403 = vpack.c.b16 %v2401, %v2399
        %v2406 = vsel %vm946, %v2403, 0
        %2408 = vmatprep.subr.bf16.mxu0 %v2360
        %2409 = vmatpush1.bf16.msra.mxu0 %v2355
        %2410 = vmatprep.subr.bf16.mxu0 %v2342
        %2411 = vmatpush1.bf16.msra.mxu0 %v2337
        %2412 = vmatprep.subr.bf16.mxu0 %v2324
        %2413 = vmatpush1.bf16.msra.mxu0 %v2319
        %2414 = vmatprep.subr.bf16.mxu0 %v2306
        %2415 = vmatpush1.bf16.msra.mxu0 %v2301
        %2416 = vmatprep.subr.bf16.mxu0 %v2288
        %2417 = vmatpush1.bf16.msra.mxu0 %v2283
        %2418 = vmatprep.subr.bf16.mxu0 %v2270
        %2419 = vmatpush1.bf16.msra.mxu0 %v2265
        %2420 = vmatprep.subr.bf16.mxu0 %v2252
        %2421 = vmatpush1.bf16.msra.mxu0 %v2247
        %2422 = vmatprep.subr.bf16.mxu0 %v2233
        %2423 = vmatpush1.bf16.msra.mxu0 %v2227
        %2424 = vmatprep.subr.bf16.mxu0 0
        %2425 = vmatpush2.bf16.msra.mxu0 0
        %2426 = vmatprep.subr.bf16.mxu0 0
        %2427 = vmatpush2.bf16.msra.mxu0 0
        %2428 = vmatprep.subr.bf16.mxu0 0
        %2429 = vmatpush2.bf16.msra.mxu0 0
        %2430 = vmatprep.subr.bf16.mxu0 0
        %2431 = vmatpush2.bf16.msra.mxu0 0
        %2432 = vmatprep.subr.bf16.mxu0 0
        %2433 = vmatpush2.bf16.msra.mxu0 0
        %2434 = vmatprep.subr.bf16.mxu0 0
        %2435 = vmatpush2.bf16.msra.mxu0 0
        %2436 = vmatprep.subr.bf16.mxu0 0
        %2437 = vmatpush2.bf16.msra.mxu0 0
        %2438 = vmatprep.subr.bf16.mxu0 %v2378
        %2439 = vmatpush2.bf16.msra.mxu0 %v2373
        %2440 = vmatprep.mubr.bf16.mxu0 %v2406
        %2441 = vmatmul.mubr.bf16.gmra.mxu0 %v2402
        %v2442 = vpop.f32.mrf.mxu0
        %v2443 = vadd.f32 %v2389, %v2442
        %v2444 = vpop.f32.mrf.mxu0
        %v2445 = vadd.f32 %v2389, %v2444
        %v2446 = vpop.f32.mrf.mxu0
        %v2447 = vadd.f32 %v2394, %v2446
        %v2448 = vpop.f32.mrf.mxu0
        %v2449 = vadd.f32 %v2394, %v2448
        %2450 = vdwg.mxu0
        %2451 = vmatprep.subr.bf16.mxu0 0
        %2452 = vmatpush1.bf16.msra.mxu0 %v2351
        %2453 = vmatprep.subr.bf16.mxu0 0
        %2454 = vmatpush1.bf16.msra.mxu0 %v2333
        %2455 = vmatprep.subr.bf16.mxu0 0
        %2456 = vmatpush1.bf16.msra.mxu0 %v2315
        %2457 = vmatprep.subr.bf16.mxu0 0
        %2458 = vmatpush1.bf16.msra.mxu0 %v2297
        %2459 = vmatprep.subr.bf16.mxu0 0
        %2460 = vmatpush1.bf16.msra.mxu0 %v2279
        %2461 = vmatprep.subr.bf16.mxu0 0
        %2462 = vmatpush1.bf16.msra.mxu0 %v2261
        %2463 = vmatprep.subr.bf16.mxu0 0
        %2464 = vmatpush1.bf16.msra.mxu0 %v2243
        %2465 = vmatprep.subr.bf16.mxu0 0
        %2466 = vmatpush1.bf16.msra.mxu0 %v2223
        %2467 = vmatprep.subr.bf16.mxu0 0
        %2468 = vmatpush2.bf16.msra.mxu0 0
        %2469 = vmatprep.subr.bf16.mxu0 0
        %2470 = vmatpush2.bf16.msra.mxu0 0
        %2471 = vmatprep.subr.bf16.mxu0 0
        %2472 = vmatpush2.bf16.msra.mxu0 0
        %2473 = vmatprep.subr.bf16.mxu0 0
        %2474 = vmatpush2.bf16.msra.mxu0 0
        %2475 = vmatprep.subr.bf16.mxu0 0
        %2476 = vmatpush2.bf16.msra.mxu0 0
        %2477 = vmatprep.subr.bf16.mxu0 0
        %2478 = vmatpush2.bf16.msra.mxu0 0
        %2479 = vmatprep.subr.bf16.mxu0 0
        %2480 = vmatpush2.bf16.msra.mxu0 0
        %2481 = vmatprep.subr.bf16.mxu0 0
        %2482 = vmatpush2.bf16.msra.mxu0 %v2369
        %2483 = vmatprep.mubr.bf16.mxu0 %v2406
        %2484 = vmatmul.mubr.bf16.gmra.mxu0 %v2402
        %v2485 = vpop.f32.mrf.mxu0
        %v2486 = vadd.f32 %v2389, %v2485
        %v2487 = vpop.f32.mrf.mxu0
        %v2488 = vpop.f32.mrf.mxu0
        %v2489 = vadd.f32 %v2394, %v2488
        %v2490 = vpop.f32.mrf.mxu0
        %2491 = vdwg.mxu0
        %v2492 = vmax.f32 %v2443, 0.0
        %v2493 = vmax.f32 %v2445, 0.0
        %v2494 = vmax.f32 %v2486, 0.0
        %v2495 = vmax.f32 %v2447, 0.0
        %v2496 = vmax.f32 %v2449, 0.0
        %v2497 = vmax.f32 %v2489, 0.0
        %2498 = vst [vmem:[%s515] sm:$0xff] %v2492
        %2499 = vst [vmem:[%s515 + $0x8] sm:$0xff] %v2493
        %2500 = vst.msk [vmem:[%s515 + $0x10] sm:$0xff] %vm1943, %v2494
        %2501 = vst [vmem:[%s515 + $0x18] sm:$0xff] %v2495
        %2502 = vst [vmem:[%s515 + $0x20] sm:$0xff] %v2496
        %2503 = vst.msk [vmem:[%s515 + $0x28] sm:$0xff] %vm1943, %v2497
        %v2504 = vld [vmem:[%s7] sm:$0x3]
        %v2505 = vpack.c.bf16 %v2495, %v2492
        %v2506 = vpack.c.bf16 %v2496, %v2493
        %v2507 = vpack.c.bf16 %v2497, %v2494
        %v2508 = vld [vmem:[%s8] sm:$0xf]
        %2510 = vset.pattern.permute.xlu0 0
        %2511 = vperm.xlu0 %2510, %v2508
        %v2512 = vpop.permute.xlu0 %2511
        %v2515 = vsel %vm946, %v2504, 0
        %2517 = vmatprep.subr.bf16.mxu0 0
        %2518 = vmatpush1.bf16.msra.mxu0 0
        %2519 = vmatprep.subr.bf16.mxu0 0
        %2520 = vmatpush1.bf16.msra.mxu0 0
        %2521 = vmatprep.subr.bf16.mxu0 0
        %2522 = vmatpush1.bf16.msra.mxu0 0
        %2523 = vmatprep.subr.bf16.mxu0 0
        %2524 = vmatpush1.bf16.msra.mxu0 0
        %2525 = vmatprep.subr.bf16.mxu0 0
        %2526 = vmatpush1.bf16.msra.mxu0 0
        %2527 = vmatprep.subr.bf16.mxu0 0
        %2528 = vmatpush1.bf16.msra.mxu0 0
        %2529 = vmatprep.subr.bf16.mxu0 0
        %2530 = vmatpush1.bf16.msra.mxu0 0
        %2531 = vmatprep.subr.bf16.mxu0 %v2506
        %2532 = vmatpush1.bf16.msra.mxu0 %v2505
        %2533 = vmatprep.subr.bf16.mxu0 0
        %2534 = vmatpush2.bf16.msra.mxu0 0
        %2535 = vmatprep.subr.bf16.mxu0 0
        %2536 = vmatpush2.bf16.msra.mxu0 0
        %2537 = vmatprep.subr.bf16.mxu0 0
        %2538 = vmatpush2.bf16.msra.mxu0 0
        %2539 = vmatprep.subr.bf16.mxu0 0
        %2540 = vmatpush2.bf16.msra.mxu0 0
        %2541 = vmatprep.subr.bf16.mxu0 0
        %2542 = vmatpush2.bf16.msra.mxu0 0
        %2543 = vmatprep.subr.bf16.mxu0 0
        %2544 = vmatpush2.bf16.msra.mxu0 0
        %2545 = vmatprep.subr.bf16.mxu0 0
        %2546 = vmatpush2.bf16.msra.mxu0 0
        %2547 = vmatprep.subr.bf16.mxu0 0
        %2548 = vmatpush2.bf16.msra.mxu0 0
        %2549 = vmatprep.mubr.bf16.mxu0 0
        %2550 = vmatmul.mubr.bf16.gmra.mxu0 %v2515
        %v2551 = vpop.f32.mrf.mxu0
        %v2552 = vadd.f32 %v2512, %v2551
        %v2553 = vpop.f32.mrf.mxu0
        %v2554 = vadd.f32 %v2512, %v2553
        %v2555 = vpop.f32.mrf.mxu0
        %v2556 = vpop.f32.mrf.mxu0
        %2557 = vdwg.mxu0
        %2558 = vmatprep.subr.bf16.mxu0 0
        %2559 = vmatpush1.bf16.msra.mxu0 0
        %2560 = vmatprep.subr.bf16.mxu0 0
        %2561 = vmatpush1.bf16.msra.mxu0 0
        %2562 = vmatprep.subr.bf16.mxu0 0
        %2563 = vmatpush1.bf16.msra.mxu0 0
        %2564 = vmatprep.subr.bf16.mxu0 0
        %2565 = vmatpush1.bf16.msra.mxu0 0
        %2566 = vmatprep.subr.bf16.mxu0 0
        %2567 = vmatpush1.bf16.msra.mxu0 0
        %2568 = vmatprep.subr.bf16.mxu0 0
        %2569 = vmatpush1.bf16.msra.mxu0 0
        %2570 = vmatprep.subr.bf16.mxu0 0
        %2571 = vmatpush1.bf16.msra.mxu0 0
        %2572 = vmatprep.subr.bf16.mxu0 0
        %2573 = vmatpush1.bf16.msra.mxu0 %v2507
        %2574 = vmatprep.subr.bf16.mxu0 0
        %2575 = vmatpush2.bf16.msra.mxu0 0
        %2576 = vmatprep.subr.bf16.mxu0 0
        %2577 = vmatpush2.bf16.msra.mxu0 0
        %2578 = vmatprep.subr.bf16.mxu0 0
        %2579 = vmatpush2.bf16.msra.mxu0 0
        %2580 = vmatprep.subr.bf16.mxu0 0
        %2581 = vmatpush2.bf16.msra.mxu0 0
        %2582 = vmatprep.subr.bf16.mxu0 0
        %2583 = vmatpush2.bf16.msra.mxu0 0
        %2584 = vmatprep.subr.bf16.mxu0 0
        %2585 = vmatpush2.bf16.msra.mxu0 0
        %2586 = vmatprep.subr.bf16.mxu0 0
        %2587 = vmatpush2.bf16.msra.mxu0 0
        %2588 = vmatprep.subr.bf16.mxu0 0
        %2589 = vmatpush2.bf16.msra.mxu0 0
        %2590 = vmatprep.mubr.bf16.mxu0 0
        %2591 = vmatmul.mubr.bf16.gmra.mxu0 %v2515
        %v2592 = vpop.f32.mrf.mxu0
        %v2593 = vadd.f32 %v2512, %v2592
        %v2594 = vpop.f32.mrf.mxu0
        %v2595 = vpop.f32.mrf.mxu0
        %v2596 = vpop.f32.mrf.mxu0
        %2597 = vdwg.mxu0
        %v2598 = vmax.f32 %v2552, 0.0
        %v2599 = vmax.f32 %v2554, 0.0
        %v2600 = vmax.f32 %v2593, 0.0
        %v2603 = vcombine.low %v2598, %v2599
        %2605 = vst [vmem:[%s522] sm:$0xff] %v2603
        %vm2606 = vcmask 519168
        %2607 = vst.msk [vmem:[%s522 + $0x8] sm:$0xf] %vm2606, %v2600
        %s2608 = sand.u32 %s299, 1
        %s2609 = scalar_lea.sflag [#allocation4], %s2608
        %s2610 = sand.u32 %s299, 1
        %s2611 = smul.addr %s2610, 16
        %s2612 = scalar_lea.vmem [#allocation8], %s2611
        %s2613 = sand.u32 %s34, 1
        %s2614 = scalar_lea.sflag [#allocation10], %s2613
        %s2615 = sand.u32 %s325, 1
        %s2616 = smul.addr %s2615, 48
        %s2617 = scalar_lea.vmem [#allocation9], %s2616
        %s2618 = sand.u32 %s34, 1
        %s2619 = scalar_lea.sflag [#allocation10], %s2618
        %s2620 = sand.u32 %s351, 1
        %s2621 = smul.addr %s2620, 12
        %s2622 = scalar_lea.vmem [#allocation11], %s2621
        // Predicated region
        $region81: #{tpu_custom_call.1} parent=67 // pred_check
          %p2623 = pneg %p309
        $region82: #{tpu_custom_call.1} parent=67 // pred_check_branch
          %2625 = sbr.rel (%p2623) target = $region84
        $region83: #{tpu_custom_call.1} parent=67 // pred_region
          %s2627 = ssub.s32 256, 256
          %2628 = vsyncadd %s2609, %s2627
          %s2629 = smul.addr %s34, 2
          %s2630 = smul.addr %s2629, 128
          %s2631 = scalar_lea.hbm %s12, %s2630
          %s2632 = sshll.u32 %s2612, 4
          %s2633 = int_to_ptr.vmem [resolvable:$true] %s2632
          %2638 = dma.vmem_to_hbm [thread:$0]  %s2633, 256, %s2631, %s2609, 128, 128, 8
        $region84: #{tpu_custom_call.1} parent=67 // pred_fallthru
          _
        // Predicated region
        $region85: #{tpu_custom_call.1} parent=67 // pred_check
          %p2639 = pneg %p335
        $region86: #{tpu_custom_call.1} parent=67 // pred_check_branch
          %2641 = sbr.rel (%p2639) target = $region88
        $region87: #{tpu_custom_call.1} parent=67 // pred_region
          %s2643 = ssub.s32 768, 768
          %2644 = vsyncadd %s2614, %s2643
          %s2645 = smul.addr %s34, 6
          %s2646 = smul.addr %s2645, 128
          %s2647 = scalar_lea.hbm %s13, %s2646
          %s2648 = sshll.u32 %s2617, 4
          %s2649 = int_to_ptr.vmem [resolvable:$true] %s2648
          %2654 = dma.vmem_to_hbm [thread:$0]  %s2649, 768, %s2647, %s2614, 384, 384, 24
        $region88: #{tpu_custom_call.1} parent=67 // pred_fallthru
          _
        // Predicated region
        $region89: #{tpu_custom_call.1} parent=67 // pred_check
          %p2655 = pneg %p361
        $region90: #{tpu_custom_call.1} parent=67 // pred_check_branch
          %2657 = sbr.rel (%p2655) target = $region92
        $region91: #{tpu_custom_call.1} parent=67 // pred_region
          %s2659 = ssub.s32 192, 192
          %2660 = vsyncadd %s2619, %s2659
          %s2661 = smul.addr %s34, 3
          %s2662 = smul.addr %s2661, 64
          %s2663 = scalar_lea.hbm %s14, %s2662
          %s2665 = sshll.u32 %s2622, 4
          %s2666 = int_to_ptr.vmem [resolvable:$true] %s2665
          %2668 = dma.vmem_to_hbm [thread:$0]  %s2666, 192, %s2663, %s2619
        $region92: #{tpu_custom_call.1} parent=67 // pred_fallthru
          _
      $region68: #{tpu_custom_call.1} parent=5 // pred_fallthru
        _
      %p2669 = scmp.le.s32.totalorder 2, %s29
      // Predicated region
      $region93: #{tpu_custom_call.1} parent=5 // pred_check
        %p2670 = pneg %p2669
      $region94: #{tpu_custom_call.1} parent=5 // pred_check_branch
        %2672 = sbr.rel (%p2670) target = $region96
      $region95: #{tpu_custom_call.1} parent=5 // pred_region
        %s2673 = ssub.s32 %s29, 2
        // Predicated region
        $region97: #{tpu_custom_call.1} parent=95 // pred_check
          %p2674 = pneg %p315
        $region98: #{tpu_custom_call.1} parent=95 // pred_check_branch
          %2676 = sbr.rel (%p2674) target = $region100
        $region99: #{tpu_custom_call.1} parent=95 // pred_region
          %s2677 = sand.u32 %s300, 1
          %s2678 = scalar_lea.sflag [#allocation4], %s2677
          %s2679 = sand.u32 %s300, 1
          %s2680 = smul.addr %s2679, 16
          %s2681 = scalar_lea.vmem [#allocation8], %s2680
          %2682 = dma.done %s2678, 256
        $region100: #{tpu_custom_call.1} parent=95 // pred_fallthru
          _
        // Predicated region
        $region101: #{tpu_custom_call.1} parent=95 // pred_check
          %p2683 = pneg %p341
        $region102: #{tpu_custom_call.1} parent=95 // pred_check_branch
          %2685 = sbr.rel (%p2683) target = $region104
        $region103: #{tpu_custom_call.1} parent=95 // pred_region
          %s2686 = sand.u32 %s35, 1
          %s2687 = scalar_lea.sflag [#allocation10], %s2686
          %s2688 = sand.u32 %s326, 1
          %s2689 = smul.addr %s2688, 48
          %s2690 = scalar_lea.vmem [#allocation9], %s2689
          %2691 = dma.done %s2687, 768
        $region104: #{tpu_custom_call.1} parent=95 // pred_fallthru
          _
        // Predicated region
        $region105: #{tpu_custom_call.1} parent=95 // pred_check
          %p2692 = pneg %p367
        $region106: #{tpu_custom_call.1} parent=95 // pred_check_branch
          %2694 = sbr.rel (%p2692) target = $region108
        $region107: #{tpu_custom_call.1} parent=95 // pred_region
          %s2695 = sand.u32 %s35, 1
          %s2696 = scalar_lea.sflag [#allocation10], %s2695
          %s2697 = sand.u32 %s352, 1
          %s2698 = smul.addr %s2697, 12
          %s2699 = scalar_lea.vmem [#allocation11], %s2698
          %2700 = dma.done %s2696, 192
        $region108: #{tpu_custom_call.1} parent=95 // pred_fallthru
          _
      $region96: #{tpu_custom_call.1} parent=5 // pred_fallthru
        _
    $region6: #{tpu_custom_call.1} parent=1 // loop_footer
      %s33 = sadd.s32 1, %s29
    $region7: #{tpu_custom_call.1} parent=1 // loop_footer_branch
      %28 = sbr.rel target = $region3
    $region8: #{tpu_custom_call.1} parent=1 // loop_exit
      _
    %2701 = vsyncpa [#allocation3], 1
    %s2702 = scalar_lea.sflag [#allocation3], 1
    %2703 = vsyncpa %s2702, 1
    %2704 = vsyncpa [#allocation6], 1
    %2705 = vsyncpa [#allocation4], 1
    %s2706 = scalar_lea.sflag [#allocation4], 1
    %2707 = vsyncpa %s2706, 1
    %2708 = vsyncpa [#allocation10], 1
    %s2709 = scalar_lea.sflag [#allocation10], 1
    %2710 = vsyncpa %s2709, 1

</llo_original>
